<compile_context>
chip_gen: v6e
topology: v6e:2x2x1
jax: 0.10.0
libtpu: 0.0.40
codegen_flags: <defaults>
</compile_context>

<pallas_src>
import functools

import jax
import jax.numpy as jnp
from jax.experimental import pallas as pl
from jax.experimental.pallas import tpu as pltpu


# ------------------------- in-kernel helpers -------------------------

def _layernorm(x, eps=1e-6):
    mu = jnp.mean(x, axis=-1, keepdims=True)
    xc = x - mu
    var = jnp.mean(xc * xc, axis=-1, keepdims=True)
    return xc * jax.lax.rsqrt(var + eps)


# ------------------------- the fused kernel -------------------------

def transformer_block_kernel(
    x_ref, c_ref, ctx_ref, cos_ref, sina_ref, sinb_ref,
    wada_ref, bada_ref,
    wq1_ref, bq1_ref, wk1_ref, bk1_ref, wv1_ref, bv1_ref, wo1_ref, bo1_ref,
    wq2_ref, bq2_ref, wk2_ref, bk2_ref, wv2_ref, bv2_ref, wo2_ref, bo2_ref,
    wfc1_ref, bfc1_ref, wfc2_ref, bfc2_ref,
    o_ref,
    k1_ref, v1_ref, k2_ref, v2_ref,
    *, num_heads, dim_head, hidden, q_tile, k_tile, n_seq,
):
    bf16 = jnp.bfloat16
    f32 = jnp.float32
    inner = num_heads * dim_head
    half = dim_head // 2
    qi = pl.program_id(1)

    # ---- adaLN-Zero modulation: one fused (1,H)@(H,9H) matmul (tiny; recomputed per tile) ----
    c = c_ref[0].astype(f32)                                    # (1, H)
    c_silu = (c * jax.nn.sigmoid(c)).astype(bf16)
    mod = jnp.dot(c_silu, wada_ref[...], preferred_element_type=f32) + bada_ref[...]

    def mchunk(i):
        return mod[:, i * hidden:(i + 1) * hidden]              # static slices

    shift_msa, scale_msa, gate_msa = mchunk(0), mchunk(1), mchunk(2)
    shift_xa, scale_xa, gate_xa = mchunk(3), mchunk(4), mchunk(5)
    shift_mlp, scale_mlp, gate_mlp = mchunk(6), mchunk(7), mchunk(8)

    # ---- rotary on the folded lane-dense (rows, inner) layout ----
    # tables arrive at (N, dim_head); tile across heads in-kernel (cheap lane concat);
    # rotate_half is realised as two full-row lane rolls with masked +/- sin tables.
    def rope(t, row_start, rows):
        sl = pl.ds(row_start, rows)
        cosf = jnp.tile(cos_ref[sl, :], (1, num_heads))
        sinaf = jnp.tile(sina_ref[sl, :], (1, num_heads))
        sinbf = jnp.tile(sinb_ref[sl, :], (1, num_heads))
        return (t * cosf
                + pltpu.roll(t, shift=half, axis=1) * sinaf
                + pltpu.roll(t, shift=inner - half, axis=1) * sinbf)

    def split_heads(t):
        # (rows, inner) f32 -> (h, rows, d) bf16
        tb = t.astype(bf16)
        return jnp.concatenate(
            [tb[:, h * dim_head:(h + 1) * dim_head][None] for h in range(num_heads)],
            axis=0)

    def merge_heads(t):
        # (h, rows, d) -> (rows, inner)
        return jnp.concatenate([t[h] for h in range(num_heads)], axis=-1)

    # ---- per-batch K/V precompute (runs once per batch, reused by every q-tile) ----
    @pl.when(qi == 0)
    def _():
        x_full = x_ref[0].astype(f32)                            # (N, H)
        h1f = (_layernorm(x_full) * (1.0 + scale_msa) + shift_msa).astype(bf16)
        k1 = jnp.dot(h1f, wk1_ref[...], preferred_element_type=f32) + bk1_ref[...]
        v1 = jnp.dot(h1f, wv1_ref[...], preferred_element_type=f32) + bv1_ref[...]
        k1_ref[...] = split_heads(rope(k1, 0, n_seq))
        v1_ref[...] = split_heads(v1)

        ctx_n = _layernorm(ctx_ref[0].astype(f32)).astype(bf16)  # (M, H)
        k2 = jnp.dot(ctx_n, wk2_ref[...], preferred_element_type=f32) + bk2_ref[...]
        v2 = jnp.dot(ctx_n, wv2_ref[...], preferred_element_type=f32) + bv2_ref[...]
        k2_ref[...] = split_heads(k2)
        v2_ref[...] = split_heads(v2)

    # ---- this q-tile's rows of the residual stream ----
    row0 = pl.multiple_of(qi * q_tile, q_tile)
    x = x_ref[0, pl.ds(row0, q_tile), :].astype(f32)             # (TQ, H)

    # ---- self-attention branch (flash-style online softmax over k_tile chunks) ----
    h1 = (_layernorm(x) * (1.0 + scale_msa) + shift_msa).astype(bf16)
    q = jnp.dot(h1, wq1_ref[...], preferred_element_type=f32) + bq1_ref[...]
    qh = split_heads(rope(q, row0, q_tile))                      # (h, TQ, d) bf16

    def flash_step(ck, carry):
        m, l, acc = carry
        ks = pl.ds(pl.multiple_of(ck * k_tile, k_tile), k_tile)
        kh = k1_ref[:, ks, :]                                    # (h, TK, d) bf16
        vh = v1_ref[:, ks, :]
        s = jnp.einsum('hnd,hmd->hnm', qh, kh, preferred_element_type=f32)
        m_new = jnp.maximum(m, jnp.max(s, axis=-1, keepdims=True))
        alpha = jnp.exp(m - m_new)
        p = jnp.exp(s - m_new)
        l_new = alpha * l + jnp.sum(p, axis=-1, keepdims=True)
        acc_new = alpha * acc + jnp.einsum('hnm,hmd->hnd', p.astype(bf16), vh,
                                           preferred_element_type=f32)
        return m_new, l_new, acc_new

    m0 = jnp.full((num_heads, q_tile, 1), -jnp.inf, f32)
    l0 = jnp.zeros((num_heads, q_tile, 1), f32)
    acc0 = jnp.zeros((num_heads, q_tile, dim_head), f32)
    _, l, acc = jax.lax.fori_loop(0, n_seq // k_tile, flash_step, (m0, l0, acc0))
    attn = merge_heads(acc * pl.reciprocal(l, approx=True))      # (TQ, inner) f32
    attn = jnp.dot(attn.astype(bf16), wo1_ref[...],
                   preferred_element_type=f32) + bo1_ref[...]
    x = x + gate_msa * attn

    # ---- cross-attention branch ----
    h2 = (_layernorm(x) * (1.0 + scale_xa) + shift_xa).astype(bf16)
    q2 = jnp.dot(h2, wq2_ref[...], preferred_element_type=f32) + bq2_ref[...]
    q2h = split_heads(q2)
    s2 = jnp.einsum('hnd,hmd->hnm', q2h, k2_ref[...], preferred_element_type=f32)
    s2 = s2 - jnp.max(s2, axis=-1, keepdims=True)
    p2 = jnp.exp(s2)
    p2 = p2 * pl.reciprocal(jnp.sum(p2, axis=-1, keepdims=True), approx=True)
    o2 = jnp.einsum('hnm,hmd->hnd', p2.astype(bf16), v2_ref[...],
                    preferred_element_type=f32)
    xattn = merge_heads(o2)
    xattn = jnp.dot(xattn.astype(bf16), wo2_ref[...],
                    preferred_element_type=f32) + bo2_ref[...]
    x = x + gate_xa * xattn

    # ---- MLP branch (GELU tanh approx); (TQ, 4H) intermediate is bounded by the q-tile ----
    h3 = (_layernorm(x) * (1.0 + scale_mlp) + shift_mlp).astype(bf16)
    hdn = jnp.dot(h3, wfc1_ref[...], preferred_element_type=f32) + bfc1_ref[...]
    hdn = jax.nn.gelu(hdn, approximate=True).astype(bf16)
    mlp = jnp.dot(hdn, wfc2_ref[...], preferred_element_type=f32) + bfc2_ref[...]
    x = x + gate_mlp * mlp

    # Dropout layers are no-ops (p=0 / eval mode).
    o_ref[0] = x.astype(o_ref.dtype)


# ------------------------- wrapper -------------------------

def _pick_tile(n, prefs):
    for t in prefs:
        if t <= n and n % t == 0:
            return t
    return n


def transformer_block(x, c, context, rotary_emb, params, *,
                      num_heads, dim_head, q_tile=None, k_tile=None):
    B, N, H = x.shape
    M = context.shape[1]
    inner = num_heads * dim_head
    scale = dim_head ** -0.5
    bf16, f32 = jnp.bfloat16, jnp.float32

    q_tile = q_tile or _pick_tile(N, (256, 128, 64, 32, 16, 8))
    k_tile = k_tile or _pick_tile(N, (512, 256, 128, 64, 32, 16, 8))

    c3 = c.reshape(B, 1, H)                       # keep native dtype; upcast in-kernel

    # --- rotary tables at (N, dim_head): cos, masked +sin (2nd half) / -sin (1st half) ---
    half = dim_head // 2
    cos_t = jnp.cos(rotary_emb).astype(f32)
    sin = jnp.sin(rotary_emb).astype(f32)
    hi = (jnp.arange(dim_head) >= half).astype(f32)
    sin_a = sin * hi
    sin_b = sin * (hi - 1.0)

    # --- weights: bf16 for MXU, f32 biases; fold attention scale into q projections ---
    def split_kv(wkv, bkv):
        return (wkv[:, :inner].astype(bf16), bkv[:, :inner].astype(f32),
                wkv[:, inner:].astype(bf16), bkv[:, inner:].astype(f32))

    wada = params["wada"].astype(bf16)
    bada = params["bada"].astype(f32)
    wq1 = (params["wq1"] * scale).astype(bf16)
    bq1 = (params["bq1"] * scale).astype(f32)
    wk1, bk1, wv1, bv1 = split_kv(params["wkv1"], params["bkv1"])
    wo1 = params["wo1"].astype(bf16); bo1 = params["bo1"].astype(f32)
    wq2 = (params["wq2"] * scale).astype(bf16)
    bq2 = (params["bq2"] * scale).astype(f32)
    wk2, bk2, wv2, bv2 = split_kv(params["wkv2"], params["bkv2"])
    wo2 = params["wo2"].astype(bf16); bo2 = params["bo2"].astype(f32)
    wfc1 = params["wfc1"].astype(bf16); bfc1 = params["bfc1"].astype(f32)
    wfc2 = params["wfc2"].astype(bf16); bfc2 = params["bfc2"].astype(f32)

    weights = [wada, bada,
               wq1, bq1, wk1, bk1, wv1, bv1, wo1, bo1,
               wq2, bq2, wk2, bk2, wv2, bv2, wo2, bo2,
               wfc1, bfc1, wfc2, bfc2]
    batch_args = [x, c3, context]
    tables = [cos_t, sin_a, sin_b]
    args = batch_args + tables + weights

    def batch_spec(shape):
        rank = len(shape)
        return pl.BlockSpec((1,) + tuple(shape[1:]),
                            lambda b, q, _r=rank: (b,) + (0,) * (_r - 1))

    def const_spec(shape):
        rank = len(shape)
        idx = lambda b, q, _r=rank: (0,) * _r
        try:
            # constant blocks never change -> single-buffer to halve VMEM residency
            return pl.BlockSpec(tuple(shape), idx, pipeline_mode=pl.Buffered(1))
        except Exception:
            return pl.BlockSpec(tuple(shape), idx)

    in_specs = ([batch_spec(a.shape) for a in batch_args]
                + [const_spec(a.shape) for a in tables + weights])
    out_specs = pl.BlockSpec((1, q_tile, H), lambda b, q: (b, q, 0))

    # --- generation-aware VMEM budget with ~15% headroom (v7x 64 MiB, v5e/v6e 128 MiB) ---
    try:
        cap = int(getattr(pltpu.get_tpu_info(), "vmem_capacity_bytes", 64 * 1024 * 1024))
    except Exception:
        cap = 64 * 1024 * 1024
    vmem_limit = max(16 * 1024 * 1024, int(cap * 0.85))

    kernel = functools.partial(
        transformer_block_kernel,
        num_heads=num_heads, dim_head=dim_head, hidden=H,
        q_tile=q_tile, k_tile=k_tile, n_seq=N)

    return pl.pallas_call(
        kernel,
        out_shape=jax.ShapeDtypeStruct((B, N, H), x.dtype),
        grid=(B, N // q_tile),
        in_specs=in_specs,
        out_specs=out_specs,
        scratch_shapes=[
            pltpu.VMEM((num_heads, N, dim_head), bf16),   # self-attn K (rope applied)
            pltpu.VMEM((num_heads, N, dim_head), bf16),   # self-attn V
            pltpu.VMEM((num_heads, M, dim_head), bf16),   # cross-attn K
            pltpu.VMEM((num_heads, M, dim_head), bf16),   # cross-attn V
        ],
        compiler_params=pltpu.CompilerParams(
            # q-tile axis is "arbitrary": tiles of one batch reuse the K/V scratch written
            # at qi == 0.  Batch axis is "parallel" (megacore on v7x).
            dimension_semantics=("parallel", "arbitrary"),
            vmem_limit_bytes=vmem_limit,
        ),
    )(*args)


# ------------------------- pure-JAX reference -------------------------

def _ref_block(x, c, context, rot, p, *, num_heads, dim_head):
    H = x.shape[-1]
    inner = num_heads * dim_head

    def ln(t):
        mu = t.mean(-1, keepdims=True)
        var = ((t - mu) ** 2).mean(-1, keepdims=True)
        return (t - mu) * jax.lax.rsqrt(var + 1e-6)

    def lin(t, w, b):
        return t @ w + b

    def rh(t):
        d = t.shape[-1] // 2
        return jnp.concatenate([-t[..., d:], t[..., :d]], -1)

    def attn(q, k, v, use_rot):
        B, N, _ = q.shape
        Mk = k.shape[1]
        qh = q.reshape(B, N, num_heads, dim_head).transpose(0, 2, 1, 3)
        kh = k.reshape(B, Mk, num_heads, dim_head).transpose(0, 2, 1, 3)
        vh = v.reshape(B, Mk, num_heads, dim_head).transpose(0, 2, 1, 3)
        if use_rot:
            cos, sin = jnp.cos(rot), jnp.sin(rot)
            qh = qh * cos + rh(qh) * sin
            kh = kh * cos + rh(kh) * sin
        s = jnp.einsum("bhnd,bhmd->bhnm", qh, kh) * dim_head ** -0.5
        pr = jax.nn.softmax(s, axis=-1)
        o = jnp.einsum("bhnm,bhmd->bhnd", pr, vh)
        return o.transpose(0, 2, 1, 3).reshape(B, N, inner)

    mod = lin(c * jax.nn.sigmoid(c), p["wada"], p["bada"])
    ch = [mod[:, i * H:(i + 1) * H] for i in range(9)]
    (s_msa, sc_msa, g_msa, s_xa, sc_xa, g_xa, s_mlp, sc_mlp, g_mlp) = ch

    def modulate(t, shift, scale):
        return t * (1 + scale[:, None, :]) + shift[:, None, :]

    h1 = modulate(ln(x), s_msa, sc_msa)
    q = lin(h1, p["wq1"], p["bq1"]); kv = lin(h1, p["wkv1"], p["bkv1"])
    out = attn(q, kv[..., :inner], kv[..., inner:], True)
    x = x + g_msa[:, None, :] * lin(out, p["wo1"], p["bo1"])

    h2 = modulate(ln(x), s_xa, sc_xa)
    cn = ln(context)
    q = lin(h2, p["wq2"], p["bq2"]); kv = lin(cn, p["wkv2"], p["bkv2"])
    out = attn(q, kv[..., :inner], kv[..., inner:], False)
    x = x + g_xa[:, None, :] * lin(out, p["wo2"], p["bo2"])

    h3 = modulate(ln(x), s_mlp, sc_mlp)
    hdn = jax.nn.gelu(lin(h3, p["wfc1"], p["bfc1"]), approximate=True)
    x = x + g_mlp[:, None, :] * lin(hdn, p["wfc2"], p["bfc2"])
    return x


# ------------------------- main -------------------------

if __name__ == "__main__":
    B, N, M = 2, 8, 8
    H = 32                 # hidden_size
    num_heads = 2
    dim_head = 64          # Attention default dim_head
    inner = num_heads * dim_head
    mlp_hidden = int(H * 4.0)

    key = jax.random.PRNGKey(0)
    keys = iter(jax.random.split(key, 64))

    def w(shape, scale=0.05):
        return jax.random.normal(next(keys), shape, jnp.float32) * scale

    params = {
        "wada": w((H, 9 * H)), "bada": w((1, 9 * H)),
        "wq1": w((H, inner)), "bq1": w((1, inner)),
        "wkv1": w((H, 2 * inner)), "bkv1": w((1, 2 * inner)),
        "wo1": w((inner, H)), "bo1": w((1, H)),
        "wq2": w((H, inner)), "bq2": w((1, inner)),
        "wkv2": w((H, 2 * inner)), "bkv2": w((1, 2 * inner)),
        "wo2": w((inner, H)), "bo2": w((1, H)),
        "wfc1": w((H, mlp_hidden)), "bfc1": w((1, mlp_hidden)),
        "wfc2": w((mlp_hidden, H)), "bfc2": w((1, H)),
    }

    x = jax.random.normal(next(keys), (B, N, H), jnp.float32)
    c = jax.random.normal(next(keys), (B, H), jnp.float32)
    context = jax.random.normal(next(keys), (B, M, H), jnp.float32)
    rotary_emb = jax.random.normal(next(keys), (N, dim_head), jnp.float32)

    out = transformer_block(x, c, context, rotary_emb, params,
                            num_heads=num_heads, dim_head=dim_head)
    out = jax.block_until_ready(out)

    ref = _ref_block(x, c, context, rotary_emb, params,
                     num_heads=num_heads, dim_head=dim_head)
    ref = jax.block_until_ready(ref)

    err = float(jnp.max(jnp.abs(out - ref)))
    assert err < 1e-2, f"max abs err {err}"
    print("KERNEL_OK")
</pallas_src>

<mosaic_0001>
module attributes {stable_mosaic.version = 11 : i64} {
  func.func @transformer_block_kernel(%arg0: i32, %arg1: i32, %arg2: memref<1x8x32xf32, #tpu.memory_space<vmem>>, %arg3: memref<1x1x32xf32, #tpu.memory_space<vmem>>, %arg4: memref<1x8x32xf32, #tpu.memory_space<vmem>>, %arg5: memref<8x64xf32, #tpu.memory_space<vmem>>, %arg6: memref<8x64xf32, #tpu.memory_space<vmem>>, %arg7: memref<8x64xf32, #tpu.memory_space<vmem>>, %arg8: memref<32x288xbf16, #tpu.memory_space<vmem>>, %arg9: memref<1x288xf32, #tpu.memory_space<vmem>>, %arg10: memref<32x128xbf16, #tpu.memory_space<vmem>>, %arg11: memref<1x128xf32, #tpu.memory_space<vmem>>, %arg12: memref<32x128xbf16, #tpu.memory_space<vmem>>, %arg13: memref<1x128xf32, #tpu.memory_space<vmem>>, %arg14: memref<32x128xbf16, #tpu.memory_space<vmem>>, %arg15: memref<1x128xf32, #tpu.memory_space<vmem>>, %arg16: memref<128x32xbf16, #tpu.memory_space<vmem>>, %arg17: memref<1x32xf32, #tpu.memory_space<vmem>>, %arg18: memref<32x128xbf16, #tpu.memory_space<vmem>>, %arg19: memref<1x128xf32, #tpu.memory_space<vmem>>, %arg20: memref<32x128xbf16, #tpu.memory_space<vmem>>, %arg21: memref<1x128xf32, #tpu.memory_space<vmem>>, %arg22: memref<32x128xbf16, #tpu.memory_space<vmem>>, %arg23: memref<1x128xf32, #tpu.memory_space<vmem>>, %arg24: memref<128x32xbf16, #tpu.memory_space<vmem>>, %arg25: memref<1x32xf32, #tpu.memory_space<vmem>>, %arg26: memref<32x128xbf16, #tpu.memory_space<vmem>>, %arg27: memref<1x128xf32, #tpu.memory_space<vmem>>, %arg28: memref<128x32xbf16, #tpu.memory_space<vmem>>, %arg29: memref<1x32xf32, #tpu.memory_space<vmem>>, %arg30: memref<1x8x32xf32, #tpu.memory_space<vmem>>, %arg31: memref<2x8x64xbf16, #tpu.memory_space<vmem>>, %arg32: memref<2x8x64xbf16, #tpu.memory_space<vmem>>, %arg33: memref<2x8x64xbf16, #tpu.memory_space<vmem>>, %arg34: memref<2x8x64xbf16, #tpu.memory_space<vmem>>) attributes {dimension_semantics = [#tpu.dimension_semantics<parallel>, #tpu.dimension_semantics<arbitrary>], iteration_bounds = array<i64: 2, 1>, scalar_prefetch = 0 : i64, scratch_operands = 4 : i64, tpu.core_type = #tpu.core_type<tc>, window_params = [{transform_indices = @transform_0, window_bounds = array<i64: 1, 8, 32>}, {transform_indices = @transform_1, window_bounds = array<i64: 1, 1, 32>}, {transform_indices = @transform_2, window_bounds = array<i64: 1, 8, 32>}, {pipeline_mode = #tpu.pipeline_mode<synchronous>, transform_indices = @transform_3, window_bounds = array<i64: 8, 64>}, {pipeline_mode = #tpu.pipeline_mode<synchronous>, transform_indices = @transform_4, window_bounds = array<i64: 8, 64>}, {pipeline_mode = #tpu.pipeline_mode<synchronous>, transform_indices = @transform_5, window_bounds = array<i64: 8, 64>}, {pipeline_mode = #tpu.pipeline_mode<synchronous>, transform_indices = @transform_6, window_bounds = array<i64: 32, 288>}, {pipeline_mode = #tpu.pipeline_mode<synchronous>, transform_indices = @transform_7, window_bounds = array<i64: 1, 288>}, {pipeline_mode = #tpu.pipeline_mode<synchronous>, transform_indices = @transform_8, window_bounds = array<i64: 32, 128>}, {pipeline_mode = #tpu.pipeline_mode<synchronous>, transform_indices = @transform_9, window_bounds = array<i64: 1, 128>}, {pipeline_mode = #tpu.pipeline_mode<synchronous>, transform_indices = @transform_10, window_bounds = array<i64: 32, 128>}, {pipeline_mode = #tpu.pipeline_mode<synchronous>, transform_indices = @transform_11, window_bounds = array<i64: 1, 128>}, {pipeline_mode = #tpu.pipeline_mode<synchronous>, transform_indices = @transform_12, window_bounds = array<i64: 32, 128>}, {pipeline_mode = #tpu.pipeline_mode<synchronous>, transform_indices = @transform_13, window_bounds = array<i64: 1, 128>}, {pipeline_mode = #tpu.pipeline_mode<synchronous>, transform_indices = @transform_14, window_bounds = array<i64: 128, 32>}, {pipeline_mode = #tpu.pipeline_mode<synchronous>, transform_indices = @transform_15, window_bounds = array<i64: 1, 32>}, {pipeline_mode = #tpu.pipeline_mode<synchronous>, transform_indices = @transform_16, window_bounds = array<i64: 32, 128>}, {pipeline_mode = #tpu.pipeline_mode<synchronous>, transform_indices = @transform_17, window_bounds = array<i64: 1, 128>}, {pipeline_mode = #tpu.pipeline_mode<synchronous>, transform_indices = @transform_18, window_bounds = array<i64: 32, 128>}, {pipeline_mode = #tpu.pipeline_mode<synchronous>, transform_indices = @transform_19, window_bounds = array<i64: 1, 128>}, {pipeline_mode = #tpu.pipeline_mode<synchronous>, transform_indices = @transform_20, window_bounds = array<i64: 32, 128>}, {pipeline_mode = #tpu.pipeline_mode<synchronous>, transform_indices = @transform_21, window_bounds = array<i64: 1, 128>}, {pipeline_mode = #tpu.pipeline_mode<synchronous>, transform_indices = @transform_22, window_bounds = array<i64: 128, 32>}, {pipeline_mode = #tpu.pipeline_mode<synchronous>, transform_indices = @transform_23, window_bounds = array<i64: 1, 32>}, {pipeline_mode = #tpu.pipeline_mode<synchronous>, transform_indices = @transform_24, window_bounds = array<i64: 32, 128>}, {pipeline_mode = #tpu.pipeline_mode<synchronous>, transform_indices = @transform_25, window_bounds = array<i64: 1, 128>}, {pipeline_mode = #tpu.pipeline_mode<synchronous>, transform_indices = @transform_26, window_bounds = array<i64: 128, 32>}, {pipeline_mode = #tpu.pipeline_mode<synchronous>, transform_indices = @transform_27, window_bounds = array<i64: 1, 32>}, {transform_indices = @transform_28, window_bounds = array<i64: 1, 8, 32>}]} {
    %c0 = arith.constant 0 : index
    %c0_0 = arith.constant 0 : index
    %c0_1 = arith.constant 0 : index
    %0 = vector.load %arg3[%c0, %c0_0, %c0_1] : memref<1x1x32xf32, #tpu.memory_space<vmem>>, vector<1x1x32xf32>
    %1 = vector.shape_cast %0 : vector<1x1x32xf32> to vector<1x32xf32>
    %2 = arith.negf %1 : vector<1x32xf32>
    %3 = math.exp %2 : vector<1x32xf32>
    %cst = arith.constant 1.000000e+00 : f32
    %4 = vector.broadcast %cst : f32 to vector<1x32xf32>
    %5 = arith.addf %4, %3 : vector<1x32xf32>
    %6 = arith.divf %4, %5 : vector<1x32xf32>
    %7 = arith.mulf %1, %6 : vector<1x32xf32>
    %8 = arith.truncf %7 : vector<1x32xf32> to vector<1x32xbf16>
    %c0_2 = arith.constant 0 : index
    %c0_3 = arith.constant 0 : index
    %9 = vector.load %arg8[%c0_2, %c0_3] : memref<32x288xbf16, #tpu.memory_space<vmem>>, vector<32x288xbf16>
    %cst_4 = arith.constant dense<0.000000e+00> : vector<1x288xf32>
    %10 = tpu.matmul %8, %9, %cst_4 {dimension_numbers = #tpu.dot_dimension_numbers<[1], [0], [0], [1], [0, 0, 1, 1], [], []>} : vector<1x32xbf16>, vector<32x288xbf16>, vector<1x288xf32> -> vector<1x288xf32>
    %c0_5 = arith.constant 0 : index
    %c0_6 = arith.constant 0 : index
    %11 = vector.load %arg9[%c0_5, %c0_6] : memref<1x288xf32, #tpu.memory_space<vmem>>, vector<1x288xf32>
    %12 = arith.addf %10, %11 : vector<1x288xf32>
    %13 = vector.extract_strided_slice %12 {offsets = [0, 0], sizes = [1, 32], strides = [1, 1]} : vector<1x288xf32> to vector<1x32xf32>
    %14 = vector.extract_strided_slice %12 {offsets = [0, 32], sizes = [1, 32], strides = [1, 1]} : vector<1x288xf32> to vector<1x32xf32>
    %15 = vector.extract_strided_slice %12 {offsets = [0, 64], sizes = [1, 32], strides = [1, 1]} : vector<1x288xf32> to vector<1x32xf32>
    %16 = vector.extract_strided_slice %12 {offsets = [0, 96], sizes = [1, 32], strides = [1, 1]} : vector<1x288xf32> to vector<1x32xf32>
    %17 = vector.extract_strided_slice %12 {offsets = [0, 128], sizes = [1, 32], strides = [1, 1]} : vector<1x288xf32> to vector<1x32xf32>
    %18 = vector.extract_strided_slice %12 {offsets = [0, 160], sizes = [1, 32], strides = [1, 1]} : vector<1x288xf32> to vector<1x32xf32>
    %19 = vector.extract_strided_slice %12 {offsets = [0, 192], sizes = [1, 32], strides = [1, 1]} : vector<1x288xf32> to vector<1x32xf32>
    %20 = vector.extract_strided_slice %12 {offsets = [0, 224], sizes = [1, 32], strides = [1, 1]} : vector<1x288xf32> to vector<1x32xf32>
    %21 = vector.extract_strided_slice %12 {offsets = [0, 256], sizes = [1, 32], strides = [1, 1]} : vector<1x288xf32> to vector<1x32xf32>
    %c0_i32 = arith.constant 0 : i32
    %22 = arith.cmpi eq, %arg1, %c0_i32 : i32
    %23 = arith.extui %22 : i1 to i32
    %c0_i32_7 = arith.constant 0 : i32
    %24 = arith.cmpi ne, %23, %c0_i32_7 : i32
    scf.if %24 {
      %c0_91 = arith.constant 0 : index
      %c0_92 = arith.constant 0 : index
      %c0_93 = arith.constant 0 : index
      %240 = vector.load %arg2[%c0_91, %c0_92, %c0_93] : memref<1x8x32xf32, #tpu.memory_space<vmem>>, vector<1x8x32xf32>
      %241 = vector.shape_cast %240 : vector<1x8x32xf32> to vector<8x32xf32>
      %cst_94 = arith.constant dense<0.000000e+00> : vector<8xf32>
      %242 = vector.multi_reduction <add>, %241, %cst_94 [1] : vector<8x32xf32> to vector<8xf32>
      %243 = vector.shape_cast %242 : vector<8xf32> to vector<8x1xf32>
      %cst_95 = arith.constant 3.200000e+01 : f32
      %244 = vector.broadcast %cst_95 : f32 to vector<8x1xf32>
      %245 = arith.divf %243, %244 : vector<8x1xf32>
      %246 = vector.broadcast %245 : vector<8x1xf32> to vector<8x32xf32>
      %247 = arith.subf %241, %246 : vector<8x32xf32>
      %248 = arith.mulf %247, %247 : vector<8x32xf32>
      %cst_96 = arith.constant dense<0.000000e+00> : vector<8xf32>
      %249 = vector.multi_reduction <add>, %248, %cst_96 [1] : vector<8x32xf32> to vector<8xf32>
      %250 = vector.shape_cast %249 : vector<8xf32> to vector<8x1xf32>
      %cst_97 = arith.constant 3.200000e+01 : f32
      %251 = vector.broadcast %cst_97 : f32 to vector<8x1xf32>
      %252 = arith.divf %250, %251 : vector<8x1xf32>
      %cst_98 = arith.constant 9.99999997E-7 : f32
      %253 = vector.broadcast %cst_98 : f32 to vector<8x1xf32>
      %254 = arith.addf %252, %253 : vector<8x1xf32>
      %255 = math.rsqrt %254 : vector<8x1xf32>
      %256 = vector.broadcast %255 : vector<8x1xf32> to vector<8x32xf32>
      %257 = arith.mulf %247, %256 : vector<8x32xf32>
      %cst_99 = arith.constant 1.000000e+00 : f32
      %258 = vector.broadcast %cst_99 : f32 to vector<1x32xf32>
      %259 = arith.addf %258, %14 : vector<1x32xf32>
      %260 = vector.broadcast %259 : vector<1x32xf32> to vector<8x32xf32>
      %261 = arith.mulf %257, %260 : vector<8x32xf32>
      %262 = vector.broadcast %13 : vector<1x32xf32> to vector<8x32xf32>
      %263 = arith.addf %261, %262 : vector<8x32xf32>
      %264 = arith.truncf %263 : vector<8x32xf32> to vector<8x32xbf16>
      %c0_100 = arith.constant 0 : index
      %c0_101 = arith.constant 0 : index
      %265 = vector.load %arg12[%c0_100, %c0_101] : memref<32x128xbf16, #tpu.memory_space<vmem>>, vector<32x128xbf16>
      %cst_102 = arith.constant dense<0.000000e+00> : vector<8x128xf32>
      %266 = tpu.matmul %264, %265, %cst_102 {dimension_numbers = #tpu.dot_dimension_numbers<[1], [0], [0], [1], [0, 0, 1, 1], [], []>} : vector<8x32xbf16>, vector<32x128xbf16>, vector<8x128xf32> -> vector<8x128xf32>
      %c0_103 = arith.constant 0 : index
      %c0_104 = arith.constant 0 : index
      %267 = vector.load %arg13[%c0_103, %c0_104] : memref<1x128xf32, #tpu.memory_space<vmem>>, vector<1x128xf32>
      %268 = vector.broadcast %267 : vector<1x128xf32> to vector<8x128xf32>
      %269 = arith.addf %266, %268 : vector<8x128xf32>
      %c0_105 = arith.constant 0 : index
      %c0_106 = arith.constant 0 : index
      %270 = vector.load %arg14[%c0_105, %c0_106] : memref<32x128xbf16, #tpu.memory_space<vmem>>, vector<32x128xbf16>
      %cst_107 = arith.constant dense<0.000000e+00> : vector<8x128xf32>
      %271 = tpu.matmul %264, %270, %cst_107 {dimension_numbers = #tpu.dot_dimension_numbers<[1], [0], [0], [1], [0, 0, 1, 1], [], []>} : vector<8x32xbf16>, vector<32x128xbf16>, vector<8x128xf32> -> vector<8x128xf32>
      %c0_108 = arith.constant 0 : index
      %c0_109 = arith.constant 0 : index
      %272 = vector.load %arg15[%c0_108, %c0_109] : memref<1x128xf32, #tpu.memory_space<vmem>>, vector<1x128xf32>
      %273 = vector.broadcast %272 : vector<1x128xf32> to vector<8x128xf32>
      %274 = arith.addf %271, %273 : vector<8x128xf32>
      %c0_110 = arith.constant 0 : index
      %c0_111 = arith.constant 0 : index
      %275 = vector.load %arg5[%c0_110, %c0_111] : memref<8x64xf32, #tpu.memory_space<vmem>>, vector<8x64xf32>
      %276 = tpu.concatenate %275, %275 in 1 : vector<8x64xf32>, vector<8x64xf32> -> vector<8x128xf32>
      %c0_112 = arith.constant 0 : index
      %c0_113 = arith.constant 0 : index
      %277 = vector.load %arg6[%c0_112, %c0_113] : memref<8x64xf32, #tpu.memory_space<vmem>>, vector<8x64xf32>
      %278 = tpu.concatenate %277, %277 in 1 : vector<8x64xf32>, vector<8x64xf32> -> vector<8x128xf32>
      %c0_114 = arith.constant 0 : index
      %c0_115 = arith.constant 0 : index
      %279 = vector.load %arg7[%c0_114, %c0_115] : memref<8x64xf32, #tpu.memory_space<vmem>>, vector<8x64xf32>
      %280 = tpu.concatenate %279, %279 in 1 : vector<8x64xf32>, vector<8x64xf32> -> vector<8x128xf32>
      %281 = arith.mulf %269, %276 : vector<8x128xf32>
      %c32_i32_116 = arith.constant 32 : i32
      %282 = tpu.dynamic_rotate %269 by %c32_i32_116 dim 1 : vector<8x128xf32>, i32 -> vector<8x128xf32>
      %283 = arith.mulf %282, %278 : vector<8x128xf32>
      %284 = arith.addf %281, %283 : vector<8x128xf32>
      %c96_i32_117 = arith.constant 96 : i32
      %285 = tpu.dynamic_rotate %269 by %c96_i32_117 dim 1 : vector<8x128xf32>, i32 -> vector<8x128xf32>
      %286 = arith.mulf %285, %280 : vector<8x128xf32>
      %287 = arith.addf %284, %286 : vector<8x128xf32>
      %288 = arith.truncf %287 : vector<8x128xf32> to vector<8x128xbf16>
      %289 = vector.extract_strided_slice %288 {offsets = [0, 0], sizes = [8, 64], strides = [1, 1]} : vector<8x128xbf16> to vector<8x64xbf16>
      %290 = vector.shape_cast %289 : vector<8x64xbf16> to vector<1x8x64xbf16>
      %291 = vector.extract_strided_slice %288 {offsets = [0, 64], sizes = [8, 64], strides = [1, 1]} : vector<8x128xbf16> to vector<8x64xbf16>
      %292 = vector.shape_cast %291 : vector<8x64xbf16> to vector<1x8x64xbf16>
      %293 = tpu.concatenate %290, %292 in 0 : vector<1x8x64xbf16>, vector<1x8x64xbf16> -> vector<2x8x64xbf16>
      %c0_118 = arith.constant 0 : index
      %c0_119 = arith.constant 0 : index
      %c0_120 = arith.constant 0 : index
      %294 = vector.load %arg31[%c0_118, %c0_119, %c0_120] : memref<2x8x64xbf16, #tpu.memory_space<vmem>>, vector<2x8x64xbf16>
      tpu.vector_store %arg31[%c0_118, %c0_119, %c0_120], %293 {strides = array<i32>} : memref<2x8x64xbf16, #tpu.memory_space<vmem>>, vector<2x8x64xbf16>,
      %295 = arith.truncf %274 : vector<8x128xf32> to vector<8x128xbf16>
      %296 = vector.extract_strided_slice %295 {offsets = [0, 0], sizes = [8, 64], strides = [1, 1]} : vector<8x128xbf16> to vector<8x64xbf16>
      %297 = vector.shape_cast %296 : vector<8x64xbf16> to vector<1x8x64xbf16>
      %298 = vector.extract_strided_slice %295 {offsets = [0, 64], sizes = [8, 64], strides = [1, 1]} : vector<8x128xbf16> to vector<8x64xbf16>
      %299 = vector.shape_cast %298 : vector<8x64xbf16> to vector<1x8x64xbf16>
      %300 = tpu.concatenate %297, %299 in 0 : vector<1x8x64xbf16>, vector<1x8x64xbf16> -> vector<2x8x64xbf16>
      %c0_121 = arith.constant 0 : index
      %c0_122 = arith.constant 0 : index
      %c0_123 = arith.constant 0 : index
      %301 = vector.load %arg32[%c0_121, %c0_122, %c0_123] : memref<2x8x64xbf16, #tpu.memory_space<vmem>>, vector<2x8x64xbf16>
      tpu.vector_store %arg32[%c0_121, %c0_122, %c0_123], %300 {strides = array<i32>} : memref<2x8x64xbf16, #tpu.memory_space<vmem>>, vector<2x8x64xbf16>,
      %c0_124 = arith.constant 0 : index
      %c0_125 = arith.constant 0 : index
      %c0_126 = arith.constant 0 : index
      %302 = vector.load %arg4[%c0_124, %c0_125, %c0_126] : memref<1x8x32xf32, #tpu.memory_space<vmem>>, vector<1x8x32xf32>
      %303 = vector.shape_cast %302 : vector<1x8x32xf32> to vector<8x32xf32>
      %cst_127 = arith.constant dense<0.000000e+00> : vector<8xf32>
      %304 = vector.multi_reduction <add>, %303, %cst_127 [1] : vector<8x32xf32> to vector<8xf32>
      %305 = vector.shape_cast %304 : vector<8xf32> to vector<8x1xf32>
      %cst_128 = arith.constant 3.200000e+01 : f32
      %306 = vector.broadcast %cst_128 : f32 to vector<8x1xf32>
      %307 = arith.divf %305, %306 : vector<8x1xf32>
      %308 = vector.broadcast %307 : vector<8x1xf32> to vector<8x32xf32>
      %309 = arith.subf %303, %308 : vector<8x32xf32>
      %310 = arith.mulf %309, %309 : vector<8x32xf32>
      %cst_129 = arith.constant dense<0.000000e+00> : vector<8xf32>
      %311 = vector.multi_reduction <add>, %310, %cst_129 [1] : vector<8x32xf32> to vector<8xf32>
      %312 = vector.shape_cast %311 : vector<8xf32> to vector<8x1xf32>
      %cst_130 = arith.constant 3.200000e+01 : f32
      %313 = vector.broadcast %cst_130 : f32 to vector<8x1xf32>
      %314 = arith.divf %312, %313 : vector<8x1xf32>
      %cst_131 = arith.constant 9.99999997E-7 : f32
      %315 = vector.broadcast %cst_131 : f32 to vector<8x1xf32>
      %316 = arith.addf %314, %315 : vector<8x1xf32>
      %317 = math.rsqrt %316 : vector<8x1xf32>
      %318 = vector.broadcast %317 : vector<8x1xf32> to vector<8x32xf32>
      %319 = arith.mulf %309, %318 : vector<8x32xf32>
      %320 = arith.truncf %319 : vector<8x32xf32> to vector<8x32xbf16>
      %c0_132 = arith.constant 0 : index
      %c0_133 = arith.constant 0 : index
      %321 = vector.load %arg20[%c0_132, %c0_133] : memref<32x128xbf16, #tpu.memory_space<vmem>>, vector<32x128xbf16>
      %cst_134 = arith.constant dense<0.000000e+00> : vector<8x128xf32>
      %322 = tpu.matmul %320, %321, %cst_134 {dimension_numbers = #tpu.dot_dimension_numbers<[1], [0], [0], [1], [0, 0, 1, 1], [], []>} : vector<8x32xbf16>, vector<32x128xbf16>, vector<8x128xf32> -> vector<8x128xf32>
      %c0_135 = arith.constant 0 : index
      %c0_136 = arith.constant 0 : index
      %323 = vector.load %arg21[%c0_135, %c0_136] : memref<1x128xf32, #tpu.memory_space<vmem>>, vector<1x128xf32>
      %324 = vector.broadcast %323 : vector<1x128xf32> to vector<8x128xf32>
      %325 = arith.addf %322, %324 : vector<8x128xf32>
      %c0_137 = arith.constant 0 : index
      %c0_138 = arith.constant 0 : index
      %326 = vector.load %arg22[%c0_137, %c0_138] : memref<32x128xbf16, #tpu.memory_space<vmem>>, vector<32x128xbf16>
      %cst_139 = arith.constant dense<0.000000e+00> : vector<8x128xf32>
      %327 = tpu.matmul %320, %326, %cst_139 {dimension_numbers = #tpu.dot_dimension_numbers<[1], [0], [0], [1], [0, 0, 1, 1], [], []>} : vector<8x32xbf16>, vector<32x128xbf16>, vector<8x128xf32> -> vector<8x128xf32>
      %c0_140 = arith.constant 0 : index
      %c0_141 = arith.constant 0 : index
      %328 = vector.load %arg23[%c0_140, %c0_141] : memref<1x128xf32, #tpu.memory_space<vmem>>, vector<1x128xf32>
      %329 = vector.broadcast %328 : vector<1x128xf32> to vector<8x128xf32>
      %330 = arith.addf %327, %329 : vector<8x128xf32>
      %331 = arith.truncf %325 : vector<8x128xf32> to vector<8x128xbf16>
      %332 = vector.extract_strided_slice %331 {offsets = [0, 0], sizes = [8, 64], strides = [1, 1]} : vector<8x128xbf16> to vector<8x64xbf16>
      %333 = vector.shape_cast %332 : vector<8x64xbf16> to vector<1x8x64xbf16>
      %334 = vector.extract_strided_slice %331 {offsets = [0, 64], sizes = [8, 64], strides = [1, 1]} : vector<8x128xbf16> to vector<8x64xbf16>
      %335 = vector.shape_cast %334 : vector<8x64xbf16> to vector<1x8x64xbf16>
      %336 = tpu.concatenate %333, %335 in 0 : vector<1x8x64xbf16>, vector<1x8x64xbf16> -> vector<2x8x64xbf16>
      %c0_142 = arith.constant 0 : index
      %c0_143 = arith.constant 0 : index
      %c0_144 = arith.constant 0 : index
      %337 = vector.load %arg33[%c0_142, %c0_143, %c0_144] : memref<2x8x64xbf16, #tpu.memory_space<vmem>>, vector<2x8x64xbf16>
      tpu.vector_store %arg33[%c0_142, %c0_143, %c0_144], %336 {strides = array<i32>} : memref<2x8x64xbf16, #tpu.memory_space<vmem>>, vector<2x8x64xbf16>,
      %338 = arith.truncf %330 : vector<8x128xf32> to vector<8x128xbf16>
      %339 = vector.extract_strided_slice %338 {offsets = [0, 0], sizes = [8, 64], strides = [1, 1]} : vector<8x128xbf16> to vector<8x64xbf16>
      %340 = vector.shape_cast %339 : vector<8x64xbf16> to vector<1x8x64xbf16>
      %341 = vector.extract_strided_slice %338 {offsets = [0, 64], sizes = [8, 64], strides = [1, 1]} : vector<8x128xbf16> to vector<8x64xbf16>
      %342 = vector.shape_cast %341 : vector<8x64xbf16> to vector<1x8x64xbf16>
      %343 = tpu.concatenate %340, %342 in 0 : vector<1x8x64xbf16>, vector<1x8x64xbf16> -> vector<2x8x64xbf16>
      %c0_145 = arith.constant 0 : index
      %c0_146 = arith.constant 0 : index
      %c0_147 = arith.constant 0 : index
      %344 = vector.load %arg34[%c0_145, %c0_146, %c0_147] : memref<2x8x64xbf16, #tpu.memory_space<vmem>>, vector<2x8x64xbf16>
      tpu.vector_store %arg34[%c0_145, %c0_146, %c0_147], %343 {strides = array<i32>} : memref<2x8x64xbf16, #tpu.memory_space<vmem>>, vector<2x8x64xbf16>,
    } else {
    }
    %c8_i32 = arith.constant 8 : i32
    %25 = arith.muli %arg1, %c8_i32 : i32
    %26 = tpu.assume_multiple %25, 8 : i32
    %c0_8 = arith.constant 0 : index
    %27 = arith.index_cast %26 : i32 to index
    %c0_9 = arith.constant 0 : index
    %28 = vector.load %arg2[%c0_8, %27, %c0_9] : memref<1x8x32xf32, #tpu.memory_space<vmem>>, vector<1x8x32xf32>
    %29 = vector.shape_cast %28 : vector<1x8x32xf32> to vector<8x32xf32>
    %cst_10 = arith.constant dense<0.000000e+00> : vector<8xf32>
    %30 = vector.multi_reduction <add>, %29, %cst_10 [1] : vector<8x32xf32> to vector<8xf32>
    %31 = vector.shape_cast %30 : vector<8xf32> to vector<8x1xf32>
    %cst_11 = arith.constant 3.200000e+01 : f32
    %32 = vector.broadcast %cst_11 : f32 to vector<8x1xf32>
    %33 = arith.divf %31, %32 : vector<8x1xf32>
    %34 = vector.broadcast %33 : vector<8x1xf32> to vector<8x32xf32>
    %35 = arith.subf %29, %34 : vector<8x32xf32>
    %36 = arith.mulf %35, %35 : vector<8x32xf32>
    %cst_12 = arith.constant dense<0.000000e+00> : vector<8xf32>
    %37 = vector.multi_reduction <add>, %36, %cst_12 [1] : vector<8x32xf32> to vector<8xf32>
    %38 = vector.shape_cast %37 : vector<8xf32> to vector<8x1xf32>
    %cst_13 = arith.constant 3.200000e+01 : f32
    %39 = vector.broadcast %cst_13 : f32 to vector<8x1xf32>
    %40 = arith.divf %38, %39 : vector<8x1xf32>
    %cst_14 = arith.constant 9.99999997E-7 : f32
    %41 = vector.broadcast %cst_14 : f32 to vector<8x1xf32>
    %42 = arith.addf %40, %41 : vector<8x1xf32>
    %43 = math.rsqrt %42 : vector<8x1xf32>
    %44 = vector.broadcast %43 : vector<8x1xf32> to vector<8x32xf32>
    %45 = arith.mulf %35, %44 : vector<8x32xf32>
    %cst_15 = arith.constant 1.000000e+00 : f32
    %46 = vector.broadcast %cst_15 : f32 to vector<1x32xf32>
    %47 = arith.addf %46, %14 : vector<1x32xf32>
    %48 = vector.broadcast %47 : vector<1x32xf32> to vector<8x32xf32>
    %49 = arith.mulf %45, %48 : vector<8x32xf32>
    %50 = vector.broadcast %13 : vector<1x32xf32> to vector<8x32xf32>
    %51 = arith.addf %49, %50 : vector<8x32xf32>
    %52 = arith.truncf %51 : vector<8x32xf32> to vector<8x32xbf16>
    %c0_16 = arith.constant 0 : index
    %c0_17 = arith.constant 0 : index
    %53 = vector.load %arg10[%c0_16, %c0_17] : memref<32x128xbf16, #tpu.memory_space<vmem>>, vector<32x128xbf16>
    %cst_18 = arith.constant dense<0.000000e+00> : vector<8x128xf32>
    %54 = tpu.matmul %52, %53, %cst_18 {dimension_numbers = #tpu.dot_dimension_numbers<[1], [0], [0], [1], [0, 0, 1, 1], [], []>} : vector<8x32xbf16>, vector<32x128xbf16>, vector<8x128xf32> -> vector<8x128xf32>
    %c0_19 = arith.constant 0 : index
    %c0_20 = arith.constant 0 : index
    %55 = vector.load %arg11[%c0_19, %c0_20] : memref<1x128xf32, #tpu.memory_space<vmem>>, vector<1x128xf32>
    %56 = vector.broadcast %55 : vector<1x128xf32> to vector<8x128xf32>
    %57 = arith.addf %54, %56 : vector<8x128xf32>
    %58 = arith.index_cast %26 : i32 to index
    %c0_21 = arith.constant 0 : index
    %59 = vector.load %arg5[%58, %c0_21] : memref<8x64xf32, #tpu.memory_space<vmem>>, vector<8x64xf32>
    %60 = tpu.concatenate %59, %59 in 1 : vector<8x64xf32>, vector<8x64xf32> -> vector<8x128xf32>
    %61 = arith.index_cast %26 : i32 to index
    %c0_22 = arith.constant 0 : index
    %62 = vector.load %arg6[%61, %c0_22] : memref<8x64xf32, #tpu.memory_space<vmem>>, vector<8x64xf32>
    %63 = tpu.concatenate %62, %62 in 1 : vector<8x64xf32>, vector<8x64xf32> -> vector<8x128xf32>
    %64 = arith.index_cast %26 : i32 to index
    %c0_23 = arith.constant 0 : index
    %65 = vector.load %arg7[%64, %c0_23] : memref<8x64xf32, #tpu.memory_space<vmem>>, vector<8x64xf32>
    %66 = tpu.concatenate %65, %65 in 1 : vector<8x64xf32>, vector<8x64xf32> -> vector<8x128xf32>
    %67 = arith.mulf %57, %60 : vector<8x128xf32>
    %c32_i32 = arith.constant 32 : i32
    %68 = tpu.dynamic_rotate %57 by %c32_i32 dim 1 : vector<8x128xf32>, i32 -> vector<8x128xf32>
    %69 = arith.mulf %68, %63 : vector<8x128xf32>
    %70 = arith.addf %67, %69 : vector<8x128xf32>
    %c96_i32 = arith.constant 96 : i32
    %71 = tpu.dynamic_rotate %57 by %c96_i32 dim 1 : vector<8x128xf32>, i32 -> vector<8x128xf32>
    %72 = arith.mulf %71, %66 : vector<8x128xf32>
    %73 = arith.addf %70, %72 : vector<8x128xf32>
    %74 = arith.truncf %73 : vector<8x128xf32> to vector<8x128xbf16>
    %75 = vector.extract_strided_slice %74 {offsets = [0, 0], sizes = [8, 64], strides = [1, 1]} : vector<8x128xbf16> to vector<8x64xbf16>
    %76 = vector.shape_cast %75 : vector<8x64xbf16> to vector<1x8x64xbf16>
    %77 = vector.extract_strided_slice %74 {offsets = [0, 64], sizes = [8, 64], strides = [1, 1]} : vector<8x128xbf16> to vector<8x64xbf16>
    %78 = vector.shape_cast %77 : vector<8x64xbf16> to vector<1x8x64xbf16>
    %79 = tpu.concatenate %76, %78 in 0 : vector<1x8x64xbf16>, vector<1x8x64xbf16> -> vector<2x8x64xbf16>
    %cst_24 = arith.constant 0xFF800000 : f32
    %80 = vector.broadcast %cst_24 : f32 to vector<2x8x1xf32>
    %cst_25 = arith.constant 0.000000e+00 : f32
    %81 = vector.broadcast %cst_25 : f32 to vector<2x8x1xf32>
    %cst_26 = arith.constant 0.000000e+00 : f32
    %82 = vector.broadcast %cst_26 : f32 to vector<2x8x64xf32>
    %c0_i32_27 = arith.constant 0 : i32
    %c8_i32_28 = arith.constant 8 : i32
    %83 = arith.muli %c0_i32_27, %c8_i32_28 : i32
    %84 = tpu.assume_multiple %83, 8 : i32
    %c0_29 = arith.constant 0 : index
    %85 = arith.index_cast %84 : i32 to index
    %c0_30 = arith.constant 0 : index
    %86 = vector.load %arg31[%c0_29, %85, %c0_30] : memref<2x8x64xbf16, #tpu.memory_space<vmem>>, vector<2x8x64xbf16>
    %c0_31 = arith.constant 0 : index
    %87 = arith.index_cast %84 : i32 to index
    %c0_32 = arith.constant 0 : index
    %88 = vector.load %arg32[%c0_31, %87, %c0_32] : memref<2x8x64xbf16, #tpu.memory_space<vmem>>, vector<2x8x64xbf16>
    "tpu.trace_start"() <{level = 10 : i32, message = "hnd,hmd->hnm"}> : () -> ()
    %cst_33 = arith.constant dense<0.000000e+00> : vector<2x8x8xf32>
    %89 = tpu.matmul %79, %86, %cst_33 {dimension_numbers = #tpu.dot_dimension_numbers<[2], [2], [1], [1], [0, 0, 0, 1, 1, 1], [0], [0]>} : vector<2x8x64xbf16>, vector<2x8x64xbf16>, vector<2x8x8xf32> -> vector<2x8x8xf32>
    "tpu.trace_stop"() : () -> ()
    %cst_34 = arith.constant dense<0xFF800000> : vector<2x8xf32>
    %90 = vector.multi_reduction <maximumf>, %89, %cst_34 [2] : vector<2x8x8xf32> to vector<2x8xf32>
    %91 = vector.shape_cast %90 : vector<2x8xf32> to vector<2x8x1xf32>
    %92 = arith.maximumf %80, %91 : vector<2x8x1xf32>
    %93 = arith.subf %80, %92 : vector<2x8x1xf32>
    %94 = math.exp %93 : vector<2x8x1xf32>
    %95 = vector.broadcast %92 : vector<2x8x1xf32> to vector<2x8x8xf32>
    %96 = arith.subf %89, %95 : vector<2x8x8xf32>
    %97 = math.exp %96 : vector<2x8x8xf32>
    %98 = arith.mulf %94, %81 : vector<2x8x1xf32>
    %cst_35 = arith.constant dense<0.000000e+00> : vector<2x8xf32>
    %99 = vector.multi_reduction <add>, %97, %cst_35 [2] : vector<2x8x8xf32> to vector<2x8xf32>
    %100 = vector.shape_cast %99 : vector<2x8xf32> to vector<2x8x1xf32>
    %101 = arith.addf %98, %100 : vector<2x8x1xf32>
    %102 = vector.broadcast %94 : vector<2x8x1xf32> to vector<2x8x64xf32>
    %103 = arith.mulf %102, %82 : vector<2x8x64xf32>
    %104 = arith.truncf %97 : vector<2x8x8xf32> to vector<2x8x8xbf16>
    "tpu.trace_start"() <{level = 10 : i32, message = "hnm,hmd->hnd"}> : () -> ()
    %cst_36 = arith.constant dense<0.000000e+00> : vector<2x8x64xf32>
    %105 = tpu.matmul %104, %88, %cst_36 {dimension_numbers = #tpu.dot_dimension_numbers<[2], [1], [1], [2], [0, 0, 0, 1, 1, 2], [0], [0]>} : vector<2x8x8xbf16>, vector<2x8x64xbf16>, vector<2x8x64xf32> -> vector<2x8x64xf32>
    "tpu.trace_stop"() : () -> ()
    %106 = arith.addf %103, %105 : vector<2x8x64xf32>
    %c1_i32 = arith.constant 1 : i32
    %107 = tpu.reciprocal %101 {approx = true} : vector<2x8x1xf32> -> vector<2x8x1xf32>
    %108 = vector.broadcast %107 : vector<2x8x1xf32> to vector<2x8x64xf32>
    %109 = arith.mulf %106, %108 : vector<2x8x64xf32>
    %110 = vector.extract_strided_slice %109 {offsets = [0, 0, 0], sizes = [1, 8, 64], strides = [1, 1, 1]} : vector<2x8x64xf32> to vector<1x8x64xf32>
    %111 = vector.shape_cast %110 : vector<1x8x64xf32> to vector<8x64xf32>
    %112 = vector.extract_strided_slice %109 {offsets = [1, 0, 0], sizes = [1, 8, 64], strides = [1, 1, 1]} : vector<2x8x64xf32> to vector<1x8x64xf32>
    %113 = vector.shape_cast %112 : vector<1x8x64xf32> to vector<8x64xf32>
    %114 = tpu.concatenate %111, %113 in 1 : vector<8x64xf32>, vector<8x64xf32> -> vector<8x128xf32>
    %115 = arith.truncf %114 : vector<8x128xf32> to vector<8x128xbf16>
    %c0_37 = arith.constant 0 : index
    %c0_38 = arith.constant 0 : index
    %116 = vector.load %arg16[%c0_37, %c0_38] : memref<128x32xbf16, #tpu.memory_space<vmem>>, vector<128x32xbf16>
    %cst_39 = arith.constant dense<0.000000e+00> : vector<8x32xf32>
    %117 = tpu.matmul %115, %116, %cst_39 {dimension_numbers = #tpu.dot_dimension_numbers<[1], [0], [0], [1], [0, 0, 1, 1], [], []>} : vector<8x128xbf16>, vector<128x32xbf16>, vector<8x32xf32> -> vector<8x32xf32>
    %c0_40 = arith.constant 0 : index
    %c0_41 = arith.constant 0 : index
    %118 = vector.load %arg17[%c0_40, %c0_41] : memref<1x32xf32, #tpu.memory_space<vmem>>, vector<1x32xf32>
    %119 = vector.broadcast %118 : vector<1x32xf32> to vector<8x32xf32>
    %120 = arith.addf %117, %119 : vector<8x32xf32>
    %121 = vector.broadcast %15 : vector<1x32xf32> to vector<8x32xf32>
    %122 = arith.mulf %121, %120 : vector<8x32xf32>
    %123 = arith.addf %29, %122 : vector<8x32xf32>
    %cst_42 = arith.constant dense<0.000000e+00> : vector<8xf32>
    %124 = vector.multi_reduction <add>, %123, %cst_42 [1] : vector<8x32xf32> to vector<8xf32>
    %125 = vector.shape_cast %124 : vector<8xf32> to vector<8x1xf32>
    %cst_43 = arith.constant 3.200000e+01 : f32
    %126 = vector.broadcast %cst_43 : f32 to vector<8x1xf32>
    %127 = arith.divf %125, %126 : vector<8x1xf32>
    %128 = vector.broadcast %127 : vector<8x1xf32> to vector<8x32xf32>
    %129 = arith.subf %123, %128 : vector<8x32xf32>
    %130 = arith.mulf %129, %129 : vector<8x32xf32>
    %cst_44 = arith.constant dense<0.000000e+00> : vector<8xf32>
    %131 = vector.multi_reduction <add>, %130, %cst_44 [1] : vector<8x32xf32> to vector<8xf32>
    %132 = vector.shape_cast %131 : vector<8xf32> to vector<8x1xf32>
    %cst_45 = arith.constant 3.200000e+01 : f32
    %133 = vector.broadcast %cst_45 : f32 to vector<8x1xf32>
    %134 = arith.divf %132, %133 : vector<8x1xf32>
    %cst_46 = arith.constant 9.99999997E-7 : f32
    %135 = vector.broadcast %cst_46 : f32 to vector<8x1xf32>
    %136 = arith.addf %134, %135 : vector<8x1xf32>
    %137 = math.rsqrt %136 : vector<8x1xf32>
    %138 = vector.broadcast %137 : vector<8x1xf32> to vector<8x32xf32>
    %139 = arith.mulf %129, %138 : vector<8x32xf32>
    %cst_47 = arith.constant 1.000000e+00 : f32
    %140 = vector.broadcast %cst_47 : f32 to vector<1x32xf32>
    %141 = arith.addf %140, %17 : vector<1x32xf32>
    %142 = vector.broadcast %141 : vector<1x32xf32> to vector<8x32xf32>
    %143 = arith.mulf %139, %142 : vector<8x32xf32>
    %144 = vector.broadcast %16 : vector<1x32xf32> to vector<8x32xf32>
    %145 = arith.addf %143, %144 : vector<8x32xf32>
    %146 = arith.truncf %145 : vector<8x32xf32> to vector<8x32xbf16>
    %c0_48 = arith.constant 0 : index
    %c0_49 = arith.constant 0 : index
    %147 = vector.load %arg18[%c0_48, %c0_49] : memref<32x128xbf16, #tpu.memory_space<vmem>>, vector<32x128xbf16>
    %cst_50 = arith.constant dense<0.000000e+00> : vector<8x128xf32>
    %148 = tpu.matmul %146, %147, %cst_50 {dimension_numbers = #tpu.dot_dimension_numbers<[1], [0], [0], [1], [0, 0, 1, 1], [], []>} : vector<8x32xbf16>, vector<32x128xbf16>, vector<8x128xf32> -> vector<8x128xf32>
    %c0_51 = arith.constant 0 : index
    %c0_52 = arith.constant 0 : index
    %149 = vector.load %arg19[%c0_51, %c0_52] : memref<1x128xf32, #tpu.memory_space<vmem>>, vector<1x128xf32>
    %150 = vector.broadcast %149 : vector<1x128xf32> to vector<8x128xf32>
    %151 = arith.addf %148, %150 : vector<8x128xf32>
    %152 = arith.truncf %151 : vector<8x128xf32> to vector<8x128xbf16>
    %153 = vector.extract_strided_slice %152 {offsets = [0, 0], sizes = [8, 64], strides = [1, 1]} : vector<8x128xbf16> to vector<8x64xbf16>
    %154 = vector.shape_cast %153 : vector<8x64xbf16> to vector<1x8x64xbf16>
    %155 = vector.extract_strided_slice %152 {offsets = [0, 64], sizes = [8, 64], strides = [1, 1]} : vector<8x128xbf16> to vector<8x64xbf16>
    %156 = vector.shape_cast %155 : vector<8x64xbf16> to vector<1x8x64xbf16>
    %157 = tpu.concatenate %154, %156 in 0 : vector<1x8x64xbf16>, vector<1x8x64xbf16> -> vector<2x8x64xbf16>
    %c0_53 = arith.constant 0 : index
    %c0_54 = arith.constant 0 : index
    %c0_55 = arith.constant 0 : index
    %158 = vector.load %arg33[%c0_53, %c0_54, %c0_55] : memref<2x8x64xbf16, #tpu.memory_space<vmem>>, vector<2x8x64xbf16>
    "tpu.trace_start"() <{level = 10 : i32, message = "hnd,hmd->hnm"}> : () -> ()
    %cst_56 = arith.constant dense<0.000000e+00> : vector<2x8x8xf32>
    %159 = tpu.matmul %157, %158, %cst_56 {dimension_numbers = #tpu.dot_dimension_numbers<[2], [2], [1], [1], [0, 0, 0, 1, 1, 1], [0], [0]>} : vector<2x8x64xbf16>, vector<2x8x64xbf16>, vector<2x8x8xf32> -> vector<2x8x8xf32>
    "tpu.trace_stop"() : () -> ()
    %cst_57 = arith.constant dense<0xFF800000> : vector<2x8xf32>
    %160 = vector.multi_reduction <maximumf>, %159, %cst_57 [2] : vector<2x8x8xf32> to vector<2x8xf32>
    %161 = vector.shape_cast %160 : vector<2x8xf32> to vector<2x8x1xf32>
    %162 = vector.broadcast %161 : vector<2x8x1xf32> to vector<2x8x8xf32>
    %163 = arith.subf %159, %162 : vector<2x8x8xf32>
    %164 = math.exp %163 : vector<2x8x8xf32>
    %cst_58 = arith.constant dense<0.000000e+00> : vector<2x8xf32>
    %165 = vector.multi_reduction <add>, %164, %cst_58 [2] : vector<2x8x8xf32> to vector<2x8xf32>
    %166 = vector.shape_cast %165 : vector<2x8xf32> to vector<2x8x1xf32>
    %167 = tpu.reciprocal %166 {approx = true} : vector<2x8x1xf32> -> vector<2x8x1xf32>
    %168 = vector.broadcast %167 : vector<2x8x1xf32> to vector<2x8x8xf32>
    %169 = arith.mulf %164, %168 : vector<2x8x8xf32>
    %170 = arith.truncf %169 : vector<2x8x8xf32> to vector<2x8x8xbf16>
    %c0_59 = arith.constant 0 : index
    %c0_60 = arith.constant 0 : index
    %c0_61 = arith.constant 0 : index
    %171 = vector.load %arg34[%c0_59, %c0_60, %c0_61] : memref<2x8x64xbf16, #tpu.memory_space<vmem>>, vector<2x8x64xbf16>
    "tpu.trace_start"() <{level = 10 : i32, message = "hnm,hmd->hnd"}> : () -> ()
    %cst_62 = arith.constant dense<0.000000e+00> : vector<2x8x64xf32>
    %172 = tpu.matmul %170, %171, %cst_62 {dimension_numbers = #tpu.dot_dimension_numbers<[2], [1], [1], [2], [0, 0, 0, 1, 1, 2], [0], [0]>} : vector<2x8x8xbf16>, vector<2x8x64xbf16>, vector<2x8x64xf32> -> vector<2x8x64xf32>
    "tpu.trace_stop"() : () -> ()
    %173 = vector.extract_strided_slice %172 {offsets = [0, 0, 0], sizes = [1, 8, 64], strides = [1, 1, 1]} : vector<2x8x64xf32> to vector<1x8x64xf32>
    %174 = vector.shape_cast %173 : vector<1x8x64xf32> to vector<8x64xf32>
    %175 = vector.extract_strided_slice %172 {offsets = [1, 0, 0], sizes = [1, 8, 64], strides = [1, 1, 1]} : vector<2x8x64xf32> to vector<1x8x64xf32>
    %176 = vector.shape_cast %175 : vector<1x8x64xf32> to vector<8x64xf32>
    %177 = tpu.concatenate %174, %176 in 1 : vector<8x64xf32>, vector<8x64xf32> -> vector<8x128xf32>
    %178 = arith.truncf %177 : vector<8x128xf32> to vector<8x128xbf16>
    %c0_63 = arith.constant 0 : index
    %c0_64 = arith.constant 0 : index
    %179 = vector.load %arg24[%c0_63, %c0_64] : memref<128x32xbf16, #tpu.memory_space<vmem>>, vector<128x32xbf16>
    %cst_65 = arith.constant dense<0.000000e+00> : vector<8x32xf32>
    %180 = tpu.matmul %178, %179, %cst_65 {dimension_numbers = #tpu.dot_dimension_numbers<[1], [0], [0], [1], [0, 0, 1, 1], [], []>} : vector<8x128xbf16>, vector<128x32xbf16>, vector<8x32xf32> -> vector<8x32xf32>
    %c0_66 = arith.constant 0 : index
    %c0_67 = arith.constant 0 : index
    %181 = vector.load %arg25[%c0_66, %c0_67] : memref<1x32xf32, #tpu.memory_space<vmem>>, vector<1x32xf32>
    %182 = vector.broadcast %181 : vector<1x32xf32> to vector<8x32xf32>
    %183 = arith.addf %180, %182 : vector<8x32xf32>
    %184 = vector.broadcast %18 : vector<1x32xf32> to vector<8x32xf32>
    %185 = arith.mulf %184, %183 : vector<8x32xf32>
    %186 = arith.addf %123, %185 : vector<8x32xf32>
    %cst_68 = arith.constant dense<0.000000e+00> : vector<8xf32>
    %187 = vector.multi_reduction <add>, %186, %cst_68 [1] : vector<8x32xf32> to vector<8xf32>
    %188 = vector.shape_cast %187 : vector<8xf32> to vector<8x1xf32>
    %cst_69 = arith.constant 3.200000e+01 : f32
    %189 = vector.broadcast %cst_69 : f32 to vector<8x1xf32>
    %190 = arith.divf %188, %189 : vector<8x1xf32>
    %191 = vector.broadcast %190 : vector<8x1xf32> to vector<8x32xf32>
    %192 = arith.subf %186, %191 : vector<8x32xf32>
    %193 = arith.mulf %192, %192 : vector<8x32xf32>
    %cst_70 = arith.constant dense<0.000000e+00> : vector<8xf32>
    %194 = vector.multi_reduction <add>, %193, %cst_70 [1] : vector<8x32xf32> to vector<8xf32>
    %195 = vector.shape_cast %194 : vector<8xf32> to vector<8x1xf32>
    %cst_71 = arith.constant 3.200000e+01 : f32
    %196 = vector.broadcast %cst_71 : f32 to vector<8x1xf32>
    %197 = arith.divf %195, %196 : vector<8x1xf32>
    %cst_72 = arith.constant 9.99999997E-7 : f32
    %198 = vector.broadcast %cst_72 : f32 to vector<8x1xf32>
    %199 = arith.addf %197, %198 : vector<8x1xf32>
    %200 = math.rsqrt %199 : vector<8x1xf32>
    %201 = vector.broadcast %200 : vector<8x1xf32> to vector<8x32xf32>
    %202 = arith.mulf %192, %201 : vector<8x32xf32>
    %cst_73 = arith.constant 1.000000e+00 : f32
    %203 = vector.broadcast %cst_73 : f32 to vector<1x32xf32>
    %204 = arith.addf %203, %20 : vector<1x32xf32>
    %205 = vector.broadcast %204 : vector<1x32xf32> to vector<8x32xf32>
    %206 = arith.mulf %202, %205 : vector<8x32xf32>
    %207 = vector.broadcast %19 : vector<1x32xf32> to vector<8x32xf32>
    %208 = arith.addf %206, %207 : vector<8x32xf32>
    %209 = arith.truncf %208 : vector<8x32xf32> to vector<8x32xbf16>
    %c0_74 = arith.constant 0 : index
    %c0_75 = arith.constant 0 : index
    %210 = vector.load %arg26[%c0_74, %c0_75] : memref<32x128xbf16, #tpu.memory_space<vmem>>, vector<32x128xbf16>
    %cst_76 = arith.constant dense<0.000000e+00> : vector<8x128xf32>
    %211 = tpu.matmul %209, %210, %cst_76 {dimension_numbers = #tpu.dot_dimension_numbers<[1], [0], [0], [1], [0, 0, 1, 1], [], []>} : vector<8x32xbf16>, vector<32x128xbf16>, vector<8x128xf32> -> vector<8x128xf32>
    %c0_77 = arith.constant 0 : index
    %c0_78 = arith.constant 0 : index
    %212 = vector.load %arg27[%c0_77, %c0_78] : memref<1x128xf32, #tpu.memory_space<vmem>>, vector<1x128xf32>
    %213 = vector.broadcast %212 : vector<1x128xf32> to vector<8x128xf32>
    %214 = arith.addf %211, %213 : vector<8x128xf32>
    %215 = arith.mulf %214, %214 : vector<8x128xf32>
    %216 = arith.mulf %214, %215 : vector<8x128xf32>
    %cst_79 = arith.constant 4.471500e-02 : f32
    %217 = vector.broadcast %cst_79 : f32 to vector<8x128xf32>
    %218 = arith.mulf %217, %216 : vector<8x128xf32>
    %219 = arith.addf %214, %218 : vector<8x128xf32>
    %cst_80 = arith.constant 0.797884583 : f32
    %220 = vector.broadcast %cst_80 : f32 to vector<8x128xf32>
    %221 = arith.mulf %220, %219 : vector<8x128xf32>
    %222 = math.tanh %221 : vector<8x128xf32>
    %cst_81 = arith.constant 1.000000e+00 : f32
    %223 = vector.broadcast %cst_81 : f32 to vector<8x128xf32>
    %224 = arith.addf %223, %222 : vector<8x128xf32>
    %cst_82 = arith.constant 5.000000e-01 : f32
    %225 = vector.broadcast %cst_82 : f32 to vector<8x128xf32>
    %226 = arith.mulf %225, %224 : vector<8x128xf32>
    %227 = arith.mulf %214, %226 : vector<8x128xf32>
    %228 = arith.truncf %227 : vector<8x128xf32> to vector<8x128xbf16>
    %c0_83 = arith.constant 0 : index
    %c0_84 = arith.constant 0 : index
    %229 = vector.load %arg28[%c0_83, %c0_84] : memref<128x32xbf16, #tpu.memory_space<vmem>>, vector<128x32xbf16>
    %cst_85 = arith.constant dense<0.000000e+00> : vector<8x32xf32>
    %230 = tpu.matmul %228, %229, %cst_85 {dimension_numbers = #tpu.dot_dimension_numbers<[1], [0], [0], [1], [0, 0, 1, 1], [], []>} : vector<8x128xbf16>, vector<128x32xbf16>, vector<8x32xf32> -> vector<8x32xf32>
    %c0_86 = arith.constant 0 : index
    %c0_87 = arith.constant 0 : index
    %231 = vector.load %arg29[%c0_86, %c0_87] : memref<1x32xf32, #tpu.memory_space<vmem>>, vector<1x32xf32>
    %232 = vector.broadcast %231 : vector<1x32xf32> to vector<8x32xf32>
    %233 = arith.addf %230, %232 : vector<8x32xf32>
    %234 = vector.broadcast %21 : vector<1x32xf32> to vector<8x32xf32>
    %235 = arith.mulf %234, %233 : vector<8x32xf32>
    %236 = arith.addf %186, %235 : vector<8x32xf32>
    %c0_88 = arith.constant 0 : index
    %c0_89 = arith.constant 0 : index
    %c0_90 = arith.constant 0 : index
    %237 = vector.load %arg30[%c0_88, %c0_89, %c0_90] : memref<1x8x32xf32, #tpu.memory_space<vmem>>, vector<1x8x32xf32>
    %238 = vector.shape_cast %237 : vector<1x8x32xf32> to vector<8x32xf32>
    %239 = vector.shape_cast %236 : vector<8x32xf32> to vector<1x8x32xf32>
    tpu.vector_store %arg30[%c0_88, %c0_89, %c0_90], %239 {strides = array<i32>} : memref<1x8x32xf32, #tpu.memory_space<vmem>>, vector<1x8x32xf32>,
    return
  }
  func.func @transform_0(%arg0: i32, %arg1: i32) -> (i32, i32, i32) {
    %c0_i32 = arith.constant 0 : i32
    %c0_i32_0 = arith.constant 0 : i32
    %c0_i32_1 = arith.constant 0 : i32
    return %arg0, %c0_i32, %c0_i32_0 : i32, i32, i32
  }
  func.func @transform_1(%arg0: i32, %arg1: i32) -> (i32, i32, i32) {
    %c0_i32 = arith.constant 0 : i32
    %c0_i32_0 = arith.constant 0 : i32
    %c0_i32_1 = arith.constant 0 : i32
    return %arg0, %c0_i32, %c0_i32_0 : i32, i32, i32
  }
  func.func @transform_2(%arg0: i32, %arg1: i32) -> (i32, i32, i32) {
    %c0_i32 = arith.constant 0 : i32
    %c0_i32_0 = arith.constant 0 : i32
    %c0_i32_1 = arith.constant 0 : i32
    return %arg0, %c0_i32, %c0_i32_0 : i32, i32, i32
  }
  func.func @transform_3(%arg0: i32, %arg1: i32) -> (i32, i32) {
    %c0_i32 = arith.constant 0 : i32
    %c0_i32_0 = arith.constant 0 : i32
    %c0_i32_1 = arith.constant 0 : i32
    return %c0_i32, %c0_i32_0 : i32, i32
  }
  func.func @transform_4(%arg0: i32, %arg1: i32) -> (i32, i32) {
    %c0_i32 = arith.constant 0 : i32
    %c0_i32_0 = arith.constant 0 : i32
    %c0_i32_1 = arith.constant 0 : i32
    return %c0_i32, %c0_i32_0 : i32, i32
  }
  func.func @transform_5(%arg0: i32, %arg1: i32) -> (i32, i32) {
    %c0_i32 = arith.constant 0 : i32
    %c0_i32_0 = arith.constant 0 : i32
    %c0_i32_1 = arith.constant 0 : i32
    return %c0_i32, %c0_i32_0 : i32, i32
  }
  func.func @transform_6(%arg0: i32, %arg1: i32) -> (i32, i32) {
    %c0_i32 = arith.constant 0 : i32
    %c0_i32_0 = arith.constant 0 : i32
    %c0_i32_1 = arith.constant 0 : i32
    return %c0_i32, %c0_i32_0 : i32, i32
  }
  func.func @transform_7(%arg0: i32, %arg1: i32) -> (i32, i32) {
    %c0_i32 = arith.constant 0 : i32
    %c0_i32_0 = arith.constant 0 : i32
    %c0_i32_1 = arith.constant 0 : i32
    return %c0_i32, %c0_i32_0 : i32, i32
  }
  func.func @transform_8(%arg0: i32, %arg1: i32) -> (i32, i32) {
    %c0_i32 = arith.constant 0 : i32
    %c0_i32_0 = arith.constant 0 : i32
    %c0_i32_1 = arith.constant 0 : i32
    return %c0_i32, %c0_i32_0 : i32, i32
  }
  func.func @transform_9(%arg0: i32, %arg1: i32) -> (i32, i32) {
    %c0_i32 = arith.constant 0 : i32
    %c0_i32_0 = arith.constant 0 : i32
    %c0_i32_1 = arith.constant 0 : i32
    return %c0_i32, %c0_i32_0 : i32, i32
  }
  func.func @transform_10(%arg0: i32, %arg1: i32) -> (i32, i32) {
    %c0_i32 = arith.constant 0 : i32
    %c0_i32_0 = arith.constant 0 : i32
    %c0_i32_1 = arith.constant 0 : i32
    return %c0_i32, %c0_i32_0 : i32, i32
  }
  func.func @transform_11(%arg0: i32, %arg1: i32) -> (i32, i32) {
    %c0_i32 = arith.constant 0 : i32
    %c0_i32_0 = arith.constant 0 : i32
    %c0_i32_1 = arith.constant 0 : i32
    return %c0_i32, %c0_i32_0 : i32, i32
  }
  func.func @transform_12(%arg0: i32, %arg1: i32) -> (i32, i32) {
    %c0_i32 = arith.constant 0 : i32
    %c0_i32_0 = arith.constant 0 : i32
    %c0_i32_1 = arith.constant 0 : i32
    return %c0_i32, %c0_i32_0 : i32, i32
  }
  func.func @transform_13(%arg0: i32, %arg1: i32) -> (i32, i32) {
    %c0_i32 = arith.constant 0 : i32
    %c0_i32_0 = arith.constant 0 : i32
    %c0_i32_1 = arith.constant 0 : i32
    return %c0_i32, %c0_i32_0 : i32, i32
  }
  func.func @transform_14(%arg0: i32, %arg1: i32) -> (i32, i32) {
    %c0_i32 = arith.constant 0 : i32
    %c0_i32_0 = arith.constant 0 : i32
    %c0_i32_1 = arith.constant 0 : i32
    return %c0_i32, %c0_i32_0 : i32, i32
  }
  func.func @transform_15(%arg0: i32, %arg1: i32) -> (i32, i32) {
    %c0_i32 = arith.constant 0 : i32
    %c0_i32_0 = arith.constant 0 : i32
    %c0_i32_1 = arith.constant 0 : i32
    return %c0_i32, %c0_i32_0 : i32, i32
  }
  func.func @transform_16(%arg0: i32, %arg1: i32) -> (i32, i32) {
    %c0_i32 = arith.constant 0 : i32
    %c0_i32_0 = arith.constant 0 : i32
    %c0_i32_1 = arith.constant 0 : i32
    return %c0_i32, %c0_i32_0 : i32, i32
  }
  func.func @transform_17(%arg0: i32, %arg1: i32) -> (i32, i32) {
    %c0_i32 = arith.constant 0 : i32
    %c0_i32_0 = arith.constant 0 : i32
    %c0_i32_1 = arith.constant 0 : i32
    return %c0_i32, %c0_i32_0 : i32, i32
  }
  func.func @transform_18(%arg0: i32, %arg1: i32) -> (i32, i32) {
    %c0_i32 = arith.constant 0 : i32
    %c0_i32_0 = arith.constant 0 : i32
    %c0_i32_1 = arith.constant 0 : i32
    return %c0_i32, %c0_i32_0 : i32, i32
  }
  func.func @transform_19(%arg0: i32, %arg1: i32) -> (i32, i32) {
    %c0_i32 = arith.constant 0 : i32
    %c0_i32_0 = arith.constant 0 : i32
    %c0_i32_1 = arith.constant 0 : i32
    return %c0_i32, %c0_i32_0 : i32, i32
  }
  func.func @transform_20(%arg0: i32, %arg1: i32) -> (i32, i32) {
    %c0_i32 = arith.constant 0 : i32
    %c0_i32_0 = arith.constant 0 : i32
    %c0_i32_1 = arith.constant 0 : i32
    return %c0_i32, %c0_i32_0 : i32, i32
  }
  func.func @transform_21(%arg0: i32, %arg1: i32) -> (i32, i32) {
    %c0_i32 = arith.constant 0 : i32
    %c0_i32_0 = arith.constant 0 : i32
    %c0_i32_1 = arith.constant 0 : i32
    return %c0_i32, %c0_i32_0 : i32, i32
  }
  func.func @transform_22(%arg0: i32, %arg1: i32) -> (i32, i32) {
    %c0_i32 = arith.constant 0 : i32
    %c0_i32_0 = arith.constant 0 : i32
    %c0_i32_1 = arith.constant 0 : i32
    return %c0_i32, %c0_i32_0 : i32, i32
  }
  func.func @transform_23(%arg0: i32, %arg1: i32) -> (i32, i32) {
    %c0_i32 = arith.constant 0 : i32
    %c0_i32_0 = arith.constant 0 : i32
    %c0_i32_1 = arith.constant 0 : i32
    return %c0_i32, %c0_i32_0 : i32, i32
  }
  func.func @transform_24(%arg0: i32, %arg1: i32) -> (i32, i32) {
    %c0_i32 = arith.constant 0 : i32
    %c0_i32_0 = arith.constant 0 : i32
    %c0_i32_1 = arith.constant 0 : i32
    return %c0_i32, %c0_i32_0 : i32, i32
  }
  func.func @transform_25(%arg0: i32, %arg1: i32) -> (i32, i32) {
    %c0_i32 = arith.constant 0 : i32
    %c0_i32_0 = arith.constant 0 : i32
    %c0_i32_1 = arith.constant 0 : i32
    return %c0_i32, %c0_i32_0 : i32, i32
  }
  func.func @transform_26(%arg0: i32, %arg1: i32) -> (i32, i32) {
    %c0_i32 = arith.constant 0 : i32
    %c0_i32_0 = arith.constant 0 : i32
    %c0_i32_1 = arith.constant 0 : i32
    return %c0_i32, %c0_i32_0 : i32, i32
  }
  func.func @transform_27(%arg0: i32, %arg1: i32) -> (i32, i32) {
    %c0_i32 = arith.constant 0 : i32
    %c0_i32_0 = arith.constant 0 : i32
    %c0_i32_1 = arith.constant 0 : i32
    return %c0_i32, %c0_i32_0 : i32, i32
  }
  func.func @transform_28(%arg0: i32, %arg1: i32) -> (i32, i32, i32) {
    %c0_i32 = arith.constant 0 : i32
    %c0_i32_0 = arith.constant 0 : i32
    return %arg0, %arg1, %c0_i32 : i32, i32, i32
  }
}

</mosaic_0001>

<llo_original>
// kernel: tpu_custom_call.1
$region0: #{tpu_custom_call.1}
  #allocation0 [shape = 'u32[]', space=smem, size = 0x4, offset = 0x4, fixed_abs, tag = 'smem constant byte address 0x4 - core index']
  #allocation1 [shape = 'u32[144,128]{1,0:T(1,128)}', space=vmem, size = 0x12000, scoped, tag = 'internal scratch']
  #allocation2 [shape = 'bf16[2,8,64]{2,1,0:T(8,128)(2,1)}', space=vmem, size = 0x1000, scoped, tag = 'scratch operand']
  #allocation3 [shape = 'bf16[2,8,64]{2,1,0:T(8,128)(2,1)}', space=vmem, size = 0x1000, scoped, tag = 'scratch operand']
  #allocation4 [shape = 'bf16[2,8,64]{2,1,0:T(8,128)(2,1)}', space=vmem, size = 0x1000, scoped, tag = 'scratch operand']
  #allocation5 [shape = 'bf16[2,8,64]{2,1,0:T(8,128)(2,1)}', space=vmem, size = 0x1000, scoped, tag = 'scratch operand']
  %s0 = inlined_call_operand.vmem [shape: f32[2,8,32], index: 0, kind: input, shape index: {}]
  %s1 = inlined_call_operand.hbm [shape: f32[2,1,32], index: 1, kind: input, shape index: {}]
  %s2 = inlined_call_operand.vmem [shape: f32[2,8,32], index: 2, kind: input, shape index: {}]
  %s3 = inlined_call_operand.vmem [shape: f32[8,64], index: 3, kind: input, shape index: {}]
  %s4 = inlined_call_operand.vmem [shape: f32[8,64], index: 4, kind: input, shape index: {}]
  %s5 = inlined_call_operand.hbm [shape: f32[8,64], index: 5, kind: input, shape index: {}]
  %s6 = inlined_call_operand.vmem [shape: bf16[32,288], index: 6, kind: input, shape index: {}]
  %s7 = inlined_call_operand.vmem [shape: f32[1,288], index: 7, kind: input, shape index: {}]
  %s8 = inlined_call_operand.vmem [shape: bf16[32,128], index: 8, kind: input, shape index: {}]
  %s9 = inlined_call_operand.vmem [shape: f32[1,128], index: 9, kind: input, shape index: {}]
  %s10 = inlined_call_operand.vmem [shape: bf16[32,128], index: 10, kind: input, shape index: {}]
  %s11 = inlined_call_operand.vmem [shape: f32[1,128], index: 11, kind: input, shape index: {}]
  %s12 = inlined_call_operand.vmem [shape: bf16[32,128], index: 12, kind: input, shape index: {}]
  %s13 = inlined_call_operand.vmem [shape: f32[1,128], index: 13, kind: input, shape index: {}]
  %s14 = inlined_call_operand.vmem [shape: bf16[128,32], index: 14, kind: input, shape index: {}]
  %s15 = inlined_call_operand.vmem [shape: f32[1,32], index: 15, kind: input, shape index: {}]
  %s16 = inlined_call_operand.vmem [shape: bf16[32,128], index: 16, kind: input, shape index: {}]
  %s17 = inlined_call_operand.vmem [shape: f32[1,128], index: 17, kind: input, shape index: {}]
  %s18 = inlined_call_operand.vmem [shape: bf16[32,128], index: 18, kind: input, shape index: {}]
  %s19 = inlined_call_operand.vmem [shape: f32[1,128], index: 19, kind: input, shape index: {}]
  %s20 = inlined_call_operand.vmem [shape: bf16[32,128], index: 20, kind: input, shape index: {}]
  %s21 = inlined_call_operand.vmem [shape: f32[1,128], index: 21, kind: input, shape index: {}]
  %s22 = inlined_call_operand.vmem [shape: bf16[128,32], index: 22, kind: input, shape index: {}]
  %s23 = inlined_call_operand.vmem [shape: f32[1,32], index: 23, kind: input, shape index: {}]
  %s24 = inlined_call_operand.vmem [shape: bf16[32,128], index: 24, kind: input, shape index: {}]
  %s25 = inlined_call_operand.vmem [shape: f32[1,128], index: 25, kind: input, shape index: {}]
  %s26 = inlined_call_operand.vmem [shape: bf16[128,32], index: 26, kind: input, shape index: {}]
  %s27 = inlined_call_operand.vmem [shape: f32[1,32], index: 27, kind: input, shape index: {}]
  %s28 = inlined_call_operand.hbm [shape: f32[2,8,32], index: 28, kind: output, shape index: {}]
  %s29 = sld [smem:[#allocation0]]
  $region157: #{tpu_custom_call.1} parent=0
    _
  %s31 = ssub.s32 1, %s29
  %s32 = scalar_select 0, %s31, %s29
  $region1: #{tpu_custom_call.1} parent=0
    #allocation6 [shape = 'u8[1024]{0}', space=vmem, size = 0x400, scoped, tag = 'input window, operand 1']
    #allocation7 [shape = 's32[2]{0}', space=sflag, size = 0x8, scoped, tag = 'scoped memory for tpu_custom_call.1']
    #allocation8 [shape = 's32[2]{0}', space=sflag, size = 0x8, scoped, tag = 'scoped memory for tpu_custom_call.1']
    #allocation9 [shape = 'u8[4096]{0}', space=vmem, size = 0x1000, scoped, tag = 'input window, operand 5, single buffered']
    #allocation10 [shape = 's32[1]{0}', space=sflag, size = 0x4, scoped, tag = 'scoped memory for tpu_custom_call.1']
    #allocation11 [shape = 'u8[8192]{0}', space=vmem, size = 0x2000, scoped, tag = 'output window, operand 0']
    %33 = vsyncpa [#allocation7], 0
    %s34 = scalar_lea.sflag [#allocation7], 1
    %35 = vsyncpa %s34, 0
    %36 = vsyncpa [#allocation10], 0
    %37 = vsyncpa [#allocation8], 0
    %s38 = scalar_lea.sflag [#allocation8], 1
    %39 = vsyncpa %s38, 0
    loop: start=0, step=1, limit=4
    $region2: #{tpu_custom_call.1} parent=1 // loop_pre_header
      _
    $region3: #{tpu_custom_call.1} parent=1 // loop_header
      %s41 = sphi 0, %s45
      %p42 = scmp.ge.s32.totalorder %s41, 4
      %s48 = sphi 0, %s60
      %s49 = sphi 0, %s56
      %s50 = sphi 0, %s48
      %s51 = sphi 0, %s49
      %s52 = sphi 0, %s50
      %s53 = sphi 0, %s51
      %s63 = sphi 0, %s65
      %s66 = sphi 0, %s63
      %s67 = sphi 0, %s66
      %s83 = sphi 0, %s67
      %s89 = sphi 0, %s91
      %s92 = sphi 0, %s89
      %s93 = sphi 0, %s92
      %s109 = sphi 0, %s93
      %s115 = sphi 0, %s117
      %s118 = sphi 0, %s115
      %s119 = sphi 0, %s118
      %s135 = sphi 0, %s119
      %s139 = sphi 0, %s139
      %s141 = sphi 0, %s139
      %s142 = sphi 0, %s141
      %s156 = sphi 0, %s142
      %s160 = sphi 0, %s160
      %s162 = sphi 0, %s160
      %s163 = sphi 0, %s162
      %s177 = sphi 0, %s163
      %s181 = sphi 0, %s181
      %s183 = sphi 0, %s181
      %s184 = sphi 0, %s183
      %s198 = sphi 0, %s184
      %s202 = sphi 0, %s202
      %s204 = sphi 0, %s202
      %s205 = sphi 0, %s204
      %s219 = sphi 0, %s205
      %s223 = sphi 0, %s223
      %s225 = sphi 0, %s223
      %s226 = sphi 0, %s225
      %s240 = sphi 0, %s226
      %s244 = sphi 0, %s244
      %s246 = sphi 0, %s244
      %s247 = sphi 0, %s246
      %s261 = sphi 0, %s247
      %s265 = sphi 0, %s265
      %s267 = sphi 0, %s265
      %s268 = sphi 0, %s267
      %s282 = sphi 0, %s268
      %s286 = sphi 0, %s286
      %s288 = sphi 0, %s286
      %s289 = sphi 0, %s288
      %s303 = sphi 0, %s289
      %s307 = sphi 0, %s307
      %s309 = sphi 0, %s307
      %s310 = sphi 0, %s309
      %s324 = sphi 0, %s310
      %s328 = sphi 0, %s328
      %s330 = sphi 0, %s328
      %s331 = sphi 0, %s330
      %s345 = sphi 0, %s331
      %s349 = sphi 0, %s349
      %s351 = sphi 0, %s349
      %s352 = sphi 0, %s351
      %s366 = sphi 0, %s352
      %s370 = sphi 0, %s370
      %s372 = sphi 0, %s370
      %s373 = sphi 0, %s372
      %s387 = sphi 0, %s373
      %s391 = sphi 0, %s391
      %s393 = sphi 0, %s391
      %s394 = sphi 0, %s393
      %s408 = sphi 0, %s394
      %s412 = sphi 0, %s412
      %s414 = sphi 0, %s412
      %s415 = sphi 0, %s414
      %s429 = sphi 0, %s415
      %s433 = sphi 0, %s433
      %s435 = sphi 0, %s433
      %s436 = sphi 0, %s435
      %s450 = sphi 0, %s436
      %s454 = sphi 0, %s454
      %s456 = sphi 0, %s454
      %s457 = sphi 0, %s456
      %s471 = sphi 0, %s457
      %s475 = sphi 0, %s475
      %s477 = sphi 0, %s475
      %s478 = sphi 0, %s477
      %s492 = sphi 0, %s478
      %s496 = sphi 0, %s496
      %s498 = sphi 0, %s496
      %s499 = sphi 0, %s498
      %s513 = sphi 0, %s499
      %s517 = sphi 0, %s517
      %s519 = sphi 0, %s517
      %s520 = sphi 0, %s519
      %s534 = sphi 0, %s520
      %s538 = sphi 0, %s538
      %s540 = sphi 0, %s538
      %s541 = sphi 0, %s540
      %s555 = sphi 0, %s541
      %s559 = sphi 0, %s559
      %s561 = sphi 0, %s559
      %s562 = sphi 0, %s561
      %s576 = sphi 0, %s562
      %s580 = sphi 0, %s580
      %s582 = sphi 0, %s580
      %s583 = sphi 0, %s582
      %s597 = sphi 0, %s583
      %s601 = sphi 0, %s601
      %s603 = sphi 0, %s601
      %s604 = sphi 0, %s603
      %s618 = sphi 0, %s604
      %s622 = sphi 0, %s622
      %s624 = sphi 0, %s622
      %s625 = sphi 0, %s624
      %s639 = sphi 0, %s625
      %s643 = sphi 0, %s643
      %s645 = sphi 0, %s643
      %s646 = sphi 0, %s645
      %s660 = sphi 0, %s646
      %s668 = sphi 0, %s670
      %s671 = sphi 0, %s668
      %s672 = sphi 0, %s671
      %s688 = sphi 0, %s672
    $region4: #{tpu_custom_call.1} parent=1 // loop_header_branch
      %44 = sbr.rel (%p42) target = $region8
    $region5: #{tpu_custom_call.1} parent=1 // loop_body
      %s46 = ssub.s32 %s41, 1
      %s47 = ssub.s32 %s41, 2
      %s54 = sadd.s32 1, %s49
      %p55 = scmp.ge.s32.totalorder %s54, 1
      %s56 = scalar_select %p55, 0, %s54
      %s57 = sadd.s32 1, %s48
      %s58 = scalar_select %p55, %s57, %s48
      %p59 = scmp.ge.s32.totalorder %s58, 2
      %s60 = scalar_select %p59, 0, %s58
      %s61 = ssub.s32 %s48, %s60
      %p62 = scmp.eq.s32.totalorder %s61, 0
      %s64 = sadd.s32 %s63, 1
      %s65 = scalar_select %p62, %s63, %s64
      %p68 = pneg %p62
      %p69 = scmp.eq.s32.totalorder %s41, 1
      %p70 = por %p68, %p69
      %p71 = scmp.ne.s32.totalorder %s63, %s66
      %p72 = scmp.eq.s32.totalorder %s41, 0
      %p73 = por %p71, %p72
      %p74 = scmp.ne.s32.totalorder %s63, %s66
      %p75 = scmp.eq.s32.totalorder %s46, 1
      %p76 = por %p74, %p75
      %p77 = scmp.ne.s32.totalorder %s66, %s67
      %p78 = scmp.eq.s32.totalorder %s46, 0
      %p79 = por %p77, %p78
      %p80 = scmp.ne.s32.totalorder %s66, %s67
      %p81 = scmp.eq.s32.totalorder %s47, 1
      %p82 = por %p80, %p81
      %p84 = scmp.ne.s32.totalorder %s67, %s83
      %p85 = scmp.eq.s32.totalorder %s47, 0
      %p86 = por %p84, %p85
      %s87 = ssub.s32 %s48, %s60
      %p88 = scmp.eq.s32.totalorder %s87, 0
      %s90 = sadd.s32 %s89, 1
      %s91 = scalar_select %p88, %s89, %s90
      %p94 = pneg %p88
      %p95 = scmp.eq.s32.totalorder %s41, 1
      %p96 = por %p94, %p95
      %p97 = scmp.ne.s32.totalorder %s89, %s92
      %p98 = scmp.eq.s32.totalorder %s41, 0
      %p99 = por %p97, %p98
      %p100 = scmp.ne.s32.totalorder %s89, %s92
      %p101 = scmp.eq.s32.totalorder %s46, 1
      %p102 = por %p100, %p101
      %p103 = scmp.ne.s32.totalorder %s92, %s93
      %p104 = scmp.eq.s32.totalorder %s46, 0
      %p105 = por %p103, %p104
      %p106 = scmp.ne.s32.totalorder %s92, %s93
      %p107 = scmp.eq.s32.totalorder %s47, 1
      %p108 = por %p106, %p107
      %p110 = scmp.ne.s32.totalorder %s93, %s109
      %p111 = scmp.eq.s32.totalorder %s47, 0
      %p112 = por %p110, %p111
      %s113 = ssub.s32 %s48, %s60
      %p114 = scmp.eq.s32.totalorder %s113, 0
      %s116 = sadd.s32 %s115, 1
      %s117 = scalar_select %p114, %s115, %s116
      %p120 = pneg %p114
      %p121 = scmp.eq.s32.totalorder %s41, 1
      %p122 = por %p120, %p121
      %p123 = scmp.ne.s32.totalorder %s115, %s118
      %p124 = scmp.eq.s32.totalorder %s41, 0
      %p125 = por %p123, %p124
      %p126 = scmp.ne.s32.totalorder %s115, %s118
      %p127 = scmp.eq.s32.totalorder %s46, 1
      %p128 = por %p126, %p127
      %p129 = scmp.ne.s32.totalorder %s118, %s119
      %p130 = scmp.eq.s32.totalorder %s46, 0
      %p131 = por %p129, %p130
      %p132 = scmp.ne.s32.totalorder %s118, %s119
      %p133 = scmp.eq.s32.totalorder %s47, 1
      %p134 = por %p132, %p133
      %p136 = scmp.ne.s32.totalorder %s119, %s135
      %p137 = scmp.eq.s32.totalorder %s47, 0
      %p138 = por %p136, %p137
      %s140 = sadd.s32 %s139, 1
      %p143 = scmp.eq.s32.totalorder %s41, 1
      %p144 = scmp.ne.s32.totalorder %s139, %s141
      %p145 = scmp.eq.s32.totalorder %s41, 0
      %p146 = por %p144, %p145
      %p147 = scmp.ne.s32.totalorder %s139, %s141
      %p148 = scmp.eq.s32.totalorder %s46, 1
      %p149 = por %p147, %p148
      %p150 = scmp.ne.s32.totalorder %s141, %s142
      %p151 = scmp.eq.s32.totalorder %s46, 0
      %p152 = por %p150, %p151
      %p153 = scmp.ne.s32.totalorder %s141, %s142
      %p154 = scmp.eq.s32.totalorder %s47, 1
      %p155 = por %p153, %p154
      %p157 = scmp.ne.s32.totalorder %s142, %s156
      %p158 = scmp.eq.s32.totalorder %s47, 0
      %p159 = por %p157, %p158
      %s161 = sadd.s32 %s160, 1
      %p164 = scmp.eq.s32.totalorder %s41, 1
      %p165 = scmp.ne.s32.totalorder %s160, %s162
      %p166 = scmp.eq.s32.totalorder %s41, 0
      %p167 = por %p165, %p166
      %p168 = scmp.ne.s32.totalorder %s160, %s162
      %p169 = scmp.eq.s32.totalorder %s46, 1
      %p170 = por %p168, %p169
      %p171 = scmp.ne.s32.totalorder %s162, %s163
      %p172 = scmp.eq.s32.totalorder %s46, 0
      %p173 = por %p171, %p172
      %p174 = scmp.ne.s32.totalorder %s162, %s163
      %p175 = scmp.eq.s32.totalorder %s47, 1
      %p176 = por %p174, %p175
      %p178 = scmp.ne.s32.totalorder %s163, %s177
      %p179 = scmp.eq.s32.totalorder %s47, 0
      %p180 = por %p178, %p179
      %s182 = sadd.s32 %s181, 1
      %p185 = scmp.eq.s32.totalorder %s41, 1
      %p186 = scmp.ne.s32.totalorder %s181, %s183
      %p187 = scmp.eq.s32.totalorder %s41, 0
      %p188 = por %p186, %p187
      %p189 = scmp.ne.s32.totalorder %s181, %s183
      %p190 = scmp.eq.s32.totalorder %s46, 1
      %p191 = por %p189, %p190
      %p192 = scmp.ne.s32.totalorder %s183, %s184
      %p193 = scmp.eq.s32.totalorder %s46, 0
      %p194 = por %p192, %p193
      %p195 = scmp.ne.s32.totalorder %s183, %s184
      %p196 = scmp.eq.s32.totalorder %s47, 1
      %p197 = por %p195, %p196
      %p199 = scmp.ne.s32.totalorder %s184, %s198
      %p200 = scmp.eq.s32.totalorder %s47, 0
      %p201 = por %p199, %p200
      %s203 = sadd.s32 %s202, 1
      %p206 = scmp.eq.s32.totalorder %s41, 1
      %p207 = scmp.ne.s32.totalorder %s202, %s204
      %p208 = scmp.eq.s32.totalorder %s41, 0
      %p209 = por %p207, %p208
      %p210 = scmp.ne.s32.totalorder %s202, %s204
      %p211 = scmp.eq.s32.totalorder %s46, 1
      %p212 = por %p210, %p211
      %p213 = scmp.ne.s32.totalorder %s204, %s205
      %p214 = scmp.eq.s32.totalorder %s46, 0
      %p215 = por %p213, %p214
      %p216 = scmp.ne.s32.totalorder %s204, %s205
      %p217 = scmp.eq.s32.totalorder %s47, 1
      %p218 = por %p216, %p217
      %p220 = scmp.ne.s32.totalorder %s205, %s219
      %p221 = scmp.eq.s32.totalorder %s47, 0
      %p222 = por %p220, %p221
      %s224 = sadd.s32 %s223, 1
      %p227 = scmp.eq.s32.totalorder %s41, 1
      %p228 = scmp.ne.s32.totalorder %s223, %s225
      %p229 = scmp.eq.s32.totalorder %s41, 0
      %p230 = por %p228, %p229
      %p231 = scmp.ne.s32.totalorder %s223, %s225
      %p232 = scmp.eq.s32.totalorder %s46, 1
      %p233 = por %p231, %p232
      %p234 = scmp.ne.s32.totalorder %s225, %s226
      %p235 = scmp.eq.s32.totalorder %s46, 0
      %p236 = por %p234, %p235
      %p237 = scmp.ne.s32.totalorder %s225, %s226
      %p238 = scmp.eq.s32.totalorder %s47, 1
      %p239 = por %p237, %p238
      %p241 = scmp.ne.s32.totalorder %s226, %s240
      %p242 = scmp.eq.s32.totalorder %s47, 0
      %p243 = por %p241, %p242
      %s245 = sadd.s32 %s244, 1
      %p248 = scmp.eq.s32.totalorder %s41, 1
      %p249 = scmp.ne.s32.totalorder %s244, %s246
      %p250 = scmp.eq.s32.totalorder %s41, 0
      %p251 = por %p249, %p250
      %p252 = scmp.ne.s32.totalorder %s244, %s246
      %p253 = scmp.eq.s32.totalorder %s46, 1
      %p254 = por %p252, %p253
      %p255 = scmp.ne.s32.totalorder %s246, %s247
      %p256 = scmp.eq.s32.totalorder %s46, 0
      %p257 = por %p255, %p256
      %p258 = scmp.ne.s32.totalorder %s246, %s247
      %p259 = scmp.eq.s32.totalorder %s47, 1
      %p260 = por %p258, %p259
      %p262 = scmp.ne.s32.totalorder %s247, %s261
      %p263 = scmp.eq.s32.totalorder %s47, 0
      %p264 = por %p262, %p263
      %s266 = sadd.s32 %s265, 1
      %p269 = scmp.eq.s32.totalorder %s41, 1
      %p270 = scmp.ne.s32.totalorder %s265, %s267
      %p271 = scmp.eq.s32.totalorder %s41, 0
      %p272 = por %p270, %p271
      %p273 = scmp.ne.s32.totalorder %s265, %s267
      %p274 = scmp.eq.s32.totalorder %s46, 1
      %p275 = por %p273, %p274
      %p276 = scmp.ne.s32.totalorder %s267, %s268
      %p277 = scmp.eq.s32.totalorder %s46, 0
      %p278 = por %p276, %p277
      %p279 = scmp.ne.s32.totalorder %s267, %s268
      %p280 = scmp.eq.s32.totalorder %s47, 1
      %p281 = por %p279, %p280
      %p283 = scmp.ne.s32.totalorder %s268, %s282
      %p284 = scmp.eq.s32.totalorder %s47, 0
      %p285 = por %p283, %p284
      %s287 = sadd.s32 %s286, 1
      %p290 = scmp.eq.s32.totalorder %s41, 1
      %p291 = scmp.ne.s32.totalorder %s286, %s288
      %p292 = scmp.eq.s32.totalorder %s41, 0
      %p293 = por %p291, %p292
      %p294 = scmp.ne.s32.totalorder %s286, %s288
      %p295 = scmp.eq.s32.totalorder %s46, 1
      %p296 = por %p294, %p295
      %p297 = scmp.ne.s32.totalorder %s288, %s289
      %p298 = scmp.eq.s32.totalorder %s46, 0
      %p299 = por %p297, %p298
      %p300 = scmp.ne.s32.totalorder %s288, %s289
      %p301 = scmp.eq.s32.totalorder %s47, 1
      %p302 = por %p300, %p301
      %p304 = scmp.ne.s32.totalorder %s289, %s303
      %p305 = scmp.eq.s32.totalorder %s47, 0
      %p306 = por %p304, %p305
      %s308 = sadd.s32 %s307, 1
      %p311 = scmp.eq.s32.totalorder %s41, 1
      %p312 = scmp.ne.s32.totalorder %s307, %s309
      %p313 = scmp.eq.s32.totalorder %s41, 0
      %p314 = por %p312, %p313
      %p315 = scmp.ne.s32.totalorder %s307, %s309
      %p316 = scmp.eq.s32.totalorder %s46, 1
      %p317 = por %p315, %p316
      %p318 = scmp.ne.s32.totalorder %s309, %s310
      %p319 = scmp.eq.s32.totalorder %s46, 0
      %p320 = por %p318, %p319
      %p321 = scmp.ne.s32.totalorder %s309, %s310
      %p322 = scmp.eq.s32.totalorder %s47, 1
      %p323 = por %p321, %p322
      %p325 = scmp.ne.s32.totalorder %s310, %s324
      %p326 = scmp.eq.s32.totalorder %s47, 0
      %p327 = por %p325, %p326
      %s329 = sadd.s32 %s328, 1
      %p332 = scmp.eq.s32.totalorder %s41, 1
      %p333 = scmp.ne.s32.totalorder %s328, %s330
      %p334 = scmp.eq.s32.totalorder %s41, 0
      %p335 = por %p333, %p334
      %p336 = scmp.ne.s32.totalorder %s328, %s330
      %p337 = scmp.eq.s32.totalorder %s46, 1
      %p338 = por %p336, %p337
      %p339 = scmp.ne.s32.totalorder %s330, %s331
      %p340 = scmp.eq.s32.totalorder %s46, 0
      %p341 = por %p339, %p340
      %p342 = scmp.ne.s32.totalorder %s330, %s331
      %p343 = scmp.eq.s32.totalorder %s47, 1
      %p344 = por %p342, %p343
      %p346 = scmp.ne.s32.totalorder %s331, %s345
      %p347 = scmp.eq.s32.totalorder %s47, 0
      %p348 = por %p346, %p347
      %s350 = sadd.s32 %s349, 1
      %p353 = scmp.eq.s32.totalorder %s41, 1
      %p354 = scmp.ne.s32.totalorder %s349, %s351
      %p355 = scmp.eq.s32.totalorder %s41, 0
      %p356 = por %p354, %p355
      %p357 = scmp.ne.s32.totalorder %s349, %s351
      %p358 = scmp.eq.s32.totalorder %s46, 1
      %p359 = por %p357, %p358
      %p360 = scmp.ne.s32.totalorder %s351, %s352
      %p361 = scmp.eq.s32.totalorder %s46, 0
      %p362 = por %p360, %p361
      %p363 = scmp.ne.s32.totalorder %s351, %s352
      %p364 = scmp.eq.s32.totalorder %s47, 1
      %p365 = por %p363, %p364
      %p367 = scmp.ne.s32.totalorder %s352, %s366
      %p368 = scmp.eq.s32.totalorder %s47, 0
      %p369 = por %p367, %p368
      %s371 = sadd.s32 %s370, 1
      %p374 = scmp.eq.s32.totalorder %s41, 1
      %p375 = scmp.ne.s32.totalorder %s370, %s372
      %p376 = scmp.eq.s32.totalorder %s41, 0
      %p377 = por %p375, %p376
      %p378 = scmp.ne.s32.totalorder %s370, %s372
      %p379 = scmp.eq.s32.totalorder %s46, 1
      %p380 = por %p378, %p379
      %p381 = scmp.ne.s32.totalorder %s372, %s373
      %p382 = scmp.eq.s32.totalorder %s46, 0
      %p383 = por %p381, %p382
      %p384 = scmp.ne.s32.totalorder %s372, %s373
      %p385 = scmp.eq.s32.totalorder %s47, 1
      %p386 = por %p384, %p385
      %p388 = scmp.ne.s32.totalorder %s373, %s387
      %p389 = scmp.eq.s32.totalorder %s47, 0
      %p390 = por %p388, %p389
      %s392 = sadd.s32 %s391, 1
      %p395 = scmp.eq.s32.totalorder %s41, 1
      %p396 = scmp.ne.s32.totalorder %s391, %s393
      %p397 = scmp.eq.s32.totalorder %s41, 0
      %p398 = por %p396, %p397
      %p399 = scmp.ne.s32.totalorder %s391, %s393
      %p400 = scmp.eq.s32.totalorder %s46, 1
      %p401 = por %p399, %p400
      %p402 = scmp.ne.s32.totalorder %s393, %s394
      %p403 = scmp.eq.s32.totalorder %s46, 0
      %p404 = por %p402, %p403
      %p405 = scmp.ne.s32.totalorder %s393, %s394
      %p406 = scmp.eq.s32.totalorder %s47, 1
      %p407 = por %p405, %p406
      %p409 = scmp.ne.s32.totalorder %s394, %s408
      %p410 = scmp.eq.s32.totalorder %s47, 0
      %p411 = por %p409, %p410
      %s413 = sadd.s32 %s412, 1
      %p416 = scmp.eq.s32.totalorder %s41, 1
      %p417 = scmp.ne.s32.totalorder %s412, %s414
      %p418 = scmp.eq.s32.totalorder %s41, 0
      %p419 = por %p417, %p418
      %p420 = scmp.ne.s32.totalorder %s412, %s414
      %p421 = scmp.eq.s32.totalorder %s46, 1
      %p422 = por %p420, %p421
      %p423 = scmp.ne.s32.totalorder %s414, %s415
      %p424 = scmp.eq.s32.totalorder %s46, 0
      %p425 = por %p423, %p424
      %p426 = scmp.ne.s32.totalorder %s414, %s415
      %p427 = scmp.eq.s32.totalorder %s47, 1
      %p428 = por %p426, %p427
      %p430 = scmp.ne.s32.totalorder %s415, %s429
      %p431 = scmp.eq.s32.totalorder %s47, 0
      %p432 = por %p430, %p431
      %s434 = sadd.s32 %s433, 1
      %p437 = scmp.eq.s32.totalorder %s41, 1
      %p438 = scmp.ne.s32.totalorder %s433, %s435
      %p439 = scmp.eq.s32.totalorder %s41, 0
      %p440 = por %p438, %p439
      %p441 = scmp.ne.s32.totalorder %s433, %s435
      %p442 = scmp.eq.s32.totalorder %s46, 1
      %p443 = por %p441, %p442
      %p444 = scmp.ne.s32.totalorder %s435, %s436
      %p445 = scmp.eq.s32.totalorder %s46, 0
      %p446 = por %p444, %p445
      %p447 = scmp.ne.s32.totalorder %s435, %s436
      %p448 = scmp.eq.s32.totalorder %s47, 1
      %p449 = por %p447, %p448
      %p451 = scmp.ne.s32.totalorder %s436, %s450
      %p452 = scmp.eq.s32.totalorder %s47, 0
      %p453 = por %p451, %p452
      %s455 = sadd.s32 %s454, 1
      %p458 = scmp.eq.s32.totalorder %s41, 1
      %p459 = scmp.ne.s32.totalorder %s454, %s456
      %p460 = scmp.eq.s32.totalorder %s41, 0
      %p461 = por %p459, %p460
      %p462 = scmp.ne.s32.totalorder %s454, %s456
      %p463 = scmp.eq.s32.totalorder %s46, 1
      %p464 = por %p462, %p463
      %p465 = scmp.ne.s32.totalorder %s456, %s457
      %p466 = scmp.eq.s32.totalorder %s46, 0
      %p467 = por %p465, %p466
      %p468 = scmp.ne.s32.totalorder %s456, %s457
      %p469 = scmp.eq.s32.totalorder %s47, 1
      %p470 = por %p468, %p469
      %p472 = scmp.ne.s32.totalorder %s457, %s471
      %p473 = scmp.eq.s32.totalorder %s47, 0
      %p474 = por %p472, %p473
      %s476 = sadd.s32 %s475, 1
      %p479 = scmp.eq.s32.totalorder %s41, 1
      %p480 = scmp.ne.s32.totalorder %s475, %s477
      %p481 = scmp.eq.s32.totalorder %s41, 0
      %p482 = por %p480, %p481
      %p483 = scmp.ne.s32.totalorder %s475, %s477
      %p484 = scmp.eq.s32.totalorder %s46, 1
      %p485 = por %p483, %p484
      %p486 = scmp.ne.s32.totalorder %s477, %s478
      %p487 = scmp.eq.s32.totalorder %s46, 0
      %p488 = por %p486, %p487
      %p489 = scmp.ne.s32.totalorder %s477, %s478
      %p490 = scmp.eq.s32.totalorder %s47, 1
      %p491 = por %p489, %p490
      %p493 = scmp.ne.s32.totalorder %s478, %s492
      %p494 = scmp.eq.s32.totalorder %s47, 0
      %p495 = por %p493, %p494
      %s497 = sadd.s32 %s496, 1
      %p500 = scmp.eq.s32.totalorder %s41, 1
      %p501 = scmp.ne.s32.totalorder %s496, %s498
      %p502 = scmp.eq.s32.totalorder %s41, 0
      %p503 = por %p501, %p502
      %p504 = scmp.ne.s32.totalorder %s496, %s498
      %p505 = scmp.eq.s32.totalorder %s46, 1
      %p506 = por %p504, %p505
      %p507 = scmp.ne.s32.totalorder %s498, %s499
      %p508 = scmp.eq.s32.totalorder %s46, 0
      %p509 = por %p507, %p508
      %p510 = scmp.ne.s32.totalorder %s498, %s499
      %p511 = scmp.eq.s32.totalorder %s47, 1
      %p512 = por %p510, %p511
      %p514 = scmp.ne.s32.totalorder %s499, %s513
      %p515 = scmp.eq.s32.totalorder %s47, 0
      %p516 = por %p514, %p515
      %s518 = sadd.s32 %s517, 1
      %p521 = scmp.eq.s32.totalorder %s41, 1
      %p522 = scmp.ne.s32.totalorder %s517, %s519
      %p523 = scmp.eq.s32.totalorder %s41, 0
      %p524 = por %p522, %p523
      %p525 = scmp.ne.s32.totalorder %s517, %s519
      %p526 = scmp.eq.s32.totalorder %s46, 1
      %p527 = por %p525, %p526
      %p528 = scmp.ne.s32.totalorder %s519, %s520
      %p529 = scmp.eq.s32.totalorder %s46, 0
      %p530 = por %p528, %p529
      %p531 = scmp.ne.s32.totalorder %s519, %s520
      %p532 = scmp.eq.s32.totalorder %s47, 1
      %p533 = por %p531, %p532
      %p535 = scmp.ne.s32.totalorder %s520, %s534
      %p536 = scmp.eq.s32.totalorder %s47, 0
      %p537 = por %p535, %p536
      %s539 = sadd.s32 %s538, 1
      %p542 = scmp.eq.s32.totalorder %s41, 1
      %p543 = scmp.ne.s32.totalorder %s538, %s540
      %p544 = scmp.eq.s32.totalorder %s41, 0
      %p545 = por %p543, %p544
      %p546 = scmp.ne.s32.totalorder %s538, %s540
      %p547 = scmp.eq.s32.totalorder %s46, 1
      %p548 = por %p546, %p547
      %p549 = scmp.ne.s32.totalorder %s540, %s541
      %p550 = scmp.eq.s32.totalorder %s46, 0
      %p551 = por %p549, %p550
      %p552 = scmp.ne.s32.totalorder %s540, %s541
      %p553 = scmp.eq.s32.totalorder %s47, 1
      %p554 = por %p552, %p553
      %p556 = scmp.ne.s32.totalorder %s541, %s555
      %p557 = scmp.eq.s32.totalorder %s47, 0
      %p558 = por %p556, %p557
      %s560 = sadd.s32 %s559, 1
      %p563 = scmp.eq.s32.totalorder %s41, 1
      %p564 = scmp.ne.s32.totalorder %s559, %s561
      %p565 = scmp.eq.s32.totalorder %s41, 0
      %p566 = por %p564, %p565
      %p567 = scmp.ne.s32.totalorder %s559, %s561
      %p568 = scmp.eq.s32.totalorder %s46, 1
      %p569 = por %p567, %p568
      %p570 = scmp.ne.s32.totalorder %s561, %s562
      %p571 = scmp.eq.s32.totalorder %s46, 0
      %p572 = por %p570, %p571
      %p573 = scmp.ne.s32.totalorder %s561, %s562
      %p574 = scmp.eq.s32.totalorder %s47, 1
      %p575 = por %p573, %p574
      %p577 = scmp.ne.s32.totalorder %s562, %s576
      %p578 = scmp.eq.s32.totalorder %s47, 0
      %p579 = por %p577, %p578
      %s581 = sadd.s32 %s580, 1
      %p584 = scmp.eq.s32.totalorder %s41, 1
      %p585 = scmp.ne.s32.totalorder %s580, %s582
      %p586 = scmp.eq.s32.totalorder %s41, 0
      %p587 = por %p585, %p586
      %p588 = scmp.ne.s32.totalorder %s580, %s582
      %p589 = scmp.eq.s32.totalorder %s46, 1
      %p590 = por %p588, %p589
      %p591 = scmp.ne.s32.totalorder %s582, %s583
      %p592 = scmp.eq.s32.totalorder %s46, 0
      %p593 = por %p591, %p592
      %p594 = scmp.ne.s32.totalorder %s582, %s583
      %p595 = scmp.eq.s32.totalorder %s47, 1
      %p596 = por %p594, %p595
      %p598 = scmp.ne.s32.totalorder %s583, %s597
      %p599 = scmp.eq.s32.totalorder %s47, 0
      %p600 = por %p598, %p599
      %s602 = sadd.s32 %s601, 1
      %p605 = scmp.eq.s32.totalorder %s41, 1
      %p606 = scmp.ne.s32.totalorder %s601, %s603
      %p607 = scmp.eq.s32.totalorder %s41, 0
      %p608 = por %p606, %p607
      %p609 = scmp.ne.s32.totalorder %s601, %s603
      %p610 = scmp.eq.s32.totalorder %s46, 1
      %p611 = por %p609, %p610
      %p612 = scmp.ne.s32.totalorder %s603, %s604
      %p613 = scmp.eq.s32.totalorder %s46, 0
      %p614 = por %p612, %p613
      %p615 = scmp.ne.s32.totalorder %s603, %s604
      %p616 = scmp.eq.s32.totalorder %s47, 1
      %p617 = por %p615, %p616
      %p619 = scmp.ne.s32.totalorder %s604, %s618
      %p620 = scmp.eq.s32.totalorder %s47, 0
      %p621 = por %p619, %p620
      %s623 = sadd.s32 %s622, 1
      %p626 = scmp.eq.s32.totalorder %s41, 1
      %p627 = scmp.ne.s32.totalorder %s622, %s624
      %p628 = scmp.eq.s32.totalorder %s41, 0
      %p629 = por %p627, %p628
      %p630 = scmp.ne.s32.totalorder %s622, %s624
      %p631 = scmp.eq.s32.totalorder %s46, 1
      %p632 = por %p630, %p631
      %p633 = scmp.ne.s32.totalorder %s624, %s625
      %p634 = scmp.eq.s32.totalorder %s46, 0
      %p635 = por %p633, %p634
      %p636 = scmp.ne.s32.totalorder %s624, %s625
      %p637 = scmp.eq.s32.totalorder %s47, 1
      %p638 = por %p636, %p637
      %p640 = scmp.ne.s32.totalorder %s625, %s639
      %p641 = scmp.eq.s32.totalorder %s47, 0
      %p642 = por %p640, %p641
      %s644 = sadd.s32 %s643, 1
      %p647 = scmp.eq.s32.totalorder %s41, 1
      %p648 = scmp.ne.s32.totalorder %s643, %s645
      %p649 = scmp.eq.s32.totalorder %s41, 0
      %p650 = por %p648, %p649
      %p651 = scmp.ne.s32.totalorder %s643, %s645
      %p652 = scmp.eq.s32.totalorder %s46, 1
      %p653 = por %p651, %p652
      %p654 = scmp.ne.s32.totalorder %s645, %s646
      %p655 = scmp.eq.s32.totalorder %s46, 0
      %p656 = por %p654, %p655
      %p657 = scmp.ne.s32.totalorder %s645, %s646
      %p658 = scmp.eq.s32.totalorder %s47, 1
      %p659 = por %p657, %p658
      %p661 = scmp.ne.s32.totalorder %s646, %s660
      %p662 = scmp.eq.s32.totalorder %s47, 0
      %p663 = por %p661, %p662
      %s664 = ssub.s32 %s48, %s60
      %s665 = ssub.s32 %s49, %s56
      %s666 = sor.u32 %s664, %s665
      %p667 = scmp.eq.s32.totalorder %s666, 0
      %s669 = sadd.s32 %s668, 1
      %s670 = scalar_select %p667, %s668, %s669
      %p673 = pneg %p667
      %p674 = scmp.eq.s32.totalorder %s41, 1
      %p675 = por %p673, %p674
      %p676 = scmp.ne.s32.totalorder %s668, %s671
      %p677 = scmp.eq.s32.totalorder %s41, 0
      %p678 = por %p676, %p677
      %p679 = scmp.ne.s32.totalorder %s668, %s671
      %p680 = scmp.eq.s32.totalorder %s46, 1
      %p681 = por %p679, %p680
      %p682 = scmp.ne.s32.totalorder %s671, %s672
      %p683 = scmp.eq.s32.totalorder %s46, 0
      %p684 = por %p682, %p683
      %p685 = scmp.ne.s32.totalorder %s671, %s672
      %p686 = scmp.eq.s32.totalorder %s47, 1
      %p687 = por %p685, %p686
      %p689 = scmp.ne.s32.totalorder %s672, %s688
      %p690 = scmp.eq.s32.totalorder %s47, 0
      %p691 = por %p689, %p690
      %p692 = scmp.le.s32.totalorder 1, %s41
      %p693 = scmp.lt.s32.totalorder %s41, 3
      %p694 = pnand %p692, %p693
      %p695 = pneg %p694
      // Predicated region
      $region9: #{tpu_custom_call.1} parent=5 // pred_check
        _
      $region10: #{tpu_custom_call.1} parent=5 // pred_check_branch
        %697 = sbr.rel (%p694) target = $region12
      $region11: #{tpu_custom_call.1} parent=5 // pred_region
        %s698 = ssub.s32 %s41, 1
        // Predicated region
        $region13: #{tpu_custom_call.1} parent=11 // pred_check
          %p699 = pneg %p152
        $region14: #{tpu_custom_call.1} parent=11 // pred_check_branch
          %701 = sbr.rel (%p699) target = $region16
        $region15: #{tpu_custom_call.1} parent=11 // pred_region
          _
        $region16: #{tpu_custom_call.1} parent=11 // pred_fallthru
          _
        // Predicated region
        $region17: #{tpu_custom_call.1} parent=11 // pred_check
          %p702 = pneg %p173
        $region18: #{tpu_custom_call.1} parent=11 // pred_check_branch
          %704 = sbr.rel (%p702) target = $region20
        $region19: #{tpu_custom_call.1} parent=11 // pred_region
          _
        $region20: #{tpu_custom_call.1} parent=11 // pred_fallthru
          _
        // Predicated region
        $region21: #{tpu_custom_call.1} parent=11 // pred_check
          %p705 = pneg %p194
        $region22: #{tpu_custom_call.1} parent=11 // pred_check_branch
          %707 = sbr.rel (%p705) target = $region24
        $region23: #{tpu_custom_call.1} parent=11 // pred_region
          %s709 = ssub.s32 128, 128
          %710 = vsyncadd [#allocation10], %s709
          %s712 = sshll.u32 [#allocation9], 4
          %s713 = int_to_ptr.vmem [resolvable:$true] %s712
          %715 = dma.hbm_to_vmem [thread:$0]  %s5, 128, %s713, [#allocation10]
        $region24: #{tpu_custom_call.1} parent=11 // pred_fallthru
          _
        // Predicated region
        $region25: #{tpu_custom_call.1} parent=11 // pred_check
          %p716 = pneg %p215
        $region26: #{tpu_custom_call.1} parent=11 // pred_check_branch
          %718 = sbr.rel (%p716) target = $region28
        $region27: #{tpu_custom_call.1} parent=11 // pred_region
          _
        $region28: #{tpu_custom_call.1} parent=11 // pred_fallthru
          _
        // Predicated region
        $region29: #{tpu_custom_call.1} parent=11 // pred_check
          %p719 = pneg %p236
        $region30: #{tpu_custom_call.1} parent=11 // pred_check_branch
          %721 = sbr.rel (%p719) target = $region32
        $region31: #{tpu_custom_call.1} parent=11 // pred_region
          _
        $region32: #{tpu_custom_call.1} parent=11 // pred_fallthru
          _
        // Predicated region
        $region33: #{tpu_custom_call.1} parent=11 // pred_check
          %p722 = pneg %p257
        $region34: #{tpu_custom_call.1} parent=11 // pred_check_branch
          %724 = sbr.rel (%p722) target = $region36
        $region35: #{tpu_custom_call.1} parent=11 // pred_region
          _
        $region36: #{tpu_custom_call.1} parent=11 // pred_fallthru
          _
        // Predicated region
        $region37: #{tpu_custom_call.1} parent=11 // pred_check
          %p725 = pneg %p278
        $region38: #{tpu_custom_call.1} parent=11 // pred_check_branch
          %727 = sbr.rel (%p725) target = $region40
        $region39: #{tpu_custom_call.1} parent=11 // pred_region
          _
        $region40: #{tpu_custom_call.1} parent=11 // pred_fallthru
          _
        // Predicated region
        $region41: #{tpu_custom_call.1} parent=11 // pred_check
          %p728 = pneg %p299
        $region42: #{tpu_custom_call.1} parent=11 // pred_check_branch
          %730 = sbr.rel (%p728) target = $region44
        $region43: #{tpu_custom_call.1} parent=11 // pred_region
          _
        $region44: #{tpu_custom_call.1} parent=11 // pred_fallthru
          _
        // Predicated region
        $region45: #{tpu_custom_call.1} parent=11 // pred_check
          %p731 = pneg %p320
        $region46: #{tpu_custom_call.1} parent=11 // pred_check_branch
          %733 = sbr.rel (%p731) target = $region48
        $region47: #{tpu_custom_call.1} parent=11 // pred_region
          _
        $region48: #{tpu_custom_call.1} parent=11 // pred_fallthru
          _
        // Predicated region
        $region49: #{tpu_custom_call.1} parent=11 // pred_check
          %p734 = pneg %p341
        $region50: #{tpu_custom_call.1} parent=11 // pred_check_branch
          %736 = sbr.rel (%p734) target = $region52
        $region51: #{tpu_custom_call.1} parent=11 // pred_region
          _
        $region52: #{tpu_custom_call.1} parent=11 // pred_fallthru
          _
        // Predicated region
        $region53: #{tpu_custom_call.1} parent=11 // pred_check
          %p737 = pneg %p362
        $region54: #{tpu_custom_call.1} parent=11 // pred_check_branch
          %739 = sbr.rel (%p737) target = $region56
        $region55: #{tpu_custom_call.1} parent=11 // pred_region
          _
        $region56: #{tpu_custom_call.1} parent=11 // pred_fallthru
          _
        // Predicated region
        $region57: #{tpu_custom_call.1} parent=11 // pred_check
          %p740 = pneg %p383
        $region58: #{tpu_custom_call.1} parent=11 // pred_check_branch
          %742 = sbr.rel (%p740) target = $region60
        $region59: #{tpu_custom_call.1} parent=11 // pred_region
          _
        $region60: #{tpu_custom_call.1} parent=11 // pred_fallthru
          _
        // Predicated region
        $region61: #{tpu_custom_call.1} parent=11 // pred_check
          %p743 = pneg %p404
        $region62: #{tpu_custom_call.1} parent=11 // pred_check_branch
          %745 = sbr.rel (%p743) target = $region64
        $region63: #{tpu_custom_call.1} parent=11 // pred_region
          _
        $region64: #{tpu_custom_call.1} parent=11 // pred_fallthru
          _
        // Predicated region
        $region65: #{tpu_custom_call.1} parent=11 // pred_check
          %p746 = pneg %p425
        $region66: #{tpu_custom_call.1} parent=11 // pred_check_branch
          %748 = sbr.rel (%p746) target = $region68
        $region67: #{tpu_custom_call.1} parent=11 // pred_region
          _
        $region68: #{tpu_custom_call.1} parent=11 // pred_fallthru
          _
        // Predicated region
        $region69: #{tpu_custom_call.1} parent=11 // pred_check
          %p749 = pneg %p446
        $region70: #{tpu_custom_call.1} parent=11 // pred_check_branch
          %751 = sbr.rel (%p749) target = $region72
        $region71: #{tpu_custom_call.1} parent=11 // pred_region
          _
        $region72: #{tpu_custom_call.1} parent=11 // pred_fallthru
          _
        // Predicated region
        $region73: #{tpu_custom_call.1} parent=11 // pred_check
          %p752 = pneg %p467
        $region74: #{tpu_custom_call.1} parent=11 // pred_check_branch
          %754 = sbr.rel (%p752) target = $region76
        $region75: #{tpu_custom_call.1} parent=11 // pred_region
          _
        $region76: #{tpu_custom_call.1} parent=11 // pred_fallthru
          _
        // Predicated region
        $region77: #{tpu_custom_call.1} parent=11 // pred_check
          %p755 = pneg %p488
        $region78: #{tpu_custom_call.1} parent=11 // pred_check_branch
          %757 = sbr.rel (%p755) target = $region80
        $region79: #{tpu_custom_call.1} parent=11 // pred_region
          _
        $region80: #{tpu_custom_call.1} parent=11 // pred_fallthru
          _
        // Predicated region
        $region81: #{tpu_custom_call.1} parent=11 // pred_check
          %p758 = pneg %p509
        $region82: #{tpu_custom_call.1} parent=11 // pred_check_branch
          %760 = sbr.rel (%p758) target = $region84
        $region83: #{tpu_custom_call.1} parent=11 // pred_region
          _
        $region84: #{tpu_custom_call.1} parent=11 // pred_fallthru
          _
        // Predicated region
        $region85: #{tpu_custom_call.1} parent=11 // pred_check
          %p761 = pneg %p530
        $region86: #{tpu_custom_call.1} parent=11 // pred_check_branch
          %763 = sbr.rel (%p761) target = $region88
        $region87: #{tpu_custom_call.1} parent=11 // pred_region
          _
        $region88: #{tpu_custom_call.1} parent=11 // pred_fallthru
          _
        // Predicated region
        $region89: #{tpu_custom_call.1} parent=11 // pred_check
          %p764 = pneg %p551
        $region90: #{tpu_custom_call.1} parent=11 // pred_check_branch
          %766 = sbr.rel (%p764) target = $region92
        $region91: #{tpu_custom_call.1} parent=11 // pred_region
          _
        $region92: #{tpu_custom_call.1} parent=11 // pred_fallthru
          _
        // Predicated region
        $region93: #{tpu_custom_call.1} parent=11 // pred_check
          %p767 = pneg %p572
        $region94: #{tpu_custom_call.1} parent=11 // pred_check_branch
          %769 = sbr.rel (%p767) target = $region96
        $region95: #{tpu_custom_call.1} parent=11 // pred_region
          _
        $region96: #{tpu_custom_call.1} parent=11 // pred_fallthru
          _
        // Predicated region
        $region97: #{tpu_custom_call.1} parent=11 // pred_check
          %p770 = pneg %p593
        $region98: #{tpu_custom_call.1} parent=11 // pred_check_branch
          %772 = sbr.rel (%p770) target = $region100
        $region99: #{tpu_custom_call.1} parent=11 // pred_region
          _
        $region100: #{tpu_custom_call.1} parent=11 // pred_fallthru
          _
        // Predicated region
        $region101: #{tpu_custom_call.1} parent=11 // pred_check
          %p773 = pneg %p614
        $region102: #{tpu_custom_call.1} parent=11 // pred_check_branch
          %775 = sbr.rel (%p773) target = $region104
        $region103: #{tpu_custom_call.1} parent=11 // pred_region
          _
        $region104: #{tpu_custom_call.1} parent=11 // pred_fallthru
          _
        // Predicated region
        $region105: #{tpu_custom_call.1} parent=11 // pred_check
          %p776 = pneg %p635
        $region106: #{tpu_custom_call.1} parent=11 // pred_check_branch
          %778 = sbr.rel (%p776) target = $region108
        $region107: #{tpu_custom_call.1} parent=11 // pred_region
          _
        $region108: #{tpu_custom_call.1} parent=11 // pred_fallthru
          _
        // Predicated region
        $region109: #{tpu_custom_call.1} parent=11 // pred_check
          %p779 = pneg %p656
        $region110: #{tpu_custom_call.1} parent=11 // pred_check_branch
          %781 = sbr.rel (%p779) target = $region112
        $region111: #{tpu_custom_call.1} parent=11 // pred_region
          _
        $region112: #{tpu_custom_call.1} parent=11 // pred_fallthru
          _
      $region12: #{tpu_custom_call.1} parent=5 // pred_fallthru
        _
      %p782 = scmp.lt.s32.totalorder %s41, 2
      // Predicated region
      $region113: #{tpu_custom_call.1} parent=5 // pred_check
        %p783 = pneg %p782
      $region114: #{tpu_custom_call.1} parent=5 // pred_check_branch
        %785 = sbr.rel (%p783) target = $region116
      $region115: #{tpu_custom_call.1} parent=5 // pred_region
        // Predicated region
        $region117: #{tpu_custom_call.1} parent=115 // pred_check
          %p786 = pneg %p73
        $region118: #{tpu_custom_call.1} parent=115 // pred_check_branch
          %788 = sbr.rel (%p786) target = $region120
        $region119: #{tpu_custom_call.1} parent=115 // pred_region
          %p789 = scmp.lt.s32.totalorder %s48, 1
          %s790 = scalar_select %p789, %s48, 1
          %s791 = smul.addr %s790, 8
          %s792 = scalar_lea.vmem %s0, %s791
        $region120: #{tpu_custom_call.1} parent=115 // pred_fallthru
          _
        // Predicated region
        $region121: #{tpu_custom_call.1} parent=115 // pred_check
          %p793 = pneg %p99
        $region122: #{tpu_custom_call.1} parent=115 // pred_check_branch
          %795 = sbr.rel (%p793) target = $region124
        $region123: #{tpu_custom_call.1} parent=115 // pred_region
          %s796 = sand.u32 %s89, 1
          %s797 = scalar_lea.sflag [#allocation7], %s796
          %s798 = sand.u32 %s89, 1
          %s799 = scalar_lea.vmem [#allocation6], %s798
          %s801 = ssub.s32 16, 16
          %802 = vsyncadd %s797, %s801
          %s803 = smul.addr %s48, 16
          %s804 = scalar_lea.hbm %s1, %s803
          %s806 = sshll.u32 %s799, 4
          %s807 = int_to_ptr.vmem [resolvable:$true] %s806
          %809 = dma.hbm_to_vmem [thread:$0]  %s804, 16, %s807, %s797
        $region124: #{tpu_custom_call.1} parent=115 // pred_fallthru
          _
        // Predicated region
        $region125: #{tpu_custom_call.1} parent=115 // pred_check
          %p810 = pneg %p125
        $region126: #{tpu_custom_call.1} parent=115 // pred_check_branch
          %812 = sbr.rel (%p810) target = $region128
        $region127: #{tpu_custom_call.1} parent=115 // pred_region
          %p813 = scmp.lt.s32.totalorder %s48, 1
          %s814 = scalar_select %p813, %s48, 1
          %s815 = smul.addr %s814, 8
          %s816 = scalar_lea.vmem %s2, %s815
        $region128: #{tpu_custom_call.1} parent=115 // pred_fallthru
          _
      $region116: #{tpu_custom_call.1} parent=5 // pred_fallthru
        _
      %p817 = scmp.le.s32.totalorder 1, %s41
      %p818 = scmp.lt.s32.totalorder %s41, 3
      %p819 = pnand %p817, %p818
      %p820 = pneg %p819
      // Predicated region
      $region129: #{tpu_custom_call.1} parent=5 // pred_check
        _
      $region130: #{tpu_custom_call.1} parent=5 // pred_check_branch
        %822 = sbr.rel (%p819) target = $region132
      $region131: #{tpu_custom_call.1} parent=5 // pred_region
        %s823 = ssub.s32 %s41, 1
        %s824 = sand.u32 %s92, 1
        %s825 = scalar_lea.sflag [#allocation7], %s824
        %s826 = sand.u32 %s92, 1
        %s827 = scalar_lea.vmem [#allocation6], %s826
        // Predicated region
        $region133: #{tpu_custom_call.1} parent=131 // pred_check
          %p828 = pneg %p105
        $region134: #{tpu_custom_call.1} parent=131 // pred_check_branch
          %830 = sbr.rel (%p828) target = $region136
        $region135: #{tpu_custom_call.1} parent=131 // pred_region
          %831 = dma.done %s825, 16
        $region136: #{tpu_custom_call.1} parent=131 // pred_fallthru
          _
        // Predicated region
        $region137: #{tpu_custom_call.1} parent=131 // pred_check
          %p832 = pneg %p194
        $region138: #{tpu_custom_call.1} parent=131 // pred_check_branch
          %834 = sbr.rel (%p832) target = $region140
        $region139: #{tpu_custom_call.1} parent=131 // pred_region
          %835 = dma.done [#allocation10], 128
        $region140: #{tpu_custom_call.1} parent=131 // pred_fallthru
          _
        %p836 = scmp.lt.s32.totalorder %s50, 1
        %s837 = scalar_select %p836, %s50, 1
        %s838 = smul.addr %s837, 8
        %s839 = scalar_lea.vmem %s0, %s838
        %p840 = pneg %p79
        %p841 = pneg %p76
        %s842 = sand.u32 %s92, 1
        %s843 = scalar_lea.sflag [#allocation7], %s842
        %s844 = sand.u32 %s92, 1
        %s845 = scalar_lea.vmem [#allocation6], %s844
        %p846 = pneg %p105
        %p847 = pneg %p102
        %p848 = scmp.lt.s32.totalorder %s50, 1
        %s849 = scalar_select %p848, %s50, 1
        %s850 = smul.addr %s849, 8
        %s851 = scalar_lea.vmem %s2, %s850
        %p852 = pneg %p131
        %p853 = pneg %p128
        %p854 = pneg %p152
        %p855 = pneg %p149
        %p856 = pneg %p173
        %p857 = pneg %p170
        %p858 = pneg %p194
        %p859 = pneg %p191
        %p860 = pneg %p215
        %p861 = pneg %p212
        %p862 = pneg %p236
        %p863 = pneg %p233
        %p864 = pneg %p257
        %p865 = pneg %p254
        %p866 = pneg %p278
        %p867 = pneg %p275
        %p868 = pneg %p299
        %p869 = pneg %p296
        %p870 = pneg %p320
        %p871 = pneg %p317
        %p872 = pneg %p341
        %p873 = pneg %p338
        %p874 = pneg %p362
        %p875 = pneg %p359
        %p876 = pneg %p383
        %p877 = pneg %p380
        %p878 = pneg %p404
        %p879 = pneg %p401
        %p880 = pneg %p425
        %p881 = pneg %p422
        %p882 = pneg %p446
        %p883 = pneg %p443
        %p884 = pneg %p467
        %p885 = pneg %p464
        %p886 = pneg %p488
        %p887 = pneg %p485
        %p888 = pneg %p509
        %p889 = pneg %p506
        %p890 = pneg %p530
        %p891 = pneg %p527
        %p892 = pneg %p551
        %p893 = pneg %p548
        %p894 = pneg %p572
        %p895 = pneg %p569
        %p896 = pneg %p593
        %p897 = pneg %p590
        %p898 = pneg %p614
        %p899 = pneg %p611
        %p900 = pneg %p635
        %p901 = pneg %p632
        %p902 = pneg %p656
        %p903 = pneg %p653
        %p904 = pneg %p684
        %p905 = pneg %p681
        %s906 = sand.u32 %s671, 1
        %s907 = scalar_lea.sflag [#allocation8], %s906
        %s908 = sand.u32 %s671, 1
        %s909 = smul.addr %s908, 8
        %s910 = scalar_lea.vmem [#allocation11], %s909
        %p911 = scmp.lt.s32.totalorder %s50, 1
        %s912 = scalar_select %p911, %s50, 1
        %s913 = smul.addr %s912, 8
        %s914 = scalar_lea.vmem %s0, %s913
        %p915 = scmp.lt.s32.totalorder %s50, 1
        %s916 = scalar_select %p915, %s50, 1
        %s917 = smul.addr %s916, 8
        %s918 = scalar_lea.vmem %s2, %s917
        %v920 = vld [vmem:[%s827] sm:$0x1]
        %v921 = vxor.u32 %v920, 2147483648
        %v922 = vmul.f32 %v921, 1.442695
        %v923 = vpow.pop %v922
        %v924 = vadd.f32 %v923, 1.0
        %v925 = vrcp.pop %v924
        %v926 = vmul.f32 1.0, %v925
        %v927 = vmul.f32 %v920, %v926
        %v928 = vpack.c.bf16 %v927, %v927
        %v929 = vld [vmem:[%s6] sm:$0xff]
        %v930 = vld [vmem:[%s6 + $0x8] sm:$0xf]
        %v931 = vld [vmem:[%s6 + $0xc] sm:$0xff]
        %v932 = vld [vmem:[%s6 + $0x14] sm:$0xf]
        %v933 = vld [vmem:[%s6 + $0x18] sm:$0xff]
        %v934 = vld [vmem:[%s6 + $0x20] sm:$0xf]
        %v935 = vld [vmem:[%s6 + $0x24] sm:$0xff]
        %v936 = vld [vmem:[%s6 + $0x2c] sm:$0xf]
        %v937 = vld [vmem:[%s7] sm:$0x7]
        %v946 = vunpack.c.l.b16 %v929
        %v947 = vunpack.c.h.b16 %v929
        %v948 = vunpack.c.l.b16 %v930
        %v949 = vunpack.c.l.b16 %v931
        %v950 = vunpack.c.h.b16 %v931
        %v951 = vunpack.c.l.b16 %v932
        %v952 = vunpack.c.l.b16 %v933
        %v953 = vunpack.c.h.b16 %v933
        %v954 = vunpack.c.l.b16 %v934
        %v955 = vunpack.c.l.b16 %v935
        %v956 = vunpack.c.h.b16 %v935
        %v957 = vunpack.c.l.b16 %v936
        %v958 = vpack.c.b16 %v949, %v946
        %v959 = vpack.c.b16 %v950, %v947
        %v960 = vpack.c.b16 %v951, %v948
        %v961 = vpack.c.b16 %v955, %v952
        %v962 = vpack.c.b16 %v956, %v953
        %v963 = vpack.c.b16 %v957, %v954
        %v971 = vlaneseq
        %v972 = vshrl.u32 %v971, 7
        %v973 = vsub.s32 0, %v972
        %v974 = vrot.slane %v937, %v973
        %v975 = vlaneseq
        %v976 = vshrl.u32 %v975, 7
        %v977 = vsub.s32 1, %v976
        %v978 = vrot.slane %v937, %v977
        %v979 = vlaneseq
        %v980 = vshrl.u32 %v979, 7
        %v981 = vsub.s32 2, %v980
        %v982 = vrot.slane %v937, %v981
        %vm986 = vcmask 261120
        %v988 = vsel %vm986, %v928, 0
        %990 = vmatprep.subr.bf16.mxu0 0
        %991 = vmatpush1.bf16.msra.mxu0 0
        %992 = vmatprep.subr.bf16.mxu0 0
        %993 = vmatpush1.bf16.msra.mxu0 0
        %994 = vmatprep.subr.bf16.mxu0 0
        %995 = vmatpush1.bf16.msra.mxu0 0
        %996 = vmatprep.subr.bf16.mxu0 0
        %997 = vmatpush1.bf16.msra.mxu0 0
        %998 = vmatprep.subr.bf16.mxu0 0
        %999 = vmatpush1.bf16.msra.mxu0 0
        %1000 = vmatprep.subr.bf16.mxu0 0
        %1001 = vmatpush1.bf16.msra.mxu0 0
        %1002 = vmatprep.subr.bf16.mxu0 %v962
        %1003 = vmatpush1.bf16.msra.mxu0 %v961
        %1004 = vmatprep.subr.bf16.mxu0 %v959
        %1005 = vmatpush1.bf16.msra.mxu0 %v958
        %1006 = vmatprep.subr.bf16.mxu0 0
        %1007 = vmatpush2.bf16.msra.mxu0 0
        %1008 = vmatprep.subr.bf16.mxu0 0
        %1009 = vmatpush2.bf16.msra.mxu0 0
        %1010 = vmatprep.subr.bf16.mxu0 0
        %1011 = vmatpush2.bf16.msra.mxu0 0
        %1012 = vmatprep.subr.bf16.mxu0 0
        %1013 = vmatpush2.bf16.msra.mxu0 0
        %1014 = vmatprep.subr.bf16.mxu0 0
        %1015 = vmatpush2.bf16.msra.mxu0 0
        %1016 = vmatprep.subr.bf16.mxu0 0
        %1017 = vmatpush2.bf16.msra.mxu0 0
        %1018 = vmatprep.subr.bf16.mxu0 0
        %1019 = vmatpush2.bf16.msra.mxu0 0
        %1020 = vmatprep.subr.bf16.mxu0 0
        %1021 = vmatpush2.bf16.msra.mxu0 0
        %1022 = vmatprep.mubr.bf16.mxu0 0
        %1023 = vmatmul.mubr.bf16.gmra.mxu0 %v988
        %v1024 = vpop.f32.mrf.mxu0
        %v1025 = vadd.f32 %v974, %v1024
        %v1026 = vpop.f32.mrf.mxu0
        %v1027 = vadd.f32 %v978, %v1026
        %v1028 = vpop.f32.mrf.mxu0
        %v1029 = vpop.f32.mrf.mxu0
        %1030 = vdwg.mxu0
        %1031 = vmatprep.subr.bf16.mxu0 0
        %1032 = vmatpush1.bf16.msra.mxu0 0
        %1033 = vmatprep.subr.bf16.mxu0 0
        %1034 = vmatpush1.bf16.msra.mxu0 0
        %1035 = vmatprep.subr.bf16.mxu0 0
        %1036 = vmatpush1.bf16.msra.mxu0 0
        %1037 = vmatprep.subr.bf16.mxu0 0
        %1038 = vmatpush1.bf16.msra.mxu0 0
        %1039 = vmatprep.subr.bf16.mxu0 0
        %1040 = vmatpush1.bf16.msra.mxu0 0
        %1041 = vmatprep.subr.bf16.mxu0 0
        %1042 = vmatpush1.bf16.msra.mxu0 0
        %1043 = vmatprep.subr.bf16.mxu0 0
        %1044 = vmatpush1.bf16.msra.mxu0 %v963
        %1045 = vmatprep.subr.bf16.mxu0 0
        %1046 = vmatpush1.bf16.msra.mxu0 %v960
        %1047 = vmatprep.subr.bf16.mxu0 0
        %1048 = vmatpush2.bf16.msra.mxu0 0
        %1049 = vmatprep.subr.bf16.mxu0 0
        %1050 = vmatpush2.bf16.msra.mxu0 0
        %1051 = vmatprep.subr.bf16.mxu0 0
        %1052 = vmatpush2.bf16.msra.mxu0 0
        %1053 = vmatprep.subr.bf16.mxu0 0
        %1054 = vmatpush2.bf16.msra.mxu0 0
        %1055 = vmatprep.subr.bf16.mxu0 0
        %1056 = vmatpush2.bf16.msra.mxu0 0
        %1057 = vmatprep.subr.bf16.mxu0 0
        %1058 = vmatpush2.bf16.msra.mxu0 0
        %1059 = vmatprep.subr.bf16.mxu0 0
        %1060 = vmatpush2.bf16.msra.mxu0 0
        %1061 = vmatprep.subr.bf16.mxu0 0
        %1062 = vmatpush2.bf16.msra.mxu0 0
        %1063 = vmatprep.mubr.bf16.mxu0 0
        %1064 = vmatmul.mubr.bf16.gmra.mxu0 %v988
        %v1065 = vpop.f32.mrf.mxu0
        %v1066 = vadd.f32 %v982, %v1065
        %v1067 = vpop.f32.mrf.mxu0
        %v1068 = vpop.f32.mrf.mxu0
        %v1069 = vpop.f32.mrf.mxu0
        %1070 = vdwg.mxu0
        %p1071 = scmp.eq.s32.totalorder %s51, 0
        // Predicated region
        $region141: #{tpu_custom_call.1} parent=131 // pred_check
          %p1072 = pneg %p1071
        $region142: #{tpu_custom_call.1} parent=131 // pred_check_branch
          %1074 = sbr.rel (%p1072) target = $region144
        $region143: #{tpu_custom_call.1} parent=131 // pred_region
          %v1075 = vld [vmem:[%s914] sm:$0xff]
          %v1076 = vsel %vm986, %v1075, 0.0
          %1077 = vadd.xlane.f32.xlu0 %v1076
          %v1078 = vpop.xlane.xlu0 %1077
          %v1079 = vrcp.pop 32.0
          %v1080 = vmul.f32 %v1078, %v1079
          %v1081 = vsub.f32 %v1075, %v1080
          %v1082 = vmul.f32 %v1081, %v1081
          %v1083 = vsel %vm986, %v1082, 0.0
          %1084 = vadd.xlane.f32.xlu0 %v1083
          %v1085 = vpop.xlane.xlu0 %1084
          %v1086 = vmul.f32 %v1085, %v1079
          %v1087 = vadd.f32 %v1086, 1e-06
          %v1088 = vrsqrt.pop %v1087
          %v1089 = vmul.f32 %v1081, %v1088
          %v1090 = vadd.f32 %v1025, 1.0
          %v1091 = vlaneseq
          %v1092 = vshrl.u32 %v1091, 7
          %v1093 = vsub.s32 0, %v1092
          %v1094 = vrot.slane %v1090, %v1093
          %1096 = vrot.lane.b32.xlu0 %v1094, 96
          %v1097 = vpop.permute.xlu0 %1096
          %v1099 = vmul.f32 %v1089, %v1097
          %v1100 = vlaneseq
          %v1101 = vshrl.u32 %v1100, 7
          %v1102 = vsub.s32 0, %v1101
          %v1103 = vrot.slane %v1025, %v1102
          %v1104 = vadd.f32 %v1099, %v1103
          %v1105 = vpack.c.bf16 %v1104, %v1104
          %v1106 = vld [vmem:[%s10] sm:$0xf]
          %v1107 = vld [vmem:[%s10 + $0x4] sm:$0xf]
          %v1108 = vld [vmem:[%s10 + $0x8] sm:$0xf]
          %v1109 = vld [vmem:[%s10 + $0xc] sm:$0xf]
          %v1110 = vld [vmem:[%s11] sm:$0x1]
          %v1112 = vlaneseq
          %v1113 = vshrl.u32 %v1112, 7
          %v1114 = vsub.s32 0, %v1113
          %v1115 = vrot.slane %v1110, %v1114
          %v1121 = vunpack.c.l.b16 %v1106
          %v1122 = vunpack.c.l.b16 %v1107
          %v1123 = vunpack.c.l.b16 %v1108
          %v1124 = vunpack.c.l.b16 %v1109
          %v1125 = vpack.c.b16 %v1122, %v1121
          %v1126 = vpack.c.b16 %v1124, %v1123
          %v1130 = vsel %vm986, %v1105, 0
          %1132 = vmatprep.subr.bf16.mxu0 0
          %1133 = vmatpush1.bf16.msra.mxu0 0
          %1134 = vmatprep.subr.bf16.mxu0 0
          %1135 = vmatpush1.bf16.msra.mxu0 0
          %1136 = vmatprep.subr.bf16.mxu0 0
          %1137 = vmatpush1.bf16.msra.mxu0 0
          %1138 = vmatprep.subr.bf16.mxu0 0
          %1139 = vmatpush1.bf16.msra.mxu0 0
          %1140 = vmatprep.subr.bf16.mxu0 0
          %1141 = vmatpush1.bf16.msra.mxu0 0
          %1142 = vmatprep.subr.bf16.mxu0 0
          %1143 = vmatpush1.bf16.msra.mxu0 0
          %1144 = vmatprep.subr.bf16.mxu0 0
          %1145 = vmatpush1.bf16.msra.mxu0 %v1126
          %1146 = vmatprep.subr.bf16.mxu0 0
          %1147 = vmatpush1.bf16.msra.mxu0 %v1125
          %1148 = vmatprep.subr.bf16.mxu0 0
          %1149 = vmatpush2.bf16.msra.mxu0 0
          %1150 = vmatprep.subr.bf16.mxu0 0
          %1151 = vmatpush2.bf16.msra.mxu0 0
          %1152 = vmatprep.subr.bf16.mxu0 0
          %1153 = vmatpush2.bf16.msra.mxu0 0
          %1154 = vmatprep.subr.bf16.mxu0 0
          %1155 = vmatpush2.bf16.msra.mxu0 0
          %1156 = vmatprep.subr.bf16.mxu0 0
          %1157 = vmatpush2.bf16.msra.mxu0 0
          %1158 = vmatprep.subr.bf16.mxu0 0
          %1159 = vmatpush2.bf16.msra.mxu0 0
          %1160 = vmatprep.subr.bf16.mxu0 0
          %1161 = vmatpush2.bf16.msra.mxu0 0
          %1162 = vmatprep.subr.bf16.mxu0 0
          %1163 = vmatpush2.bf16.msra.mxu0 0
          %1164 = vmatprep.mubr.bf16.mxu0 0
          %1165 = vmatmul.mubr.bf16.gmra.mxu0 %v1130
          %v1166 = vpop.f32.mrf.mxu0
          %v1167 = vadd.f32 %v1115, %v1166
          %v1168 = vpop.f32.mrf.mxu0
          %v1169 = vpop.f32.mrf.mxu0
          %v1170 = vpop.f32.mrf.mxu0
          %1171 = vdwg.mxu0
          %v1172 = vld [vmem:[%s12] sm:$0xf]
          %v1173 = vld [vmem:[%s12 + $0x4] sm:$0xf]
          %v1174 = vld [vmem:[%s12 + $0x8] sm:$0xf]
          %v1175 = vld [vmem:[%s12 + $0xc] sm:$0xf]
          %v1176 = vld [vmem:[%s13] sm:$0x1]
          %v1178 = vlaneseq
          %v1179 = vshrl.u32 %v1178, 7
          %v1180 = vsub.s32 0, %v1179
          %v1181 = vrot.slane %v1176, %v1180
          %v1187 = vunpack.c.l.b16 %v1172
          %v1188 = vunpack.c.l.b16 %v1173
          %v1189 = vunpack.c.l.b16 %v1174
          %v1190 = vunpack.c.l.b16 %v1175
          %v1191 = vpack.c.b16 %v1188, %v1187
          %v1192 = vpack.c.b16 %v1190, %v1189
          %1195 = vmatprep.subr.bf16.mxu0 0
          %1196 = vmatpush1.bf16.msra.mxu0 0
          %1197 = vmatprep.subr.bf16.mxu0 0
          %1198 = vmatpush1.bf16.msra.mxu0 0
          %1199 = vmatprep.subr.bf16.mxu0 0
          %1200 = vmatpush1.bf16.msra.mxu0 0
          %1201 = vmatprep.subr.bf16.mxu0 0
          %1202 = vmatpush1.bf16.msra.mxu0 0
          %1203 = vmatprep.subr.bf16.mxu0 0
          %1204 = vmatpush1.bf16.msra.mxu0 0
          %1205 = vmatprep.subr.bf16.mxu0 0
          %1206 = vmatpush1.bf16.msra.mxu0 0
          %1207 = vmatprep.subr.bf16.mxu0 0
          %1208 = vmatpush1.bf16.msra.mxu0 %v1192
          %1209 = vmatprep.subr.bf16.mxu0 0
          %1210 = vmatpush1.bf16.msra.mxu0 %v1191
          %1211 = vmatprep.subr.bf16.mxu0 0
          %1212 = vmatpush2.bf16.msra.mxu0 0
          %1213 = vmatprep.subr.bf16.mxu0 0
          %1214 = vmatpush2.bf16.msra.mxu0 0
          %1215 = vmatprep.subr.bf16.mxu0 0
          %1216 = vmatpush2.bf16.msra.mxu0 0
          %1217 = vmatprep.subr.bf16.mxu0 0
          %1218 = vmatpush2.bf16.msra.mxu0 0
          %1219 = vmatprep.subr.bf16.mxu0 0
          %1220 = vmatpush2.bf16.msra.mxu0 0
          %1221 = vmatprep.subr.bf16.mxu0 0
          %1222 = vmatpush2.bf16.msra.mxu0 0
          %1223 = vmatprep.subr.bf16.mxu0 0
          %1224 = vmatpush2.bf16.msra.mxu0 0
          %1225 = vmatprep.subr.bf16.mxu0 0
          %1226 = vmatpush2.bf16.msra.mxu0 0
          %1227 = vmatprep.mubr.bf16.mxu0 0
          %1228 = vmatmul.mubr.bf16.gmra.mxu0 %v1130
          %v1229 = vpop.f32.mrf.mxu0
          %v1230 = vadd.f32 %v1181, %v1229
          %v1231 = vpop.f32.mrf.mxu0
          %v1232 = vpop.f32.mrf.mxu0
          %v1233 = vpop.f32.mrf.mxu0
          %1234 = vdwg.mxu0
          %v1235 = vld [vmem:[%s3] sm:$0xff]
          %1237 = vrot.lane.b32.xlu0 %v1235, 64
          %v1238 = vpop.permute.xlu0 %1237
          %vm1240 = vcmask 523264
          %v1241 = vsel %vm1240, %v1235, %v1238
          %v1242 = vld [vmem:[%s4] sm:$0xff]
          %1244 = vrot.lane.b32.xlu0 %v1242, 64
          %v1245 = vpop.permute.xlu0 %1244
          %v1247 = vsel %vm1240, %v1242, %v1245
          %v1248 = vld [vmem:[#allocation9] sm:$0xff]
          %1250 = vrot.lane.b32.xlu0 %v1248, 64
          %v1251 = vpop.permute.xlu0 %1250
          %v1253 = vsel %vm1240, %v1248, %v1251
          %v1254 = vmul.f32 %v1167, %v1241
          %1255 = vrot.lane.b32.xlu0 %v1167, 32
          %v1256 = vpop.permute.xlu0 %1255
          %v1257 = vmul.f32 %v1256, %v1247
          %v1258 = vadd.f32 %v1254, %v1257
          %1259 = vrot.lane.b32.xlu0 %v1167, 96
          %v1260 = vpop.permute.xlu0 %1259
          %v1261 = vmul.f32 %v1260, %v1253
          %v1262 = vadd.f32 %v1258, %v1261
          %v1263 = vpack.c.bf16 %v1262, %v1262
          %1265 = vrot.lane.b32.xlu0 %v1263, 64
          %v1266 = vpop.permute.xlu0 %1265
          %vm1268 = vcmask 519168
          %1269 = vst.msk [vmem:[#allocation2] sm:$0xf] %vm1268, %v1263
          %1270 = vst.msk [vmem:[#allocation2 + $0x4] sm:$0xf] %vm1268, %v1266
          %v1271 = vpack.c.bf16 %v1230, %v1230
          %1273 = vrot.lane.b32.xlu0 %v1271, 64
          %v1274 = vpop.permute.xlu0 %1273
          %1276 = vst.msk [vmem:[#allocation3] sm:$0xf] %vm1268, %v1271
          %1277 = vst.msk [vmem:[#allocation3 + $0x4] sm:$0xf] %vm1268, %v1274
          %v1278 = vld [vmem:[%s918] sm:$0xff]
          %v1279 = vsel %vm986, %v1278, 0.0
          %1280 = vadd.xlane.f32.xlu0 %v1279
          %v1281 = vpop.xlane.xlu0 %1280
          %v1282 = vmul.f32 %v1281, %v1079
          %v1283 = vsub.f32 %v1278, %v1282
          %v1284 = vmul.f32 %v1283, %v1283
          %v1285 = vsel %vm986, %v1284, 0.0
          %1286 = vadd.xlane.f32.xlu0 %v1285
          %v1287 = vpop.xlane.xlu0 %1286
          %v1288 = vmul.f32 %v1287, %v1079
          %v1289 = vadd.f32 %v1288, 1e-06
          %v1290 = vrsqrt.pop %v1289
          %v1291 = vmul.f32 %v1283, %v1290
          %v1292 = vpack.c.bf16 %v1291, %v1291
          %v1293 = vld [vmem:[%s18] sm:$0xf]
          %v1294 = vld [vmem:[%s18 + $0x4] sm:$0xf]
          %v1295 = vld [vmem:[%s18 + $0x8] sm:$0xf]
          %v1296 = vld [vmem:[%s18 + $0xc] sm:$0xf]
          %v1297 = vld [vmem:[%s19] sm:$0x1]
          %v1299 = vlaneseq
          %v1300 = vshrl.u32 %v1299, 7
          %v1301 = vsub.s32 0, %v1300
          %v1302 = vrot.slane %v1297, %v1301
          %v1308 = vunpack.c.l.b16 %v1293
          %v1309 = vunpack.c.l.b16 %v1294
          %v1310 = vunpack.c.l.b16 %v1295
          %v1311 = vunpack.c.l.b16 %v1296
          %v1312 = vpack.c.b16 %v1309, %v1308
          %v1313 = vpack.c.b16 %v1311, %v1310
          %v1317 = vsel %vm986, %v1292, 0
          %1319 = vmatprep.subr.bf16.mxu0 0
          %1320 = vmatpush1.bf16.msra.mxu0 0
          %1321 = vmatprep.subr.bf16.mxu0 0
          %1322 = vmatpush1.bf16.msra.mxu0 0
          %1323 = vmatprep.subr.bf16.mxu0 0
          %1324 = vmatpush1.bf16.msra.mxu0 0
          %1325 = vmatprep.subr.bf16.mxu0 0
          %1326 = vmatpush1.bf16.msra.mxu0 0
          %1327 = vmatprep.subr.bf16.mxu0 0
          %1328 = vmatpush1.bf16.msra.mxu0 0
          %1329 = vmatprep.subr.bf16.mxu0 0
          %1330 = vmatpush1.bf16.msra.mxu0 0
          %1331 = vmatprep.subr.bf16.mxu0 0
          %1332 = vmatpush1.bf16.msra.mxu0 %v1313
          %1333 = vmatprep.subr.bf16.mxu0 0
          %1334 = vmatpush1.bf16.msra.mxu0 %v1312
          %1335 = vmatprep.subr.bf16.mxu0 0
          %1336 = vmatpush2.bf16.msra.mxu0 0
          %1337 = vmatprep.subr.bf16.mxu0 0
          %1338 = vmatpush2.bf16.msra.mxu0 0
          %1339 = vmatprep.subr.bf16.mxu0 0
          %1340 = vmatpush2.bf16.msra.mxu0 0
          %1341 = vmatprep.subr.bf16.mxu0 0
          %1342 = vmatpush2.bf16.msra.mxu0 0
          %1343 = vmatprep.subr.bf16.mxu0 0
          %1344 = vmatpush2.bf16.msra.mxu0 0
          %1345 = vmatprep.subr.bf16.mxu0 0
          %1346 = vmatpush2.bf16.msra.mxu0 0
          %1347 = vmatprep.subr.bf16.mxu0 0
          %1348 = vmatpush2.bf16.msra.mxu0 0
          %1349 = vmatprep.subr.bf16.mxu0 0
          %1350 = vmatpush2.bf16.msra.mxu0 0
          %1351 = vmatprep.mubr.bf16.mxu0 0
          %1352 = vmatmul.mubr.bf16.gmra.mxu0 %v1317
          %v1353 = vpop.f32.mrf.mxu0
          %v1354 = vadd.f32 %v1302, %v1353
          %v1355 = vpop.f32.mrf.mxu0
          %v1356 = vpop.f32.mrf.mxu0
          %v1357 = vpop.f32.mrf.mxu0
          %1358 = vdwg.mxu0
          %v1359 = vld [vmem:[%s20] sm:$0xf]
          %v1360 = vld [vmem:[%s20 + $0x4] sm:$0xf]
          %v1361 = vld [vmem:[%s20 + $0x8] sm:$0xf]
          %v1362 = vld [vmem:[%s20 + $0xc] sm:$0xf]
          %v1363 = vld [vmem:[%s21] sm:$0x1]
          %v1365 = vlaneseq
          %v1366 = vshrl.u32 %v1365, 7
          %v1367 = vsub.s32 0, %v1366
          %v1368 = vrot.slane %v1363, %v1367
          %v1374 = vunpack.c.l.b16 %v1359
          %v1375 = vunpack.c.l.b16 %v1360
          %v1376 = vunpack.c.l.b16 %v1361
          %v1377 = vunpack.c.l.b16 %v1362
          %v1378 = vpack.c.b16 %v1375, %v1374
          %v1379 = vpack.c.b16 %v1377, %v1376
          %1382 = vmatprep.subr.bf16.mxu0 0
          %1383 = vmatpush1.bf16.msra.mxu0 0
          %1384 = vmatprep.subr.bf16.mxu0 0
          %1385 = vmatpush1.bf16.msra.mxu0 0
          %1386 = vmatprep.subr.bf16.mxu0 0
          %1387 = vmatpush1.bf16.msra.mxu0 0
          %1388 = vmatprep.subr.bf16.mxu0 0
          %1389 = vmatpush1.bf16.msra.mxu0 0
          %1390 = vmatprep.subr.bf16.mxu0 0
          %1391 = vmatpush1.bf16.msra.mxu0 0
          %1392 = vmatprep.subr.bf16.mxu0 0
          %1393 = vmatpush1.bf16.msra.mxu0 0
          %1394 = vmatprep.subr.bf16.mxu0 0
          %1395 = vmatpush1.bf16.msra.mxu0 %v1379
          %1396 = vmatprep.subr.bf16.mxu0 0
          %1397 = vmatpush1.bf16.msra.mxu0 %v1378
          %1398 = vmatprep.subr.bf16.mxu0 0
          %1399 = vmatpush2.bf16.msra.mxu0 0
          %1400 = vmatprep.subr.bf16.mxu0 0
          %1401 = vmatpush2.bf16.msra.mxu0 0
          %1402 = vmatprep.subr.bf16.mxu0 0
          %1403 = vmatpush2.bf16.msra.mxu0 0
          %1404 = vmatprep.subr.bf16.mxu0 0
          %1405 = vmatpush2.bf16.msra.mxu0 0
          %1406 = vmatprep.subr.bf16.mxu0 0
          %1407 = vmatpush2.bf16.msra.mxu0 0
          %1408 = vmatprep.subr.bf16.mxu0 0
          %1409 = vmatpush2.bf16.msra.mxu0 0
          %1410 = vmatprep.subr.bf16.mxu0 0
          %1411 = vmatpush2.bf16.msra.mxu0 0
          %1412 = vmatprep.subr.bf16.mxu0 0
          %1413 = vmatpush2.bf16.msra.mxu0 0
          %1414 = vmatprep.mubr.bf16.mxu0 0
          %1415 = vmatmul.mubr.bf16.gmra.mxu0 %v1317
          %v1416 = vpop.f32.mrf.mxu0
          %v1417 = vadd.f32 %v1368, %v1416
          %v1418 = vpop.f32.mrf.mxu0
          %v1419 = vpop.f32.mrf.mxu0
          %v1420 = vpop.f32.mrf.mxu0
          %1421 = vdwg.mxu0
          %v1422 = vpack.c.bf16 %v1354, %v1354
          %1424 = vrot.lane.b32.xlu0 %v1422, 64
          %v1425 = vpop.permute.xlu0 %1424
          %1427 = vst.msk [vmem:[#allocation4] sm:$0xf] %vm1268, %v1422
          %1428 = vst.msk [vmem:[#allocation4 + $0x4] sm:$0xf] %vm1268, %v1425
          %v1429 = vpack.c.bf16 %v1417, %v1417
          %1431 = vrot.lane.b32.xlu0 %v1429, 64
          %v1432 = vpop.permute.xlu0 %1431
          %1434 = vst.msk [vmem:[#allocation5] sm:$0xf] %vm1268, %v1429
          %1435 = vst.msk [vmem:[#allocation5 + $0x4] sm:$0xf] %vm1268, %v1432
        $region144: #{tpu_custom_call.1} parent=131 // pred_fallthru
          _
        %s1436 = smul.u32 %s51, 8
        %s1437 = scalar_lea.vmem %s914, %s1436
        %v1438 = vld [vmem:[%s1437] sm:$0xff]
        %v1439 = vsel %vm986, %v1438, 0.0
        %1440 = vadd.xlane.f32.xlu0 %v1439
        %v1441 = vpop.xlane.xlu0 %1440
        %v1442 = vrcp.pop 32.0
        %v1443 = vmul.f32 %v1441, %v1442
        %v1444 = vsub.f32 %v1438, %v1443
        %v1445 = vmul.f32 %v1444, %v1444
        %v1446 = vsel %vm986, %v1445, 0.0
        %1447 = vadd.xlane.f32.xlu0 %v1446
        %v1448 = vpop.xlane.xlu0 %1447
        %v1449 = vmul.f32 %v1448, %v1442
        %v1450 = vadd.f32 %v1449, 1e-06
        %v1451 = vrsqrt.pop %v1450
        %v1452 = vmul.f32 %v1444, %v1451
        %v1453 = vadd.f32 %v1025, 1.0
        %v1454 = vlaneseq
        %v1455 = vshrl.u32 %v1454, 7
        %v1456 = vsub.s32 0, %v1455
        %v1457 = vrot.slane %v1453, %v1456
        %1459 = vrot.lane.b32.xlu0 %v1457, 96
        %v1460 = vpop.permute.xlu0 %1459
        %v1462 = vmul.f32 %v1452, %v1460
        %v1463 = vlaneseq
        %v1464 = vshrl.u32 %v1463, 7
        %v1465 = vsub.s32 0, %v1464
        %v1466 = vrot.slane %v1025, %v1465
        %v1467 = vadd.f32 %v1462, %v1466
        %v1468 = vpack.c.bf16 %v1467, %v1467
        %v1469 = vld [vmem:[%s8] sm:$0xf]
        %v1470 = vld [vmem:[%s8 + $0x4] sm:$0xf]
        %v1471 = vld [vmem:[%s8 + $0x8] sm:$0xf]
        %v1472 = vld [vmem:[%s8 + $0xc] sm:$0xf]
        %v1473 = vld [vmem:[%s9] sm:$0x1]
        %v1475 = vlaneseq
        %v1476 = vshrl.u32 %v1475, 7
        %v1477 = vsub.s32 0, %v1476
        %v1478 = vrot.slane %v1473, %v1477
        %v1484 = vunpack.c.l.b16 %v1469
        %v1485 = vunpack.c.l.b16 %v1470
        %v1486 = vunpack.c.l.b16 %v1471
        %v1487 = vunpack.c.l.b16 %v1472
        %v1488 = vpack.c.b16 %v1485, %v1484
        %v1489 = vpack.c.b16 %v1487, %v1486
        %v1493 = vsel %vm986, %v1468, 0
        %1495 = vmatprep.subr.bf16.mxu0 0
        %1496 = vmatpush1.bf16.msra.mxu0 0
        %1497 = vmatprep.subr.bf16.mxu0 0
        %1498 = vmatpush1.bf16.msra.mxu0 0
        %1499 = vmatprep.subr.bf16.mxu0 0
        %1500 = vmatpush1.bf16.msra.mxu0 0
        %1501 = vmatprep.subr.bf16.mxu0 0
        %1502 = vmatpush1.bf16.msra.mxu0 0
        %1503 = vmatprep.subr.bf16.mxu0 0
        %1504 = vmatpush1.bf16.msra.mxu0 0
        %1505 = vmatprep.subr.bf16.mxu0 0
        %1506 = vmatpush1.bf16.msra.mxu0 0
        %1507 = vmatprep.subr.bf16.mxu0 0
        %1508 = vmatpush1.bf16.msra.mxu0 %v1489
        %1509 = vmatprep.subr.bf16.mxu0 0
        %1510 = vmatpush1.bf16.msra.mxu0 %v1488
        %1511 = vmatprep.subr.bf16.mxu0 0
        %1512 = vmatpush2.bf16.msra.mxu0 0
        %1513 = vmatprep.subr.bf16.mxu0 0
        %1514 = vmatpush2.bf16.msra.mxu0 0
        %1515 = vmatprep.subr.bf16.mxu0 0
        %1516 = vmatpush2.bf16.msra.mxu0 0
        %1517 = vmatprep.subr.bf16.mxu0 0
        %1518 = vmatpush2.bf16.msra.mxu0 0
        %1519 = vmatprep.subr.bf16.mxu0 0
        %1520 = vmatpush2.bf16.msra.mxu0 0
        %1521 = vmatprep.subr.bf16.mxu0 0
        %1522 = vmatpush2.bf16.msra.mxu0 0
        %1523 = vmatprep.subr.bf16.mxu0 0
        %1524 = vmatpush2.bf16.msra.mxu0 0
        %1525 = vmatprep.subr.bf16.mxu0 0
        %1526 = vmatpush2.bf16.msra.mxu0 0
        %1527 = vmatprep.mubr.bf16.mxu0 0
        %1528 = vmatmul.mubr.bf16.gmra.mxu0 %v1493
        %v1529 = vpop.f32.mrf.mxu0
        %v1530 = vadd.f32 %v1478, %v1529
        %v1531 = vpop.f32.mrf.mxu0
        %v1532 = vpop.f32.mrf.mxu0
        %v1533 = vpop.f32.mrf.mxu0
        %1534 = vdwg.mxu0
        %s1535 = scalar_lea.vmem %s3, %s1436
        %v1536 = vld [vmem:[%s1535] sm:$0xff]
        %1538 = vrot.lane.b32.xlu0 %v1536, 64
        %v1539 = vpop.permute.xlu0 %1538
        %vm1541 = vcmask 523264
        %v1542 = vsel %vm1541, %v1536, %v1539
        %s1543 = scalar_lea.vmem %s4, %s1436
        %v1544 = vld [vmem:[%s1543] sm:$0xff]
        %1546 = vrot.lane.b32.xlu0 %v1544, 64
        %v1547 = vpop.permute.xlu0 %1546
        %v1549 = vsel %vm1541, %v1544, %v1547
        %s1550 = scalar_lea.vmem [#allocation9], %s1436
        %v1551 = vld [vmem:[%s1550] sm:$0xff]
        %1553 = vrot.lane.b32.xlu0 %v1551, 64
        %v1554 = vpop.permute.xlu0 %1553
        %v1556 = vsel %vm1541, %v1551, %v1554
        %v1557 = vmul.f32 %v1530, %v1542
        %1558 = vrot.lane.b32.xlu0 %v1530, 32
        %v1559 = vpop.permute.xlu0 %1558
        %v1560 = vmul.f32 %v1559, %v1549
        %v1561 = vadd.f32 %v1557, %v1560
        %1562 = vrot.lane.b32.xlu0 %v1530, 96
        %v1563 = vpop.permute.xlu0 %1562
        %v1564 = vmul.f32 %v1563, %v1556
        %v1565 = vadd.f32 %v1561, %v1564
        %v1566 = vpack.c.bf16 %v1565, %v1565
        %1568 = vrot.lane.b32.xlu0 %v1566, 64
        %v1569 = vpop.permute.xlu0 %1568
        %v1570 = vld [vmem:[#allocation2] sm:$0xf]
        %v1571 = vld [vmem:[#allocation2 + $0x4] sm:$0xf]
        %v1572 = vld [vmem:[#allocation3] sm:$0xf]
        %v1573 = vld [vmem:[#allocation3 + $0x4] sm:$0xf]
        %v1575 = vsel %vm1541, %v1566, 0
        %v1578 = vsel %vm1541, %v1570, 0
        %1580 = vmatprep.subr.bf16.mxu0 0
        %1581 = vmatpush1.bf16.xpose.msra.mxu0 0
        %1582 = vmatprep.subr.bf16.mxu0 0
        %1583 = vmatpush1.bf16.xpose.msra.mxu0 0
        %1584 = vmatprep.subr.bf16.mxu0 0
        %1585 = vmatpush1.bf16.xpose.msra.mxu0 0
        %1586 = vmatprep.subr.bf16.mxu0 0
        %1587 = vmatpush1.bf16.xpose.msra.mxu0 0
        %1588 = vmatprep.subr.bf16.mxu0 0
        %1589 = vmatpush1.bf16.xpose.msra.mxu0 0
        %1590 = vmatprep.subr.bf16.mxu0 0
        %1591 = vmatpush1.bf16.xpose.msra.mxu0 0
        %1592 = vmatprep.subr.bf16.mxu0 0
        %1593 = vmatpush1.bf16.xpose.msra.mxu0 0
        %1594 = vmatprep.subr.bf16.mxu0 0
        %1595 = vmatpush1.bf16.xpose.msra.mxu0 %v1578
        %1596 = vmatprep.subr.bf16.mxu0 0
        %1597 = vmatpush2.bf16.xpose.msra.mxu0 0
        %1598 = vmatprep.subr.bf16.mxu0 0
        %1599 = vmatpush2.bf16.xpose.msra.mxu0 0
        %1600 = vmatprep.subr.bf16.mxu0 0
        %1601 = vmatpush2.bf16.xpose.msra.mxu0 0
        %1602 = vmatprep.subr.bf16.mxu0 0
        %1603 = vmatpush2.bf16.xpose.msra.mxu0 0
        %1604 = vmatprep.subr.bf16.mxu0 0
        %1605 = vmatpush2.bf16.xpose.msra.mxu0 0
        %1606 = vmatprep.subr.bf16.mxu0 0
        %1607 = vmatpush2.bf16.xpose.msra.mxu0 0
        %1608 = vmatprep.subr.bf16.mxu0 0
        %1609 = vmatpush2.bf16.xpose.msra.mxu0 0
        %1610 = vmatprep.subr.bf16.mxu0 0
        %1611 = vmatpush2.bf16.xpose.msra.mxu0 0
        %1612 = vmatprep.mubr.bf16.mxu0 0
        %1613 = vmatmul.mubr.bf16.gmra.mxu0 %v1575
        %v1614 = vpop.f32.mrf.mxu0
        %v1615 = vadd.f32 0.0, %v1614
        %v1616 = vpop.f32.mrf.mxu0
        %v1617 = vpop.f32.mrf.mxu0
        %v1618 = vpop.f32.mrf.mxu0
        %1619 = vdwg.mxu0
        %v1621 = vsel %vm1541, %v1569, 0
        %v1624 = vsel %vm1541, %v1571, 0
        %1626 = vmatprep.subr.bf16.mxu0 0
        %1627 = vmatpush1.bf16.xpose.msra.mxu0 0
        %1628 = vmatprep.subr.bf16.mxu0 0
        %1629 = vmatpush1.bf16.xpose.msra.mxu0 0
        %1630 = vmatprep.subr.bf16.mxu0 0
        %1631 = vmatpush1.bf16.xpose.msra.mxu0 0
        %1632 = vmatprep.subr.bf16.mxu0 0
        %1633 = vmatpush1.bf16.xpose.msra.mxu0 0
        %1634 = vmatprep.subr.bf16.mxu0 0
        %1635 = vmatpush1.bf16.xpose.msra.mxu0 0
        %1636 = vmatprep.subr.bf16.mxu0 0
        %1637 = vmatpush1.bf16.xpose.msra.mxu0 0
        %1638 = vmatprep.subr.bf16.mxu0 0
        %1639 = vmatpush1.bf16.xpose.msra.mxu0 0
        %1640 = vmatprep.subr.bf16.mxu0 0
        %1641 = vmatpush1.bf16.xpose.msra.mxu0 %v1624
        %1642 = vmatprep.subr.bf16.mxu0 0
        %1643 = vmatpush2.bf16.xpose.msra.mxu0 0
        %1644 = vmatprep.subr.bf16.mxu0 0
        %1645 = vmatpush2.bf16.xpose.msra.mxu0 0
        %1646 = vmatprep.subr.bf16.mxu0 0
        %1647 = vmatpush2.bf16.xpose.msra.mxu0 0
        %1648 = vmatprep.subr.bf16.mxu0 0
        %1649 = vmatpush2.bf16.xpose.msra.mxu0 0
        %1650 = vmatprep.subr.bf16.mxu0 0
        %1651 = vmatpush2.bf16.xpose.msra.mxu0 0
        %1652 = vmatprep.subr.bf16.mxu0 0
        %1653 = vmatpush2.bf16.xpose.msra.mxu0 0
        %1654 = vmatprep.subr.bf16.mxu0 0
        %1655 = vmatpush2.bf16.xpose.msra.mxu0 0
        %1656 = vmatprep.subr.bf16.mxu0 0
        %1657 = vmatpush2.bf16.xpose.msra.mxu0 0
        %1658 = vmatprep.mubr.bf16.mxu0 0
        %1659 = vmatmul.mubr.bf16.gmra.mxu0 %v1621
        %v1660 = vpop.f32.mrf.mxu0
        %v1661 = vadd.f32 0.0, %v1660
        %v1662 = vpop.f32.mrf.mxu0
        %v1663 = vpop.f32.mrf.mxu0
        %v1664 = vpop.f32.mrf.mxu0
        %1665 = vdwg.mxu0
        %vm1666 = vcmask 64512
        %v1667 = vsel %vm1666, %v1615, -inf
        %1668 = vmax.xlane.f32.xlu0 %v1667
        %v1669 = vpop.xlane.xlu0 %1668
        %v1670 = vsel %vm1666, %v1661, -inf
        %1671 = vmax.xlane.f32.xlu0 %v1670
        %v1672 = vpop.xlane.xlu0 %1671
        %v1673 = vsub.f32 -inf, %v1669
        %v1674 = vsub.f32 -inf, %v1672
        %v1675 = vmul.f32 %v1673, 1.442695
        %v1676 = vpow.pop %v1675
        %v1677 = vmul.f32 %v1674, 1.442695
        %v1678 = vpow.pop %v1677
        %v1679 = vsub.f32 %v1615, %v1669
        %v1680 = vsub.f32 %v1661, %v1672
        %v1681 = vmul.f32 %v1679, 1.442695
        %v1682 = vpow.pop %v1681
        %v1683 = vmul.f32 %v1680, 1.442695
        %v1684 = vpow.pop %v1683
        %v1685 = vmul.f32 %v1676, 0.0
        %v1686 = vmul.f32 %v1678, 0.0
        %v1687 = vsel %vm1666, %v1682, 0.0
        %1688 = vadd.xlane.f32.xlu0 %v1687
        %v1689 = vpop.xlane.xlu0 %1688
        %v1690 = vsel %vm1666, %v1684, 0.0
        %1691 = vadd.xlane.f32.xlu0 %v1690
        %v1692 = vpop.xlane.xlu0 %1691
        %v1693 = vadd.f32 %v1685, %v1689
        %v1694 = vadd.f32 %v1686, %v1692
        %v1695 = vpack.c.bf16 %v1682, %v1682
        %v1696 = vpack.c.bf16 %v1684, %v1684
        %v1698 = vsel %vm1666, %v1695, 0
        %vm1700 = vcmask 1043456
        %v1702 = vsel %vm1700, %v1572, 0
        %1704 = vmatprep.subr.bf16.mxu0 0
        %1705 = vmatpush1.bf16.msra.mxu0 0
        %1706 = vmatprep.subr.bf16.mxu0 0
        %1707 = vmatpush1.bf16.msra.mxu0 0
        %1708 = vmatprep.subr.bf16.mxu0 0
        %1709 = vmatpush1.bf16.msra.mxu0 0
        %1710 = vmatprep.subr.bf16.mxu0 0
        %1711 = vmatpush1.bf16.msra.mxu0 0
        %1712 = vmatprep.subr.bf16.mxu0 0
        %1713 = vmatpush1.bf16.msra.mxu0 0
        %1714 = vmatprep.subr.bf16.mxu0 0
        %1715 = vmatpush1.bf16.msra.mxu0 0
        %1716 = vmatprep.subr.bf16.mxu0 0
        %1717 = vmatpush1.bf16.msra.mxu0 0
        %1718 = vmatprep.subr.bf16.mxu0 0
        %1719 = vmatpush1.bf16.msra.mxu0 %v1702
        %1720 = vmatprep.subr.bf16.mxu0 0
        %1721 = vmatpush2.bf16.msra.mxu0 0
        %1722 = vmatprep.subr.bf16.mxu0 0
        %1723 = vmatpush2.bf16.msra.mxu0 0
        %1724 = vmatprep.subr.bf16.mxu0 0
        %1725 = vmatpush2.bf16.msra.mxu0 0
        %1726 = vmatprep.subr.bf16.mxu0 0
        %1727 = vmatpush2.bf16.msra.mxu0 0
        %1728 = vmatprep.subr.bf16.mxu0 0
        %1729 = vmatpush2.bf16.msra.mxu0 0
        %1730 = vmatprep.subr.bf16.mxu0 0
        %1731 = vmatpush2.bf16.msra.mxu0 0
        %1732 = vmatprep.subr.bf16.mxu0 0
        %1733 = vmatpush2.bf16.msra.mxu0 0
        %1734 = vmatprep.subr.bf16.mxu0 0
        %1735 = vmatpush2.bf16.msra.mxu0 0
        %1736 = vmatprep.mubr.bf16.mxu0 0
        %1737 = vmatmul.mubr.bf16.gmra.mxu0 %v1698
        %v1738 = vpop.f32.mrf.mxu0
        %v1739 = vadd.f32 0.0, %v1738
        %v1740 = vpop.f32.mrf.mxu0
        %v1741 = vpop.f32.mrf.mxu0
        %v1742 = vpop.f32.mrf.mxu0
        %1743 = vdwg.mxu0
        %v1745 = vsel %vm1666, %v1696, 0
        %v1748 = vsel %vm1700, %v1573, 0
        %1750 = vmatprep.subr.bf16.mxu0 0
        %1751 = vmatpush1.bf16.msra.mxu0 0
        %1752 = vmatprep.subr.bf16.mxu0 0
        %1753 = vmatpush1.bf16.msra.mxu0 0
        %1754 = vmatprep.subr.bf16.mxu0 0
        %1755 = vmatpush1.bf16.msra.mxu0 0
        %1756 = vmatprep.subr.bf16.mxu0 0
        %1757 = vmatpush1.bf16.msra.mxu0 0
        %1758 = vmatprep.subr.bf16.mxu0 0
        %1759 = vmatpush1.bf16.msra.mxu0 0
        %1760 = vmatprep.subr.bf16.mxu0 0
        %1761 = vmatpush1.bf16.msra.mxu0 0
        %1762 = vmatprep.subr.bf16.mxu0 0
        %1763 = vmatpush1.bf16.msra.mxu0 0
        %1764 = vmatprep.subr.bf16.mxu0 0
        %1765 = vmatpush1.bf16.msra.mxu0 %v1748
        %1766 = vmatprep.subr.bf16.mxu0 0
        %1767 = vmatpush2.bf16.msra.mxu0 0
        %1768 = vmatprep.subr.bf16.mxu0 0
        %1769 = vmatpush2.bf16.msra.mxu0 0
        %1770 = vmatprep.subr.bf16.mxu0 0
        %1771 = vmatpush2.bf16.msra.mxu0 0
        %1772 = vmatprep.subr.bf16.mxu0 0
        %1773 = vmatpush2.bf16.msra.mxu0 0
        %1774 = vmatprep.subr.bf16.mxu0 0
        %1775 = vmatpush2.bf16.msra.mxu0 0
        %1776 = vmatprep.subr.bf16.mxu0 0
        %1777 = vmatpush2.bf16.msra.mxu0 0
        %1778 = vmatprep.subr.bf16.mxu0 0
        %1779 = vmatpush2.bf16.msra.mxu0 0
        %1780 = vmatprep.subr.bf16.mxu0 0
        %1781 = vmatpush2.bf16.msra.mxu0 0
        %1782 = vmatprep.mubr.bf16.mxu0 0
        %1783 = vmatmul.mubr.bf16.gmra.mxu0 %v1745
        %v1784 = vpop.f32.mrf.mxu0
        %v1785 = vadd.f32 0.0, %v1784
        %v1786 = vpop.f32.mrf.mxu0
        %v1787 = vpop.f32.mrf.mxu0
        %v1788 = vpop.f32.mrf.mxu0
        %1789 = vdwg.mxu0
        %v1790 = vadd.f32 %v1685, %v1739
        %v1791 = vadd.f32 %v1686, %v1785
        %v1792 = vrcp.pop %v1693
        %v1793 = vrcp.pop %v1694
        %v1794 = vmul.f32 %v1790, %v1792
        %v1795 = vmul.f32 %v1791, %v1793
        %1797 = vrot.lane.b32.xlu0 %v1795, 64
        %v1798 = vpop.permute.xlu0 %1797
        %v1800 = vsel %vm1541, %v1794, %v1798
        %v1801 = vpack.c.bf16 %v1800, %v1800
        %v1802 = vld [vmem:[%s14] sm:$0xf]
        %v1803 = vld [vmem:[%s14 + $0x4] sm:$0xf]
        %v1804 = vld [vmem:[%s14 + $0x8] sm:$0xf]
        %v1805 = vld [vmem:[%s14 + $0xc] sm:$0xf]
        %v1806 = vld [vmem:[%s14 + $0x10] sm:$0xf]
        %v1807 = vld [vmem:[%s14 + $0x14] sm:$0xf]
        %v1808 = vld [vmem:[%s14 + $0x18] sm:$0xf]
        %v1809 = vld [vmem:[%s14 + $0x1c] sm:$0xf]
        %v1810 = vld [vmem:[%s14 + $0x20] sm:$0xf]
        %v1811 = vld [vmem:[%s14 + $0x24] sm:$0xf]
        %v1812 = vld [vmem:[%s14 + $0x28] sm:$0xf]
        %v1813 = vld [vmem:[%s14 + $0x2c] sm:$0xf]
        %v1814 = vld [vmem:[%s14 + $0x30] sm:$0xf]
        %v1815 = vld [vmem:[%s14 + $0x34] sm:$0xf]
        %v1816 = vld [vmem:[%s14 + $0x38] sm:$0xf]
        %v1817 = vld [vmem:[%s14 + $0x3c] sm:$0xf]
        %v1818 = vld [vmem:[%s15] sm:$0x1]
        %v1820 = vlaneseq
        %v1821 = vshrl.u32 %v1820, 7
        %v1822 = vsub.s32 0, %v1821
        %v1823 = vrot.slane %v1818, %v1822
        %v1841 = vunpack.c.l.b16 %v1802
        %v1842 = vunpack.c.l.b16 %v1803
        %v1843 = vunpack.c.l.b16 %v1804
        %v1844 = vunpack.c.l.b16 %v1805
        %v1845 = vunpack.c.l.b16 %v1806
        %v1846 = vunpack.c.l.b16 %v1807
        %v1847 = vunpack.c.l.b16 %v1808
        %v1848 = vunpack.c.l.b16 %v1809
        %v1849 = vunpack.c.l.b16 %v1810
        %v1850 = vunpack.c.l.b16 %v1811
        %v1851 = vunpack.c.l.b16 %v1812
        %v1852 = vunpack.c.l.b16 %v1813
        %v1853 = vunpack.c.l.b16 %v1814
        %v1854 = vunpack.c.l.b16 %v1815
        %v1855 = vunpack.c.l.b16 %v1816
        %v1856 = vunpack.c.l.b16 %v1817
        %v1857 = vpack.c.b16 %v1842, %v1841
        %v1858 = vpack.c.b16 %v1844, %v1843
        %v1859 = vpack.c.b16 %v1846, %v1845
        %v1860 = vpack.c.b16 %v1848, %v1847
        %v1861 = vpack.c.b16 %v1850, %v1849
        %v1862 = vpack.c.b16 %v1852, %v1851
        %v1863 = vpack.c.b16 %v1854, %v1853
        %v1864 = vpack.c.b16 %v1856, %v1855
        %1873 = vmatprep.subr.bf16.mxu0 0
        %1874 = vmatpush1.bf16.msra.mxu0 %v1864
        %1875 = vmatprep.subr.bf16.mxu0 0
        %1876 = vmatpush1.bf16.msra.mxu0 %v1863
        %1877 = vmatprep.subr.bf16.mxu0 0
        %1878 = vmatpush1.bf16.msra.mxu0 %v1862
        %1879 = vmatprep.subr.bf16.mxu0 0
        %1880 = vmatpush1.bf16.msra.mxu0 %v1861
        %1881 = vmatprep.subr.bf16.mxu0 0
        %1882 = vmatpush1.bf16.msra.mxu0 %v1860
        %1883 = vmatprep.subr.bf16.mxu0 0
        %1884 = vmatpush1.bf16.msra.mxu0 %v1859
        %1885 = vmatprep.subr.bf16.mxu0 0
        %1886 = vmatpush1.bf16.msra.mxu0 %v1858
        %1887 = vmatprep.subr.bf16.mxu0 0
        %1888 = vmatpush1.bf16.msra.mxu0 %v1857
        %1889 = vmatprep.subr.bf16.mxu0 0
        %1890 = vmatpush2.bf16.msra.mxu0 0
        %1891 = vmatprep.subr.bf16.mxu0 0
        %1892 = vmatpush2.bf16.msra.mxu0 0
        %1893 = vmatprep.subr.bf16.mxu0 0
        %1894 = vmatpush2.bf16.msra.mxu0 0
        %1895 = vmatprep.subr.bf16.mxu0 0
        %1896 = vmatpush2.bf16.msra.mxu0 0
        %1897 = vmatprep.subr.bf16.mxu0 0
        %1898 = vmatpush2.bf16.msra.mxu0 0
        %1899 = vmatprep.subr.bf16.mxu0 0
        %1900 = vmatpush2.bf16.msra.mxu0 0
        %1901 = vmatprep.subr.bf16.mxu0 0
        %1902 = vmatpush2.bf16.msra.mxu0 0
        %1903 = vmatprep.subr.bf16.mxu0 0
        %1904 = vmatpush2.bf16.msra.mxu0 0
        %1905 = vmatprep.mubr.bf16.mxu0 0
        %1906 = vmatmul.mubr.bf16.gmra.mxu0 %v1801
        %v1907 = vpop.f32.mrf.mxu0
        %v1908 = vadd.f32 %v1823, %v1907
        %v1909 = vpop.f32.mrf.mxu0
        %v1910 = vpop.f32.mrf.mxu0
        %v1911 = vpop.f32.mrf.mxu0
        %1912 = vdwg.mxu0
        %1914 = vrot.lane.b32.xlu0 %v1908, 64
        %v1915 = vpop.permute.xlu0 %1914
        %v1917 = vmul.f32 %v1466, %v1915
        %1919 = vrot.lane.b32.xlu0 %v1917, 64
        %v1920 = vpop.permute.xlu0 %1919
        %v1922 = vadd.f32 %v1438, %v1920
        %v1923 = vsel %vm986, %v1922, 0.0
        %1924 = vadd.xlane.f32.xlu0 %v1923
        %v1925 = vpop.xlane.xlu0 %1924
        %v1926 = vmul.f32 %v1925, %v1442
        %v1927 = vsub.f32 %v1922, %v1926
        %v1928 = vmul.f32 %v1927, %v1927
        %v1929 = vsel %vm986, %v1928, 0.0
        %1930 = vadd.xlane.f32.xlu0 %v1929
        %v1931 = vpop.xlane.xlu0 %1930
        %v1932 = vmul.f32 %v1931, %v1442
        %v1933 = vadd.f32 %v1932, 1e-06
        %v1934 = vrsqrt.pop %v1933
        %v1935 = vmul.f32 %v1927, %v1934
        %v1936 = vadd.f32 %v1027, 1.0
        %v1937 = vlaneseq
        %v1938 = vshrl.u32 %v1937, 7
        %v1939 = vsub.s32 0, %v1938
        %v1940 = vrot.slane %v1936, %v1939
        %v1941 = vmul.f32 %v1935, %v1940
        %1943 = vrot.lane.b32.xlu0 %v1466, 32
        %v1944 = vpop.permute.xlu0 %1943
        %v1946 = vadd.f32 %v1941, %v1944
        %v1947 = vpack.c.bf16 %v1946, %v1946
        %v1948 = vld [vmem:[%s16] sm:$0xf]
        %v1949 = vld [vmem:[%s16 + $0x4] sm:$0xf]
        %v1950 = vld [vmem:[%s16 + $0x8] sm:$0xf]
        %v1951 = vld [vmem:[%s16 + $0xc] sm:$0xf]
        %v1952 = vld [vmem:[%s17] sm:$0x1]
        %v1954 = vlaneseq
        %v1955 = vshrl.u32 %v1954, 7
        %v1956 = vsub.s32 0, %v1955
        %v1957 = vrot.slane %v1952, %v1956
        %v1963 = vunpack.c.l.b16 %v1948
        %v1964 = vunpack.c.l.b16 %v1949
        %v1965 = vunpack.c.l.b16 %v1950
        %v1966 = vunpack.c.l.b16 %v1951
        %v1967 = vpack.c.b16 %v1964, %v1963
        %v1968 = vpack.c.b16 %v1966, %v1965
        %v1972 = vsel %vm986, %v1947, 0
        %1974 = vmatprep.subr.bf16.mxu0 0
        %1975 = vmatpush1.bf16.msra.mxu0 0
        %1976 = vmatprep.subr.bf16.mxu0 0
        %1977 = vmatpush1.bf16.msra.mxu0 0
        %1978 = vmatprep.subr.bf16.mxu0 0
        %1979 = vmatpush1.bf16.msra.mxu0 0
        %1980 = vmatprep.subr.bf16.mxu0 0
        %1981 = vmatpush1.bf16.msra.mxu0 0
        %1982 = vmatprep.subr.bf16.mxu0 0
        %1983 = vmatpush1.bf16.msra.mxu0 0
        %1984 = vmatprep.subr.bf16.mxu0 0
        %1985 = vmatpush1.bf16.msra.mxu0 0
        %1986 = vmatprep.subr.bf16.mxu0 0
        %1987 = vmatpush1.bf16.msra.mxu0 %v1968
        %1988 = vmatprep.subr.bf16.mxu0 0
        %1989 = vmatpush1.bf16.msra.mxu0 %v1967
        %1990 = vmatprep.subr.bf16.mxu0 0
        %1991 = vmatpush2.bf16.msra.mxu0 0
        %1992 = vmatprep.subr.bf16.mxu0 0
        %1993 = vmatpush2.bf16.msra.mxu0 0
        %1994 = vmatprep.subr.bf16.mxu0 0
        %1995 = vmatpush2.bf16.msra.mxu0 0
        %1996 = vmatprep.subr.bf16.mxu0 0
        %1997 = vmatpush2.bf16.msra.mxu0 0
        %1998 = vmatprep.subr.bf16.mxu0 0
        %1999 = vmatpush2.bf16.msra.mxu0 0
        %2000 = vmatprep.subr.bf16.mxu0 0
        %2001 = vmatpush2.bf16.msra.mxu0 0
        %2002 = vmatprep.subr.bf16.mxu0 0
        %2003 = vmatpush2.bf16.msra.mxu0 0
        %2004 = vmatprep.subr.bf16.mxu0 0
        %2005 = vmatpush2.bf16.msra.mxu0 0
        %2006 = vmatprep.mubr.bf16.mxu0 0
        %2007 = vmatmul.mubr.bf16.gmra.mxu0 %v1972
        %v2008 = vpop.f32.mrf.mxu0
        %v2009 = vadd.f32 %v1957, %v2008
        %v2010 = vpop.f32.mrf.mxu0
        %v2011 = vpop.f32.mrf.mxu0
        %v2012 = vpop.f32.mrf.mxu0
        %2013 = vdwg.mxu0
        %v2014 = vpack.c.bf16 %v2009, %v2009
        %2016 = vrot.lane.b32.xlu0 %v2014, 64
        %v2017 = vpop.permute.xlu0 %2016
        %v2018 = vld [vmem:[#allocation4] sm:$0xf]
        %v2019 = vld [vmem:[#allocation4 + $0x4] sm:$0xf]
        %v2021 = vsel %vm1541, %v2014, 0
        %v2024 = vsel %vm1541, %v2018, 0
        %2026 = vmatprep.subr.bf16.mxu0 0
        %2027 = vmatpush1.bf16.xpose.msra.mxu0 0
        %2028 = vmatprep.subr.bf16.mxu0 0
        %2029 = vmatpush1.bf16.xpose.msra.mxu0 0
        %2030 = vmatprep.subr.bf16.mxu0 0
        %2031 = vmatpush1.bf16.xpose.msra.mxu0 0
        %2032 = vmatprep.subr.bf16.mxu0 0
        %2033 = vmatpush1.bf16.xpose.msra.mxu0 0
        %2034 = vmatprep.subr.bf16.mxu0 0
        %2035 = vmatpush1.bf16.xpose.msra.mxu0 0
        %2036 = vmatprep.subr.bf16.mxu0 0
        %2037 = vmatpush1.bf16.xpose.msra.mxu0 0
        %2038 = vmatprep.subr.bf16.mxu0 0
        %2039 = vmatpush1.bf16.xpose.msra.mxu0 0
        %2040 = vmatprep.subr.bf16.mxu0 0
        %2041 = vmatpush1.bf16.xpose.msra.mxu0 %v2024
        %2042 = vmatprep.subr.bf16.mxu0 0
        %2043 = vmatpush2.bf16.xpose.msra.mxu0 0
        %2044 = vmatprep.subr.bf16.mxu0 0
        %2045 = vmatpush2.bf16.xpose.msra.mxu0 0
        %2046 = vmatprep.subr.bf16.mxu0 0
        %2047 = vmatpush2.bf16.xpose.msra.mxu0 0
        %2048 = vmatprep.subr.bf16.mxu0 0
        %2049 = vmatpush2.bf16.xpose.msra.mxu0 0
        %2050 = vmatprep.subr.bf16.mxu0 0
        %2051 = vmatpush2.bf16.xpose.msra.mxu0 0
        %2052 = vmatprep.subr.bf16.mxu0 0
        %2053 = vmatpush2.bf16.xpose.msra.mxu0 0
        %2054 = vmatprep.subr.bf16.mxu0 0
        %2055 = vmatpush2.bf16.xpose.msra.mxu0 0
        %2056 = vmatprep.subr.bf16.mxu0 0
        %2057 = vmatpush2.bf16.xpose.msra.mxu0 0
        %2058 = vmatprep.mubr.bf16.mxu0 0
        %2059 = vmatmul.mubr.bf16.gmra.mxu0 %v2021
        %v2060 = vpop.f32.mrf.mxu0
        %v2061 = vadd.f32 0.0, %v2060
        %v2062 = vpop.f32.mrf.mxu0
        %v2063 = vpop.f32.mrf.mxu0
        %v2064 = vpop.f32.mrf.mxu0
        %2065 = vdwg.mxu0
        %v2067 = vsel %vm1541, %v2017, 0
        %v2070 = vsel %vm1541, %v2019, 0
        %2072 = vmatprep.subr.bf16.mxu0 0
        %2073 = vmatpush1.bf16.xpose.msra.mxu0 0
        %2074 = vmatprep.subr.bf16.mxu0 0
        %2075 = vmatpush1.bf16.xpose.msra.mxu0 0
        %2076 = vmatprep.subr.bf16.mxu0 0
        %2077 = vmatpush1.bf16.xpose.msra.mxu0 0
        %2078 = vmatprep.subr.bf16.mxu0 0
        %2079 = vmatpush1.bf16.xpose.msra.mxu0 0
        %2080 = vmatprep.subr.bf16.mxu0 0
        %2081 = vmatpush1.bf16.xpose.msra.mxu0 0
        %2082 = vmatprep.subr.bf16.mxu0 0
        %2083 = vmatpush1.bf16.xpose.msra.mxu0 0
        %2084 = vmatprep.subr.bf16.mxu0 0
        %2085 = vmatpush1.bf16.xpose.msra.mxu0 0
        %2086 = vmatprep.subr.bf16.mxu0 0
        %2087 = vmatpush1.bf16.xpose.msra.mxu0 %v2070
        %2088 = vmatprep.subr.bf16.mxu0 0
        %2089 = vmatpush2.bf16.xpose.msra.mxu0 0
        %2090 = vmatprep.subr.bf16.mxu0 0
        %2091 = vmatpush2.bf16.xpose.msra.mxu0 0
        %2092 = vmatprep.subr.bf16.mxu0 0
        %2093 = vmatpush2.bf16.xpose.msra.mxu0 0
        %2094 = vmatprep.subr.bf16.mxu0 0
        %2095 = vmatpush2.bf16.xpose.msra.mxu0 0
        %2096 = vmatprep.subr.bf16.mxu0 0
        %2097 = vmatpush2.bf16.xpose.msra.mxu0 0
        %2098 = vmatprep.subr.bf16.mxu0 0
        %2099 = vmatpush2.bf16.xpose.msra.mxu0 0
        %2100 = vmatprep.subr.bf16.mxu0 0
        %2101 = vmatpush2.bf16.xpose.msra.mxu0 0
        %2102 = vmatprep.subr.bf16.mxu0 0
        %2103 = vmatpush2.bf16.xpose.msra.mxu0 0
        %2104 = vmatprep.mubr.bf16.mxu0 0
        %2105 = vmatmul.mubr.bf16.gmra.mxu0 %v2067
        %v2106 = vpop.f32.mrf.mxu0
        %v2107 = vadd.f32 0.0, %v2106
        %v2108 = vpop.f32.mrf.mxu0
        %v2109 = vpop.f32.mrf.mxu0
        %v2110 = vpop.f32.mrf.mxu0
        %2111 = vdwg.mxu0
        %v2112 = vsel %vm1666, %v2061, -inf
        %2113 = vmax.xlane.f32.xlu0 %v2112
        %v2114 = vpop.xlane.xlu0 %2113
        %v2115 = vsel %vm1666, %v2107, -inf
        %2116 = vmax.xlane.f32.xlu0 %v2115
        %v2117 = vpop.xlane.xlu0 %2116
        %v2118 = vsub.f32 %v2061, %v2114
        %v2119 = vsub.f32 %v2107, %v2117
        %v2120 = vmul.f32 %v2118, 1.442695
        %v2121 = vpow.pop %v2120
        %v2122 = vmul.f32 %v2119, 1.442695
        %v2123 = vpow.pop %v2122
        %v2124 = vsel %vm1666, %v2121, 0.0
        %2125 = vadd.xlane.f32.xlu0 %v2124
        %v2126 = vpop.xlane.xlu0 %2125
        %v2127 = vsel %vm1666, %v2123, 0.0
        %2128 = vadd.xlane.f32.xlu0 %v2127
        %v2129 = vpop.xlane.xlu0 %2128
        %v2130 = vrcp.pop %v2126
        %v2131 = vrcp.pop %v2129
        %v2132 = vmul.f32 %v2121, %v2130
        %v2133 = vmul.f32 %v2123, %v2131
        %v2134 = vpack.c.bf16 %v2132, %v2132
        %v2135 = vpack.c.bf16 %v2133, %v2133
        %v2136 = vld [vmem:[#allocation5] sm:$0xf]
        %v2137 = vld [vmem:[#allocation5 + $0x4] sm:$0xf]
        %v2139 = vsel %vm1666, %v2134, 0
        %v2142 = vsel %vm1700, %v2136, 0
        %2144 = vmatprep.subr.bf16.mxu0 0
        %2145 = vmatpush1.bf16.msra.mxu0 0
        %2146 = vmatprep.subr.bf16.mxu0 0
        %2147 = vmatpush1.bf16.msra.mxu0 0
        %2148 = vmatprep.subr.bf16.mxu0 0
        %2149 = vmatpush1.bf16.msra.mxu0 0
        %2150 = vmatprep.subr.bf16.mxu0 0
        %2151 = vmatpush1.bf16.msra.mxu0 0
        %2152 = vmatprep.subr.bf16.mxu0 0
        %2153 = vmatpush1.bf16.msra.mxu0 0
        %2154 = vmatprep.subr.bf16.mxu0 0
        %2155 = vmatpush1.bf16.msra.mxu0 0
        %2156 = vmatprep.subr.bf16.mxu0 0
        %2157 = vmatpush1.bf16.msra.mxu0 0
        %2158 = vmatprep.subr.bf16.mxu0 0
        %2159 = vmatpush1.bf16.msra.mxu0 %v2142
        %2160 = vmatprep.subr.bf16.mxu0 0
        %2161 = vmatpush2.bf16.msra.mxu0 0
        %2162 = vmatprep.subr.bf16.mxu0 0
        %2163 = vmatpush2.bf16.msra.mxu0 0
        %2164 = vmatprep.subr.bf16.mxu0 0
        %2165 = vmatpush2.bf16.msra.mxu0 0
        %2166 = vmatprep.subr.bf16.mxu0 0
        %2167 = vmatpush2.bf16.msra.mxu0 0
        %2168 = vmatprep.subr.bf16.mxu0 0
        %2169 = vmatpush2.bf16.msra.mxu0 0
        %2170 = vmatprep.subr.bf16.mxu0 0
        %2171 = vmatpush2.bf16.msra.mxu0 0
        %2172 = vmatprep.subr.bf16.mxu0 0
        %2173 = vmatpush2.bf16.msra.mxu0 0
        %2174 = vmatprep.subr.bf16.mxu0 0
        %2175 = vmatpush2.bf16.msra.mxu0 0
        %2176 = vmatprep.mubr.bf16.mxu0 0
        %2177 = vmatmul.mubr.bf16.gmra.mxu0 %v2139
        %v2178 = vpop.f32.mrf.mxu0
        %v2179 = vadd.f32 0.0, %v2178
        %v2180 = vpop.f32.mrf.mxu0
        %v2181 = vpop.f32.mrf.mxu0
        %v2182 = vpop.f32.mrf.mxu0
        %2183 = vdwg.mxu0
        %v2185 = vsel %vm1666, %v2135, 0
        %v2188 = vsel %vm1700, %v2137, 0
        %2190 = vmatprep.subr.bf16.mxu0 0
        %2191 = vmatpush1.bf16.msra.mxu0 0
        %2192 = vmatprep.subr.bf16.mxu0 0
        %2193 = vmatpush1.bf16.msra.mxu0 0
        %2194 = vmatprep.subr.bf16.mxu0 0
        %2195 = vmatpush1.bf16.msra.mxu0 0
        %2196 = vmatprep.subr.bf16.mxu0 0
        %2197 = vmatpush1.bf16.msra.mxu0 0
        %2198 = vmatprep.subr.bf16.mxu0 0
        %2199 = vmatpush1.bf16.msra.mxu0 0
        %2200 = vmatprep.subr.bf16.mxu0 0
        %2201 = vmatpush1.bf16.msra.mxu0 0
        %2202 = vmatprep.subr.bf16.mxu0 0
        %2203 = vmatpush1.bf16.msra.mxu0 0
        %2204 = vmatprep.subr.bf16.mxu0 0
        %2205 = vmatpush1.bf16.msra.mxu0 %v2188
        %2206 = vmatprep.subr.bf16.mxu0 0
        %2207 = vmatpush2.bf16.msra.mxu0 0
        %2208 = vmatprep.subr.bf16.mxu0 0
        %2209 = vmatpush2.bf16.msra.mxu0 0
        %2210 = vmatprep.subr.bf16.mxu0 0
        %2211 = vmatpush2.bf16.msra.mxu0 0
        %2212 = vmatprep.subr.bf16.mxu0 0
        %2213 = vmatpush2.bf16.msra.mxu0 0
        %2214 = vmatprep.subr.bf16.mxu0 0
        %2215 = vmatpush2.bf16.msra.mxu0 0
        %2216 = vmatprep.subr.bf16.mxu0 0
        %2217 = vmatpush2.bf16.msra.mxu0 0
        %2218 = vmatprep.subr.bf16.mxu0 0
        %2219 = vmatpush2.bf16.msra.mxu0 0
        %2220 = vmatprep.subr.bf16.mxu0 0
        %2221 = vmatpush2.bf16.msra.mxu0 0
        %2222 = vmatprep.mubr.bf16.mxu0 0
        %2223 = vmatmul.mubr.bf16.gmra.mxu0 %v2185
        %v2224 = vpop.f32.mrf.mxu0
        %v2225 = vadd.f32 0.0, %v2224
        %v2226 = vpop.f32.mrf.mxu0
        %v2227 = vpop.f32.mrf.mxu0
        %v2228 = vpop.f32.mrf.mxu0
        %2229 = vdwg.mxu0
        %2231 = vrot.lane.b32.xlu0 %v2225, 64
        %v2232 = vpop.permute.xlu0 %2231
        %v2234 = vsel %vm1541, %v2179, %v2232
        %v2235 = vpack.c.bf16 %v2234, %v2234
        %v2236 = vld [vmem:[%s22] sm:$0xf]
        %v2237 = vld [vmem:[%s22 + $0x4] sm:$0xf]
        %v2238 = vld [vmem:[%s22 + $0x8] sm:$0xf]
        %v2239 = vld [vmem:[%s22 + $0xc] sm:$0xf]
        %v2240 = vld [vmem:[%s22 + $0x10] sm:$0xf]
        %v2241 = vld [vmem:[%s22 + $0x14] sm:$0xf]
        %v2242 = vld [vmem:[%s22 + $0x18] sm:$0xf]
        %v2243 = vld [vmem:[%s22 + $0x1c] sm:$0xf]
        %v2244 = vld [vmem:[%s22 + $0x20] sm:$0xf]
        %v2245 = vld [vmem:[%s22 + $0x24] sm:$0xf]
        %v2246 = vld [vmem:[%s22 + $0x28] sm:$0xf]
        %v2247 = vld [vmem:[%s22 + $0x2c] sm:$0xf]
        %v2248 = vld [vmem:[%s22 + $0x30] sm:$0xf]
        %v2249 = vld [vmem:[%s22 + $0x34] sm:$0xf]
        %v2250 = vld [vmem:[%s22 + $0x38] sm:$0xf]
        %v2251 = vld [vmem:[%s22 + $0x3c] sm:$0xf]
        %v2252 = vld [vmem:[%s23] sm:$0x1]
        %v2254 = vlaneseq
        %v2255 = vshrl.u32 %v2254, 7
        %v2256 = vsub.s32 0, %v2255
        %v2257 = vrot.slane %v2252, %v2256
        %v2275 = vunpack.c.l.b16 %v2236
        %v2276 = vunpack.c.l.b16 %v2237
        %v2277 = vunpack.c.l.b16 %v2238
        %v2278 = vunpack.c.l.b16 %v2239
        %v2279 = vunpack.c.l.b16 %v2240
        %v2280 = vunpack.c.l.b16 %v2241
        %v2281 = vunpack.c.l.b16 %v2242
        %v2282 = vunpack.c.l.b16 %v2243
        %v2283 = vunpack.c.l.b16 %v2244
        %v2284 = vunpack.c.l.b16 %v2245
        %v2285 = vunpack.c.l.b16 %v2246
        %v2286 = vunpack.c.l.b16 %v2247
        %v2287 = vunpack.c.l.b16 %v2248
        %v2288 = vunpack.c.l.b16 %v2249
        %v2289 = vunpack.c.l.b16 %v2250
        %v2290 = vunpack.c.l.b16 %v2251
        %v2291 = vpack.c.b16 %v2276, %v2275
        %v2292 = vpack.c.b16 %v2278, %v2277
        %v2293 = vpack.c.b16 %v2280, %v2279
        %v2294 = vpack.c.b16 %v2282, %v2281
        %v2295 = vpack.c.b16 %v2284, %v2283
        %v2296 = vpack.c.b16 %v2286, %v2285
        %v2297 = vpack.c.b16 %v2288, %v2287
        %v2298 = vpack.c.b16 %v2290, %v2289
        %2307 = vmatprep.subr.bf16.mxu0 0
        %2308 = vmatpush1.bf16.msra.mxu0 %v2298
        %2309 = vmatprep.subr.bf16.mxu0 0
        %2310 = vmatpush1.bf16.msra.mxu0 %v2297
        %2311 = vmatprep.subr.bf16.mxu0 0
        %2312 = vmatpush1.bf16.msra.mxu0 %v2296
        %2313 = vmatprep.subr.bf16.mxu0 0
        %2314 = vmatpush1.bf16.msra.mxu0 %v2295
        %2315 = vmatprep.subr.bf16.mxu0 0
        %2316 = vmatpush1.bf16.msra.mxu0 %v2294
        %2317 = vmatprep.subr.bf16.mxu0 0
        %2318 = vmatpush1.bf16.msra.mxu0 %v2293
        %2319 = vmatprep.subr.bf16.mxu0 0
        %2320 = vmatpush1.bf16.msra.mxu0 %v2292
        %2321 = vmatprep.subr.bf16.mxu0 0
        %2322 = vmatpush1.bf16.msra.mxu0 %v2291
        %2323 = vmatprep.subr.bf16.mxu0 0
        %2324 = vmatpush2.bf16.msra.mxu0 0
        %2325 = vmatprep.subr.bf16.mxu0 0
        %2326 = vmatpush2.bf16.msra.mxu0 0
        %2327 = vmatprep.subr.bf16.mxu0 0
        %2328 = vmatpush2.bf16.msra.mxu0 0
        %2329 = vmatprep.subr.bf16.mxu0 0
        %2330 = vmatpush2.bf16.msra.mxu0 0
        %2331 = vmatprep.subr.bf16.mxu0 0
        %2332 = vmatpush2.bf16.msra.mxu0 0
        %2333 = vmatprep.subr.bf16.mxu0 0
        %2334 = vmatpush2.bf16.msra.mxu0 0
        %2335 = vmatprep.subr.bf16.mxu0 0
        %2336 = vmatpush2.bf16.msra.mxu0 0
        %2337 = vmatprep.subr.bf16.mxu0 0
        %2338 = vmatpush2.bf16.msra.mxu0 0
        %2339 = vmatprep.mubr.bf16.mxu0 0
        %2340 = vmatmul.mubr.bf16.gmra.mxu0 %v2235
        %v2341 = vpop.f32.mrf.mxu0
        %v2342 = vadd.f32 %v2257, %v2341
        %v2343 = vpop.f32.mrf.mxu0
        %v2344 = vpop.f32.mrf.mxu0
        %v2345 = vpop.f32.mrf.mxu0
        %2346 = vdwg.mxu0
        %v2347 = vlaneseq
        %v2348 = vshrl.u32 %v2347, 7
        %v2349 = vsub.s32 0, %v2348
        %v2350 = vrot.slane %v1027, %v2349
        %2352 = vrot.lane.b32.xlu0 %v2342, 32
        %v2353 = vpop.permute.xlu0 %2352
        %v2355 = vmul.f32 %v2350, %v2353
        %2357 = vrot.lane.b32.xlu0 %v2355, 96
        %v2358 = vpop.permute.xlu0 %2357
        %v2360 = vadd.f32 %v1922, %v2358
        %v2361 = vsel %vm986, %v2360, 0.0
        %2362 = vadd.xlane.f32.xlu0 %v2361
        %v2363 = vpop.xlane.xlu0 %2362
        %v2364 = vmul.f32 %v2363, %v1442
        %v2365 = vsub.f32 %v2360, %v2364
        %v2366 = vmul.f32 %v2365, %v2365
        %v2367 = vsel %vm986, %v2366, 0.0
        %2368 = vadd.xlane.f32.xlu0 %v2367
        %v2369 = vpop.xlane.xlu0 %2368
        %v2370 = vmul.f32 %v2369, %v1442
        %v2371 = vadd.f32 %v2370, 1e-06
        %v2372 = vrsqrt.pop %v2371
        %v2373 = vmul.f32 %v2365, %v2372
        %2375 = vrot.lane.b32.xlu0 %v1940, 32
        %v2376 = vpop.permute.xlu0 %2375
        %v2378 = vmul.f32 %v2373, %v2376
        %2380 = vrot.lane.b32.xlu0 %v2350, 64
        %v2381 = vpop.permute.xlu0 %2380
        %v2383 = vadd.f32 %v2378, %v2381
        %v2384 = vpack.c.bf16 %v2383, %v2383
        %v2385 = vld [vmem:[%s24] sm:$0xf]
        %v2386 = vld [vmem:[%s24 + $0x4] sm:$0xf]
        %v2387 = vld [vmem:[%s24 + $0x8] sm:$0xf]
        %v2388 = vld [vmem:[%s24 + $0xc] sm:$0xf]
        %v2389 = vld [vmem:[%s25] sm:$0x1]
        %v2391 = vlaneseq
        %v2392 = vshrl.u32 %v2391, 7
        %v2393 = vsub.s32 0, %v2392
        %v2394 = vrot.slane %v2389, %v2393
        %v2400 = vunpack.c.l.b16 %v2385
        %v2401 = vunpack.c.l.b16 %v2386
        %v2402 = vunpack.c.l.b16 %v2387
        %v2403 = vunpack.c.l.b16 %v2388
        %v2404 = vpack.c.b16 %v2401, %v2400
        %v2405 = vpack.c.b16 %v2403, %v2402
        %v2409 = vsel %vm986, %v2384, 0
        %2411 = vmatprep.subr.bf16.mxu0 0
        %2412 = vmatpush1.bf16.msra.mxu0 0
        %2413 = vmatprep.subr.bf16.mxu0 0
        %2414 = vmatpush1.bf16.msra.mxu0 0
        %2415 = vmatprep.subr.bf16.mxu0 0
        %2416 = vmatpush1.bf16.msra.mxu0 0
        %2417 = vmatprep.subr.bf16.mxu0 0
        %2418 = vmatpush1.bf16.msra.mxu0 0
        %2419 = vmatprep.subr.bf16.mxu0 0
        %2420 = vmatpush1.bf16.msra.mxu0 0
        %2421 = vmatprep.subr.bf16.mxu0 0
        %2422 = vmatpush1.bf16.msra.mxu0 0
        %2423 = vmatprep.subr.bf16.mxu0 0
        %2424 = vmatpush1.bf16.msra.mxu0 %v2405
        %2425 = vmatprep.subr.bf16.mxu0 0
        %2426 = vmatpush1.bf16.msra.mxu0 %v2404
        %2427 = vmatprep.subr.bf16.mxu0 0
        %2428 = vmatpush2.bf16.msra.mxu0 0
        %2429 = vmatprep.subr.bf16.mxu0 0
        %2430 = vmatpush2.bf16.msra.mxu0 0
        %2431 = vmatprep.subr.bf16.mxu0 0
        %2432 = vmatpush2.bf16.msra.mxu0 0
        %2433 = vmatprep.subr.bf16.mxu0 0
        %2434 = vmatpush2.bf16.msra.mxu0 0
        %2435 = vmatprep.subr.bf16.mxu0 0
        %2436 = vmatpush2.bf16.msra.mxu0 0
        %2437 = vmatprep.subr.bf16.mxu0 0
        %2438 = vmatpush2.bf16.msra.mxu0 0
        %2439 = vmatprep.subr.bf16.mxu0 0
        %2440 = vmatpush2.bf16.msra.mxu0 0
        %2441 = vmatprep.subr.bf16.mxu0 0
        %2442 = vmatpush2.bf16.msra.mxu0 0
        %2443 = vmatprep.mubr.bf16.mxu0 0
        %2444 = vmatmul.mubr.bf16.gmra.mxu0 %v2409
        %v2445 = vpop.f32.mrf.mxu0
        %v2446 = vadd.f32 %v2394, %v2445
        %v2447 = vpop.f32.mrf.mxu0
        %v2448 = vpop.f32.mrf.mxu0
        %v2449 = vpop.f32.mrf.mxu0
        %2450 = vdwg.mxu0
        %v2451 = vmul.f32 %v2446, %v2446
        %v2452 = vmul.f32 %v2446, %v2451
        %v2453 = vmul.f32 %v2452, 0.044715
        %v2454 = vadd.f32 %v2446, %v2453
        %v2455 = vmul.f32 %v2454, 0.7978846
        %v2456 = vtanh.pop %v2455
        %v2457 = vadd.f32 %v2456, 1.0
        %v2458 = vmul.f32 %v2457, 0.5
        %v2459 = vmul.f32 %v2446, %v2458
        %v2460 = vpack.c.bf16 %v2459, %v2459
        %v2461 = vld [vmem:[%s26] sm:$0xf]
        %v2462 = vld [vmem:[%s26 + $0x4] sm:$0xf]
        %v2463 = vld [vmem:[%s26 + $0x8] sm:$0xf]
        %v2464 = vld [vmem:[%s26 + $0xc] sm:$0xf]
        %v2465 = vld [vmem:[%s26 + $0x10] sm:$0xf]
        %v2466 = vld [vmem:[%s26 + $0x14] sm:$0xf]
        %v2467 = vld [vmem:[%s26 + $0x18] sm:$0xf]
        %v2468 = vld [vmem:[%s26 + $0x1c] sm:$0xf]
        %v2469 = vld [vmem:[%s26 + $0x20] sm:$0xf]
        %v2470 = vld [vmem:[%s26 + $0x24] sm:$0xf]
        %v2471 = vld [vmem:[%s26 + $0x28] sm:$0xf]
        %v2472 = vld [vmem:[%s26 + $0x2c] sm:$0xf]
        %v2473 = vld [vmem:[%s26 + $0x30] sm:$0xf]
        %v2474 = vld [vmem:[%s26 + $0x34] sm:$0xf]
        %v2475 = vld [vmem:[%s26 + $0x38] sm:$0xf]
        %v2476 = vld [vmem:[%s26 + $0x3c] sm:$0xf]
        %v2477 = vld [vmem:[%s27] sm:$0x1]
        %v2479 = vlaneseq
        %v2480 = vshrl.u32 %v2479, 7
        %v2481 = vsub.s32 0, %v2480
        %v2482 = vrot.slane %v2477, %v2481
        %v2500 = vunpack.c.l.b16 %v2461
        %v2501 = vunpack.c.l.b16 %v2462
        %v2502 = vunpack.c.l.b16 %v2463
        %v2503 = vunpack.c.l.b16 %v2464
        %v2504 = vunpack.c.l.b16 %v2465
        %v2505 = vunpack.c.l.b16 %v2466
        %v2506 = vunpack.c.l.b16 %v2467
        %v2507 = vunpack.c.l.b16 %v2468
        %v2508 = vunpack.c.l.b16 %v2469
        %v2509 = vunpack.c.l.b16 %v2470
        %v2510 = vunpack.c.l.b16 %v2471
        %v2511 = vunpack.c.l.b16 %v2472
        %v2512 = vunpack.c.l.b16 %v2473
        %v2513 = vunpack.c.l.b16 %v2474
        %v2514 = vunpack.c.l.b16 %v2475
        %v2515 = vunpack.c.l.b16 %v2476
        %v2516 = vpack.c.b16 %v2501, %v2500
        %v2517 = vpack.c.b16 %v2503, %v2502
        %v2518 = vpack.c.b16 %v2505, %v2504
        %v2519 = vpack.c.b16 %v2507, %v2506
        %v2520 = vpack.c.b16 %v2509, %v2508
        %v2521 = vpack.c.b16 %v2511, %v2510
        %v2522 = vpack.c.b16 %v2513, %v2512
        %v2523 = vpack.c.b16 %v2515, %v2514
        %2532 = vmatprep.subr.bf16.mxu0 0
        %2533 = vmatpush1.bf16.msra.mxu0 %v2523
        %2534 = vmatprep.subr.bf16.mxu0 0
        %2535 = vmatpush1.bf16.msra.mxu0 %v2522
        %2536 = vmatprep.subr.bf16.mxu0 0
        %2537 = vmatpush1.bf16.msra.mxu0 %v2521
        %2538 = vmatprep.subr.bf16.mxu0 0
        %2539 = vmatpush1.bf16.msra.mxu0 %v2520
        %2540 = vmatprep.subr.bf16.mxu0 0
        %2541 = vmatpush1.bf16.msra.mxu0 %v2519
        %2542 = vmatprep.subr.bf16.mxu0 0
        %2543 = vmatpush1.bf16.msra.mxu0 %v2518
        %2544 = vmatprep.subr.bf16.mxu0 0
        %2545 = vmatpush1.bf16.msra.mxu0 %v2517
        %2546 = vmatprep.subr.bf16.mxu0 0
        %2547 = vmatpush1.bf16.msra.mxu0 %v2516
        %2548 = vmatprep.subr.bf16.mxu0 0
        %2549 = vmatpush2.bf16.msra.mxu0 0
        %2550 = vmatprep.subr.bf16.mxu0 0
        %2551 = vmatpush2.bf16.msra.mxu0 0
        %2552 = vmatprep.subr.bf16.mxu0 0
        %2553 = vmatpush2.bf16.msra.mxu0 0
        %2554 = vmatprep.subr.bf16.mxu0 0
        %2555 = vmatpush2.bf16.msra.mxu0 0
        %2556 = vmatprep.subr.bf16.mxu0 0
        %2557 = vmatpush2.bf16.msra.mxu0 0
        %2558 = vmatprep.subr.bf16.mxu0 0
        %2559 = vmatpush2.bf16.msra.mxu0 0
        %2560 = vmatprep.subr.bf16.mxu0 0
        %2561 = vmatpush2.bf16.msra.mxu0 0
        %2562 = vmatprep.subr.bf16.mxu0 0
        %2563 = vmatpush2.bf16.msra.mxu0 0
        %2564 = vmatprep.mubr.bf16.mxu0 0
        %2565 = vmatmul.mubr.bf16.gmra.mxu0 %v2460
        %v2566 = vpop.f32.mrf.mxu0
        %v2567 = vadd.f32 %v2482, %v2566
        %v2568 = vpop.f32.mrf.mxu0
        %v2569 = vpop.f32.mrf.mxu0
        %v2570 = vpop.f32.mrf.mxu0
        %2571 = vdwg.mxu0
        %v2572 = vlaneseq
        %v2573 = vshrl.u32 %v2572, 7
        %v2574 = vsub.s32 0, %v2573
        %v2575 = vrot.slane %v1066, %v2574
        %v2576 = vmul.f32 %v2575, %v2567
        %v2577 = vadd.f32 %v2360, %v2576
        %2578 = vst.msk [vmem:[%s910] sm:$0xff] %vm986, %v2577
        %s2579 = sand.u32 %s671, 1
        %s2580 = scalar_lea.sflag [#allocation8], %s2579
        %s2581 = sand.u32 %s671, 1
        %s2582 = smul.addr %s2581, 8
        %s2583 = scalar_lea.vmem [#allocation11], %s2582
        // Predicated region
        $region145: #{tpu_custom_call.1} parent=131 // pred_check
          %p2584 = pneg %p681
        $region146: #{tpu_custom_call.1} parent=131 // pred_check_branch
          %2586 = sbr.rel (%p2584) target = $region148
        $region147: #{tpu_custom_call.1} parent=131 // pred_region
          %s2588 = ssub.s32 128, 128
          %2589 = vsyncadd %s2580, %s2588
          %s2590 = sadd.s32 %s51, %s50
          %s2591 = smul.addr %s2590, 128
          %s2592 = scalar_lea.hbm %s28, %s2591
          %s2594 = sshll.u32 %s2583, 4
          %s2595 = int_to_ptr.vmem [resolvable:$true] %s2594
          %2597 = dma.vmem_to_hbm [thread:$0]  %s2595, 128, %s2592, %s2580
        $region148: #{tpu_custom_call.1} parent=131 // pred_fallthru
          _
      $region132: #{tpu_custom_call.1} parent=5 // pred_fallthru
        _
      %p2598 = scmp.le.s32.totalorder 2, %s41
      // Predicated region
      $region149: #{tpu_custom_call.1} parent=5 // pred_check
        %p2599 = pneg %p2598
      $region150: #{tpu_custom_call.1} parent=5 // pred_check_branch
        %2601 = sbr.rel (%p2599) target = $region152
      $region151: #{tpu_custom_call.1} parent=5 // pred_region
        %s2602 = ssub.s32 %s41, 2
        // Predicated region
        $region153: #{tpu_custom_call.1} parent=151 // pred_check
          %p2603 = pneg %p687
        $region154: #{tpu_custom_call.1} parent=151 // pred_check_branch
          %2605 = sbr.rel (%p2603) target = $region156
        $region155: #{tpu_custom_call.1} parent=151 // pred_region
          %s2606 = sand.u32 %s672, 1
          %s2607 = scalar_lea.sflag [#allocation8], %s2606
          %s2608 = sand.u32 %s672, 1
          %s2609 = smul.addr %s2608, 8
          %s2610 = scalar_lea.vmem [#allocation11], %s2609
          %2611 = dma.done %s2607, 128
        $region156: #{tpu_custom_call.1} parent=151 // pred_fallthru
          _
      $region152: #{tpu_custom_call.1} parent=5 // pred_fallthru
        _
    $region6: #{tpu_custom_call.1} parent=1 // loop_footer
      %s45 = sadd.s32 1, %s41
    $region7: #{tpu_custom_call.1} parent=1 // loop_footer_branch
      %40 = sbr.rel target = $region3
    $region8: #{tpu_custom_call.1} parent=1 // loop_exit
      _
    %2612 = vsyncpa [#allocation7], 1
    %s2613 = scalar_lea.sflag [#allocation7], 1
    %2614 = vsyncpa %s2613, 1
    %2615 = vsyncpa [#allocation10], 1
    %2616 = vsyncpa [#allocation8], 1
    %s2617 = scalar_lea.sflag [#allocation8], 1
    %2618 = vsyncpa %s2617, 1

</llo_original>
